<compile_context>
chip_gen: v6e
topology: v6e:2x2x1
jax: 0.10.0
libtpu: 0.0.40
codegen_flags: <defaults>
</compile_context>

<pallas_src>
import functools

import jax
import jax.numpy as jnp
from jax.experimental import pallas as pl
from jax.experimental.pallas import tpu as pltpu

EPS = 1e-5  # nn.BatchNorm2d default


# ---------------------------------------------------------------------------
# Phase A: conv1 (3x3, stride, pad=1) with the 1x1 projection fused into the
# same matmul, + per-image BN partial stats.  Grid: (N,).
# ---------------------------------------------------------------------------
def conv1_proj_kernel(x_ref, w_ref, y1_ref, s1_ref, *rest,
                      stride, has_proj, Ho, Wo, Cout):
    if has_proj:
        ysc_ref, ssc_ref, cols_ref = rest
    else:
        (cols_ref,) = rest
    Cin = x_ref.shape[-1]
    rows = Ho * Wo

    # im2col into a bf16 slab, then ONE K=9*Cin MXU matmul (9 taps fused).
    if stride == 1:
        for dy in range(3):
            # dy offsets a major (untiled) dim of the bf16 ref: cheap & safe.
            # The dx offset lands on the packed sublane dim, so slice it on an
            # f32 copy of the row band and cast back to bf16 per tap.
            band = x_ref[:, dy:dy + Ho, :, :].astype(jnp.float32)
            for dx in range(3):
                t = dy * 3 + dx
                patch = band[:, :, dx:dx + Wo, :]
                cols_ref[:, t * Cin:(t + 1) * Cin] = (
                    patch.reshape(rows, Cin).astype(jnp.bfloat16))
    else:
        # TODO(synk): fold stride>1 into a BlockSpec index_map / strided pl.ds
        # instead of materializing the whole padded tile and gathering.
        x = x_ref[...].astype(jnp.float32)
        for dy in range(3):
            for dx in range(3):
                t = dy * 3 + dx
                patch = x[:, dy:dy + (Ho - 1) * stride + 1:stride,
                             dx:dx + (Wo - 1) * stride + 1:stride, :]
                cols_ref[:, t * Cin:(t + 1) * Cin] = (
                    patch.reshape(rows, Cin).astype(jnp.bfloat16))

    # Single bf16 x bf16 -> f32 matmul.  For the projection path, ws occupies
    # the center-tap rows of extra output columns so [y1 | ysc] come out of
    # one MXU pass (no duplicated strided gather, no second dot).
    acc = jnp.dot(cols_ref[...], w_ref[...], preferred_element_type=jnp.float32)

    a1 = acc[:, :Cout]
    y1_ref[...] = a1.reshape(1, rows, Cout).astype(y1_ref.dtype)
    s1_ref[:, 0:1, :] = jnp.sum(a1, axis=0, keepdims=True).reshape(1, 1, Cout)
    s1_ref[:, 1:2, :] = jnp.sum(a1 * a1, axis=0, keepdims=True).reshape(1, 1, Cout)

    if has_proj:
        asc = acc[:, Cout:2 * Cout]
        ysc_ref[...] = asc.reshape(1, rows, Cout).astype(ysc_ref.dtype)
        ssc_ref[:, 0:1, :] = jnp.sum(asc, axis=0, keepdims=True).reshape(1, 1, Cout)
        ssc_ref[:, 1:2, :] = jnp.sum(asc * asc, axis=0, keepdims=True).reshape(1, 1, Cout)


# ---------------------------------------------------------------------------
# Phase B: BN1 (precomputed scale/shift) + ReLU + conv2 (3x3, stride 1, pad=1)
# + BN2 partial stats.  Grid: (N,).
# ---------------------------------------------------------------------------
def bn1_conv2_kernel(y1_ref, sc1_ref, sh1_ref, w2_ref, y2_ref, s2_ref,
                     hpad_ref, cols_ref, *, Ho, Wo, C):
    rows = Ho * Wo
    Hp2, Wp2 = Ho + 2, Wo + 2

    # BN1 + ReLU in f32 (scale/shift precomputed from global batch stats).
    h1 = jnp.maximum(
        y1_ref[...].astype(jnp.float32).reshape(rows, C) * sc1_ref[...]
        + sh1_ref[...], 0.0)

    # 1-pixel zero pad: zero only the halo ring; interior written exactly
    # once.  (Re-zeroed every image on purpose: with a "parallel" batch axis
    # each megacore TensorCore owns a private scratch and would never see a
    # program_id==0 init step, so a zero-once pl.when would be unsafe.)
    zrow = jnp.zeros((1, Wp2, C), jnp.float32)
    zcol = jnp.zeros((Ho, 1, C), jnp.float32)
    hpad_ref[0:1, :, :] = zrow
    hpad_ref[Hp2 - 1:Hp2, :, :] = zrow
    hpad_ref[1:Ho + 1, 0:1, :] = zcol
    hpad_ref[1:Ho + 1, Wp2 - 1:Wp2, :] = zcol
    hpad_ref[1:Ho + 1, 1:Wo + 1, :] = h1.reshape(Ho, Wo, C)

    # im2col taps read straight off the padded scratch ref (no full-buffer
    # materialization), cast to bf16 at write time into the slab.
    for dy in range(3):
        for dx in range(3):
            t = dy * 3 + dx
            cols_ref[:, t * C:(t + 1) * C] = (
                hpad_ref[dy:dy + Ho, dx:dx + Wo, :]
                .reshape(rows, C).astype(jnp.bfloat16))

    acc = jnp.dot(cols_ref[...], w2_ref[...], preferred_element_type=jnp.float32)
    y2_ref[...] = acc.reshape(1, rows, C).astype(y2_ref.dtype)
    s2_ref[:, 0:1, :] = jnp.sum(acc, axis=0, keepdims=True).reshape(1, 1, C)
    s2_ref[:, 1:2, :] = jnp.sum(acc * acc, axis=0, keepdims=True).reshape(1, 1, C)


# ---------------------------------------------------------------------------
# Phase C: BN2 + (projected/identity) shortcut + add + ReLU on a lane-dense
# 2D (N*Ho, Wo*C) view with big row tiles.  Final add kept in f32.
# ---------------------------------------------------------------------------
def bn2_add_relu_kernel(y2_ref, sc2_ref, sh2_ref, short_ref, *rest, has_proj):
    if has_proj:
        scs_ref, shs_ref, o_ref = rest
    else:
        (o_ref,) = rest
    h2 = y2_ref[...].astype(jnp.float32) * sc2_ref[...] + sh2_ref[...]
    s = short_ref[...].astype(jnp.float32)
    if has_proj:
        s = s * scs_ref[...] + shs_ref[...]
    o_ref[...] = jnp.maximum(h2 + s, 0.0)


# ---------------------------------------------------------------------------
# Wrapper
# ---------------------------------------------------------------------------
def _scale_shift(stats, gamma, beta, count):
    # stats: (N, 2, C) per-image [sum, sumsq]; training-mode BN (biased var).
    # TODO(synk): E[x^2]-(E[x])^2 can cancel for large means; fine at this tol.
    tot = jnp.sum(stats, axis=0)
    mean = tot[0] / count
    var = tot[1] / count - mean * mean
    scale = gamma * jax.lax.rsqrt(var + EPS)
    shift = beta - mean * scale
    return scale.reshape(1, -1), shift.reshape(1, -1)


def _vmem_limit_bytes():
    # Leave headroom below physical VMEM (v7x only has 64 MiB per TensorCore);
    # fall back to the compiler default if the query is unavailable.
    try:
        cap = pltpu.get_tpu_info().vmem_capacity_bytes
        return int(min(cap - cap // 4, 112 * 1024 * 1024))
    except Exception:
        return None


def resnet_block(x_nhwc, params, stride=1):
    N, H, W, Cin = x_nhwc.shape
    Cout = params["w1"].shape[-1]
    Ho = (H - 1) // stride + 1
    Wo = (W - 1) // stride + 1
    rows = Ho * Wo
    count = N * rows
    has_proj = (Cin != Cout) or (stride != 1)

    # bf16 padded input & bf16 inter-phase intermediates: halves HBM<->VMEM DMA
    # of the largest tensors.  Stats / accumulation / final add stay f32.
    x_pad = jnp.pad(x_nhwc, ((0, 0), (1, 1), (1, 1), (0, 0))).astype(jnp.bfloat16)
    Hp, Wp = H + 2, W + 2

    w1 = params["w1"].reshape(9 * Cin, Cout)
    if has_proj:
        # Embed the 1x1 projection at the center-tap rows of extra columns so
        # phase A runs a single matmul producing [y1 | ysc].
        ws_full = jnp.zeros((9 * Cin, Cout), w1.dtype)
        ws_full = ws_full.at[4 * Cin:5 * Cin, :].set(params["ws"].reshape(Cin, Cout))
        w_a = jnp.concatenate([w1, ws_full], axis=1).astype(jnp.bfloat16)
    else:
        w_a = w1.astype(jnp.bfloat16)
    w2 = params["w2"].reshape(9 * Cout, Cout).astype(jnp.bfloat16)

    vmem_limit = _vmem_limit_bytes()
    cp_kwargs = dict(dimension_semantics=("parallel",))
    if vmem_limit is not None:
        cp_kwargs["vmem_limit_bytes"] = vmem_limit
    cparams = pltpu.CompilerParams(**cp_kwargs)

    # NOTE on layout: intermediates stay (N, rows, Cout) out of the conv
    # kernels (already lane-dense at production Cout >= 128); the free
    # wrapper-side reshape below presents a lane-dense (N*Ho, Wo*Cout) view
    # to the elementwise phase C.
    img_spec = pl.BlockSpec((1, rows, Cout), lambda n: (n, 0, 0))
    stat_spec = pl.BlockSpec((1, 2, Cout), lambda n: (n, 0, 0))
    vec_spec = pl.BlockSpec((1, Cout), lambda n: (0, 0))

    # -------------------- phase A: conv1 (+ fused projection) ----------------
    a_out_shape = [jax.ShapeDtypeStruct((N, rows, Cout), jnp.bfloat16),
                   jax.ShapeDtypeStruct((N, 2, Cout), jnp.float32)]
    a_out_specs = [img_spec, stat_spec]
    if has_proj:
        a_out_shape += [jax.ShapeDtypeStruct((N, rows, Cout), jnp.bfloat16),
                        jax.ShapeDtypeStruct((N, 2, Cout), jnp.float32)]
        a_out_specs += [img_spec, stat_spec]

    a_out = pl.pallas_call(
        functools.partial(conv1_proj_kernel, stride=stride, has_proj=has_proj,
                          Ho=Ho, Wo=Wo, Cout=Cout),
        grid=(N,),
        in_specs=[pl.BlockSpec((1, Hp, Wp, Cin), lambda n: (n, 0, 0, 0)),
                  pl.BlockSpec(w_a.shape, lambda n: (0, 0))],
        out_specs=tuple(a_out_specs),
        out_shape=tuple(a_out_shape),
        scratch_shapes=[pltpu.VMEM((rows, 9 * Cin), jnp.bfloat16)],
        compiler_params=cparams,
    )(x_pad, w_a)
    if has_proj:
        y1, s1, ysc, ssc = a_out
    else:
        y1, s1 = a_out

    sc1, sh1 = _scale_shift(s1, params["g1"], params["b1"], count)

    # -------------------- phase B: BN1 + ReLU + conv2 -------------------------
    y2, s2 = pl.pallas_call(
        functools.partial(bn1_conv2_kernel, Ho=Ho, Wo=Wo, C=Cout),
        grid=(N,),
        in_specs=[img_spec, vec_spec, vec_spec,
                  pl.BlockSpec((9 * Cout, Cout), lambda n: (0, 0))],
        out_specs=(img_spec, stat_spec),
        out_shape=(jax.ShapeDtypeStruct((N, rows, Cout), jnp.bfloat16),
                   jax.ShapeDtypeStruct((N, 2, Cout), jnp.float32)),
        scratch_shapes=[pltpu.VMEM((Ho + 2, Wo + 2, Cout), jnp.float32),
                        pltpu.VMEM((rows, 9 * Cout), jnp.bfloat16)],
        compiler_params=cparams,
    )(y1, sc1, sh1, w2)

    sc2, sh2 = _scale_shift(s2, params["g2"], params["b2"], count)

    # -------------------- phase C: BN2 + shortcut + ReLU ----------------------
    # Elementwise & memory-bound: lane-dense (N*Ho, Wo*Cout) view, big row
    # tiles (up to 512 rows/step).  The (N, rows, C)->(N*Ho, Wo*C) reshapes in
    # the wrapper are free row-major reinterpretations.
    WC = Wo * Cout
    R = N * Ho
    TR = R if R <= 512 else 512
    row_spec = pl.BlockSpec((TR, WC), lambda i: (i, 0))
    wvec_spec = pl.BlockSpec((1, WC), lambda i: (0, 0))

    def widen(v):  # (1, C) -> (1, Wo*C), channel-fastest order
        return jnp.tile(v, (1, Wo))

    c_in_specs = [row_spec, wvec_spec, wvec_spec, row_spec]
    c_args = [y2.reshape(R, WC), widen(sc2), widen(sh2)]
    if has_proj:
        scs, shs = _scale_shift(ssc, params["gs"], params["bs"], count)
        c_args += [ysc.reshape(R, WC), widen(scs), widen(shs)]
        c_in_specs += [wvec_spec, wvec_spec]
    else:
        c_args += [x_nhwc.reshape(R, WC)]  # identity shortcut, kept in f32

    out = pl.pallas_call(
        functools.partial(bn2_add_relu_kernel, has_proj=has_proj),
        grid=(pl.cdiv(R, TR),),
        in_specs=c_in_specs,
        out_specs=row_spec,
        out_shape=jax.ShapeDtypeStruct((R, WC), jnp.float32),
        compiler_params=cparams,
    )(*c_args)
    return out.reshape(N, Ho, Wo, Cout)


# ---------------------------------------------------------------------------
# Pure-JAX reference (mirrors the PyTorch forward, NHWC)
# ---------------------------------------------------------------------------
def reference(x_nhwc, p, stride):
    def conv(x, w, s, pad):
        return jax.lax.conv_general_dilated(
            x, w, (s, s), pad, dimension_numbers=("NHWC", "HWIO", "NHWC"))

    def bn(x, g, b):
        mean = jnp.mean(x, axis=(0, 1, 2), keepdims=True)
        var = jnp.mean(jnp.square(x - mean), axis=(0, 1, 2), keepdims=True)
        return (x - mean) * jax.lax.rsqrt(var + EPS) * g + b

    h = jax.nn.relu(bn(conv(x_nhwc, p["w1"], stride, ((1, 1), (1, 1))), p["g1"], p["b1"]))
    h = bn(conv(h, p["w2"], 1, ((1, 1), (1, 1))), p["g2"], p["b2"])
    if "ws" in p:
        sc = bn(conv(x_nhwc, p["ws"], stride, ((0, 0), (0, 0))), p["gs"], p["bs"])
    else:
        sc = x_nhwc
    return jax.nn.relu(h + sc)


def _make_params(key, Cin, Cout, stride):
    k1, k2, k3, k4 = jax.random.split(key, 4)
    p = {
        "w1": jax.random.normal(k1, (3, 3, Cin, Cout), jnp.float32) * 0.2,
        "w2": jax.random.normal(k2, (3, 3, Cout, Cout), jnp.float32) * 0.2,
        "g1": 1.0 + 0.1 * jax.random.normal(k4, (Cout,), jnp.float32),
        "b1": jnp.full((Cout,), 0.05, jnp.float32),
        "g2": jnp.ones((Cout,), jnp.float32),
        "b2": jnp.zeros((Cout,), jnp.float32),
    }
    if Cin != Cout or stride != 1:
        p["ws"] = jax.random.normal(k3, (1, 1, Cin, Cout), jnp.float32) * 0.2
        p["gs"] = jnp.ones((Cout,), jnp.float32)
        p["bs"] = jnp.zeros((Cout,), jnp.float32)
    return p


if __name__ == "__main__":
    key = jax.random.PRNGKey(0)
    kx1, kp1, kx2, kp2 = jax.random.split(key, 4)

    # Config 1: projection shortcut (Cin != Cout), stride 1.
    N, Cin, Cout, H, W, stride = 2, 4, 8, 16, 16, 1
    x_nchw = jax.random.normal(kx1, (N, Cin, H, W), jnp.float32)  # PyTorch layout
    x_nhwc = jnp.transpose(x_nchw, (0, 2, 3, 1))
    params = _make_params(kp1, Cin, Cout, stride)
    out = jax.block_until_ready(resnet_block(x_nhwc, params, stride=stride))
    ref = reference(x_nhwc, params, stride)
    assert out.shape == ref.shape
    # bf16 MXU operands + bf16 inter-phase intermediates (f32 accumulation,
    # f32 residual add) -> consciously widened bf16-level tolerance.
    assert jnp.allclose(out, ref, atol=3e-2, rtol=3e-2), \
        float(jnp.max(jnp.abs(out - ref)))

    # Config 2: identity shortcut (Cin == Cout, stride 1).
    N, Cin, Cout, H, W, stride = 2, 8, 8, 16, 16, 1
    x_nhwc = jnp.transpose(
        jax.random.normal(kx2, (N, Cin, H, W), jnp.float32), (0, 2, 3, 1))
    params = _make_params(kp2, Cin, Cout, stride)
    out = jax.block_until_ready(resnet_block(x_nhwc, params, stride=stride))
    ref = reference(x_nhwc, params, stride)
    assert jnp.allclose(out, ref, atol=3e-2, rtol=3e-2), \
        float(jnp.max(jnp.abs(out - ref)))

    print("KERNEL_OK")
</pallas_src>

<mosaic_0001>
module attributes {stable_mosaic.version = 11 : i64} {
  func.func @conv1_proj_kernel(%arg0: i32, %arg1: memref<1x18x18x4xbf16, #tpu.memory_space<vmem>>, %arg2: memref<36x16xbf16, #tpu.memory_space<vmem>>, %arg3: memref<1x256x8xbf16, #tpu.memory_space<vmem>>, %arg4: memref<1x2x8xf32, #tpu.memory_space<vmem>>, %arg5: memref<1x256x8xbf16, #tpu.memory_space<vmem>>, %arg6: memref<1x2x8xf32, #tpu.memory_space<vmem>>, %arg7: memref<256x36xbf16, #tpu.memory_space<vmem>>) attributes {dimension_semantics = [#tpu.dimension_semantics<parallel>], iteration_bounds = array<i64: 2>, scalar_prefetch = 0 : i64, scratch_operands = 1 : i64, tpu.core_type = #tpu.core_type<tc>, window_params = [{transform_indices = @transform_0, window_bounds = array<i64: 1, 18, 18, 4>}, {pipeline_mode = #tpu.pipeline_mode<synchronous>, transform_indices = @transform_1, window_bounds = array<i64: 36, 16>}, {transform_indices = @transform_2, window_bounds = array<i64: 1, 256, 8>}, {transform_indices = @transform_3, window_bounds = array<i64: 1, 2, 8>}, {transform_indices = @transform_4, window_bounds = array<i64: 1, 256, 8>}, {transform_indices = @transform_5, window_bounds = array<i64: 1, 2, 8>}]} {
    %c0 = arith.constant 0 : index
    %c0_0 = arith.constant 0 : index
    %c0_1 = arith.constant 0 : index
    %c0_2 = arith.constant 0 : index
    %0 = vector.load %arg1[%c0, %c0_0, %c0_1, %c0_2] : memref<1x18x18x4xbf16, #tpu.memory_space<vmem>>, vector<1x16x18x4xbf16>
    %1 = arith.extf %0 : vector<1x16x18x4xbf16> to vector<1x16x18x4xf32>
    %2 = vector.extract_strided_slice %1 {offsets = [0, 0, 0, 0], sizes = [1, 16, 16, 4], strides = [1, 1, 1, 1]} : vector<1x16x18x4xf32> to vector<1x16x16x4xf32>
    %3 = vector.shape_cast %2 : vector<1x16x16x4xf32> to vector<256x4xf32>
    %4 = arith.truncf %3 : vector<256x4xf32> to vector<256x4xbf16>
    %c0_3 = arith.constant 0 : index
    %c0_4 = arith.constant 0 : index
    %5 = vector.load %arg7[%c0_3, %c0_4] : memref<256x36xbf16, #tpu.memory_space<vmem>>, vector<256x4xbf16>
    tpu.vector_store %arg7[%c0_3, %c0_4], %4 {strides = array<i32>} : memref<256x36xbf16, #tpu.memory_space<vmem>>, vector<256x4xbf16>,
    %6 = vector.extract_strided_slice %1 {offsets = [0, 0, 1, 0], sizes = [1, 16, 16, 4], strides = [1, 1, 1, 1]} : vector<1x16x18x4xf32> to vector<1x16x16x4xf32>
    %7 = vector.shape_cast %6 : vector<1x16x16x4xf32> to vector<256x4xf32>
    %8 = arith.truncf %7 : vector<256x4xf32> to vector<256x4xbf16>
    %c0_5 = arith.constant 0 : index
    %c4 = arith.constant 4 : index
    %9 = vector.load %arg7[%c0_5, %c4] : memref<256x36xbf16, #tpu.memory_space<vmem>>, vector<256x4xbf16>
    tpu.vector_store %arg7[%c0_5, %c4], %8 {strides = array<i32>} : memref<256x36xbf16, #tpu.memory_space<vmem>>, vector<256x4xbf16>,
    %10 = vector.extract_strided_slice %1 {offsets = [0, 0, 2, 0], sizes = [1, 16, 16, 4], strides = [1, 1, 1, 1]} : vector<1x16x18x4xf32> to vector<1x16x16x4xf32>
    %11 = vector.shape_cast %10 : vector<1x16x16x4xf32> to vector<256x4xf32>
    %12 = arith.truncf %11 : vector<256x4xf32> to vector<256x4xbf16>
    %c0_6 = arith.constant 0 : index
    %c8 = arith.constant 8 : index
    %13 = vector.load %arg7[%c0_6, %c8] : memref<256x36xbf16, #tpu.memory_space<vmem>>, vector<256x4xbf16>
    tpu.vector_store %arg7[%c0_6, %c8], %12 {strides = array<i32>} : memref<256x36xbf16, #tpu.memory_space<vmem>>, vector<256x4xbf16>,
    %c0_7 = arith.constant 0 : index
    %c1 = arith.constant 1 : index
    %c0_8 = arith.constant 0 : index
    %c0_9 = arith.constant 0 : index
    %14 = vector.load %arg1[%c0_7, %c1, %c0_8, %c0_9] : memref<1x18x18x4xbf16, #tpu.memory_space<vmem>>, vector<1x16x18x4xbf16>
    %15 = arith.extf %14 : vector<1x16x18x4xbf16> to vector<1x16x18x4xf32>
    %16 = vector.extract_strided_slice %15 {offsets = [0, 0, 0, 0], sizes = [1, 16, 16, 4], strides = [1, 1, 1, 1]} : vector<1x16x18x4xf32> to vector<1x16x16x4xf32>
    %17 = vector.shape_cast %16 : vector<1x16x16x4xf32> to vector<256x4xf32>
    %18 = arith.truncf %17 : vector<256x4xf32> to vector<256x4xbf16>
    %c0_10 = arith.constant 0 : index
    %c12 = arith.constant 12 : index
    %19 = vector.load %arg7[%c0_10, %c12] : memref<256x36xbf16, #tpu.memory_space<vmem>>, vector<256x4xbf16>
    tpu.vector_store %arg7[%c0_10, %c12], %18 {strides = array<i32>} : memref<256x36xbf16, #tpu.memory_space<vmem>>, vector<256x4xbf16>,
    %20 = vector.extract_strided_slice %15 {offsets = [0, 0, 1, 0], sizes = [1, 16, 16, 4], strides = [1, 1, 1, 1]} : vector<1x16x18x4xf32> to vector<1x16x16x4xf32>
    %21 = vector.shape_cast %20 : vector<1x16x16x4xf32> to vector<256x4xf32>
    %22 = arith.truncf %21 : vector<256x4xf32> to vector<256x4xbf16>
    %c0_11 = arith.constant 0 : index
    %c16 = arith.constant 16 : index
    %23 = vector.load %arg7[%c0_11, %c16] : memref<256x36xbf16, #tpu.memory_space<vmem>>, vector<256x4xbf16>
    tpu.vector_store %arg7[%c0_11, %c16], %22 {strides = array<i32>} : memref<256x36xbf16, #tpu.memory_space<vmem>>, vector<256x4xbf16>,
    %24 = vector.extract_strided_slice %15 {offsets = [0, 0, 2, 0], sizes = [1, 16, 16, 4], strides = [1, 1, 1, 1]} : vector<1x16x18x4xf32> to vector<1x16x16x4xf32>
    %25 = vector.shape_cast %24 : vector<1x16x16x4xf32> to vector<256x4xf32>
    %26 = arith.truncf %25 : vector<256x4xf32> to vector<256x4xbf16>
    %c0_12 = arith.constant 0 : index
    %c20 = arith.constant 20 : index
    %27 = vector.load %arg7[%c0_12, %c20] : memref<256x36xbf16, #tpu.memory_space<vmem>>, vector<256x4xbf16>
    tpu.vector_store %arg7[%c0_12, %c20], %26 {strides = array<i32>} : memref<256x36xbf16, #tpu.memory_space<vmem>>, vector<256x4xbf16>,
    %c0_13 = arith.constant 0 : index
    %c2 = arith.constant 2 : index
    %c0_14 = arith.constant 0 : index
    %c0_15 = arith.constant 0 : index
    %28 = vector.load %arg1[%c0_13, %c2, %c0_14, %c0_15] : memref<1x18x18x4xbf16, #tpu.memory_space<vmem>>, vector<1x16x18x4xbf16>
    %29 = arith.extf %28 : vector<1x16x18x4xbf16> to vector<1x16x18x4xf32>
    %30 = vector.extract_strided_slice %29 {offsets = [0, 0, 0, 0], sizes = [1, 16, 16, 4], strides = [1, 1, 1, 1]} : vector<1x16x18x4xf32> to vector<1x16x16x4xf32>
    %31 = vector.shape_cast %30 : vector<1x16x16x4xf32> to vector<256x4xf32>
    %32 = arith.truncf %31 : vector<256x4xf32> to vector<256x4xbf16>
    %c0_16 = arith.constant 0 : index
    %c24 = arith.constant 24 : index
    %33 = vector.load %arg7[%c0_16, %c24] : memref<256x36xbf16, #tpu.memory_space<vmem>>, vector<256x4xbf16>
    tpu.vector_store %arg7[%c0_16, %c24], %32 {strides = array<i32>} : memref<256x36xbf16, #tpu.memory_space<vmem>>, vector<256x4xbf16>,
    %34 = vector.extract_strided_slice %29 {offsets = [0, 0, 1, 0], sizes = [1, 16, 16, 4], strides = [1, 1, 1, 1]} : vector<1x16x18x4xf32> to vector<1x16x16x4xf32>
    %35 = vector.shape_cast %34 : vector<1x16x16x4xf32> to vector<256x4xf32>
    %36 = arith.truncf %35 : vector<256x4xf32> to vector<256x4xbf16>
    %c0_17 = arith.constant 0 : index
    %c28 = arith.constant 28 : index
    %37 = vector.load %arg7[%c0_17, %c28] : memref<256x36xbf16, #tpu.memory_space<vmem>>, vector<256x4xbf16>
    tpu.vector_store %arg7[%c0_17, %c28], %36 {strides = array<i32>} : memref<256x36xbf16, #tpu.memory_space<vmem>>, vector<256x4xbf16>,
    %38 = vector.extract_strided_slice %29 {offsets = [0, 0, 2, 0], sizes = [1, 16, 16, 4], strides = [1, 1, 1, 1]} : vector<1x16x18x4xf32> to vector<1x16x16x4xf32>
    %39 = vector.shape_cast %38 : vector<1x16x16x4xf32> to vector<256x4xf32>
    %40 = arith.truncf %39 : vector<256x4xf32> to vector<256x4xbf16>
    %c0_18 = arith.constant 0 : index
    %c32 = arith.constant 32 : index
    %41 = vector.load %arg7[%c0_18, %c32] : memref<256x36xbf16, #tpu.memory_space<vmem>>, vector<256x4xbf16>
    tpu.vector_store %arg7[%c0_18, %c32], %40 {strides = array<i32>} : memref<256x36xbf16, #tpu.memory_space<vmem>>, vector<256x4xbf16>,
    %c0_19 = arith.constant 0 : index
    %c0_20 = arith.constant 0 : index
    %42 = vector.load %arg7[%c0_19, %c0_20] : memref<256x36xbf16, #tpu.memory_space<vmem>>, vector<256x36xbf16>
    %c0_21 = arith.constant 0 : index
    %c0_22 = arith.constant 0 : index
    %43 = vector.load %arg2[%c0_21, %c0_22] : memref<36x16xbf16, #tpu.memory_space<vmem>>, vector<36x16xbf16>
    %cst = arith.constant dense<0.000000e+00> : vector<256x16xf32>
    %44 = tpu.matmul %42, %43, %cst {dimension_numbers = #tpu.dot_dimension_numbers<[1], [0], [0], [1], [0, 0, 1, 1], [], []>} : vector<256x36xbf16>, vector<36x16xbf16>, vector<256x16xf32> -> vector<256x16xf32>
    %45 = vector.extract_strided_slice %44 {offsets = [0, 0], sizes = [256, 8], strides = [1, 1]} : vector<256x16xf32> to vector<256x8xf32>
    %46 = vector.shape_cast %45 : vector<256x8xf32> to vector<1x256x8xf32>
    %47 = arith.truncf %46 : vector<1x256x8xf32> to vector<1x256x8xbf16>
    %c0_23 = arith.constant 0 : index
    %c0_24 = arith.constant 0 : index
    %c0_25 = arith.constant 0 : index
    %48 = vector.load %arg3[%c0_23, %c0_24, %c0_25] : memref<1x256x8xbf16, #tpu.memory_space<vmem>>, vector<1x256x8xbf16>
    tpu.vector_store %arg3[%c0_23, %c0_24, %c0_25], %47 {strides = array<i32>} : memref<1x256x8xbf16, #tpu.memory_space<vmem>>, vector<1x256x8xbf16>,
    %cst_26 = arith.constant dense<0.000000e+00> : vector<8xf32>
    %49 = vector.multi_reduction <add>, %45, %cst_26 [0] : vector<256x8xf32> to vector<8xf32>
    %50 = vector.shape_cast %49 : vector<8xf32> to vector<1x8xf32>
    %51 = vector.shape_cast %50 : vector<1x8xf32> to vector<1x1x8xf32>
    %c0_27 = arith.constant 0 : index
    %c0_28 = arith.constant 0 : index
    %c0_29 = arith.constant 0 : index
    %52 = vector.load %arg4[%c0_27, %c0_28, %c0_29] : memref<1x2x8xf32, #tpu.memory_space<vmem>>, vector<1x1x8xf32>
    tpu.vector_store %arg4[%c0_27, %c0_28, %c0_29], %51 {strides = array<i32>} : memref<1x2x8xf32, #tpu.memory_space<vmem>>, vector<1x1x8xf32>,
    %53 = arith.mulf %45, %45 : vector<256x8xf32>
    %cst_30 = arith.constant dense<0.000000e+00> : vector<8xf32>
    %54 = vector.multi_reduction <add>, %53, %cst_30 [0] : vector<256x8xf32> to vector<8xf32>
    %55 = vector.shape_cast %54 : vector<8xf32> to vector<1x8xf32>
    %56 = vector.shape_cast %55 : vector<1x8xf32> to vector<1x1x8xf32>
    %c0_31 = arith.constant 0 : index
    %c1_32 = arith.constant 1 : index
    %c0_33 = arith.constant 0 : index
    %57 = vector.load %arg4[%c0_31, %c1_32, %c0_33] : memref<1x2x8xf32, #tpu.memory_space<vmem>>, vector<1x1x8xf32>
    tpu.vector_store %arg4[%c0_31, %c1_32, %c0_33], %56 {strides = array<i32>} : memref<1x2x8xf32, #tpu.memory_space<vmem>>, vector<1x1x8xf32>,
    %58 = vector.extract_strided_slice %44 {offsets = [0, 8], sizes = [256, 8], strides = [1, 1]} : vector<256x16xf32> to vector<256x8xf32>
    %59 = vector.shape_cast %58 : vector<256x8xf32> to vector<1x256x8xf32>
    %60 = arith.truncf %59 : vector<1x256x8xf32> to vector<1x256x8xbf16>
    %c0_34 = arith.constant 0 : index
    %c0_35 = arith.constant 0 : index
    %c0_36 = arith.constant 0 : index
    %61 = vector.load %arg5[%c0_34, %c0_35, %c0_36] : memref<1x256x8xbf16, #tpu.memory_space<vmem>>, vector<1x256x8xbf16>
    tpu.vector_store %arg5[%c0_34, %c0_35, %c0_36], %60 {strides = array<i32>} : memref<1x256x8xbf16, #tpu.memory_space<vmem>>, vector<1x256x8xbf16>,
    %cst_37 = arith.constant dense<0.000000e+00> : vector<8xf32>
    %62 = vector.multi_reduction <add>, %58, %cst_37 [0] : vector<256x8xf32> to vector<8xf32>
    %63 = vector.shape_cast %62 : vector<8xf32> to vector<1x8xf32>
    %64 = vector.shape_cast %63 : vector<1x8xf32> to vector<1x1x8xf32>
    %c0_38 = arith.constant 0 : index
    %c0_39 = arith.constant 0 : index
    %c0_40 = arith.constant 0 : index
    %65 = vector.load %arg6[%c0_38, %c0_39, %c0_40] : memref<1x2x8xf32, #tpu.memory_space<vmem>>, vector<1x1x8xf32>
    tpu.vector_store %arg6[%c0_38, %c0_39, %c0_40], %64 {strides = array<i32>} : memref<1x2x8xf32, #tpu.memory_space<vmem>>, vector<1x1x8xf32>,
    %66 = arith.mulf %58, %58 : vector<256x8xf32>
    %cst_41 = arith.constant dense<0.000000e+00> : vector<8xf32>
    %67 = vector.multi_reduction <add>, %66, %cst_41 [0] : vector<256x8xf32> to vector<8xf32>
    %68 = vector.shape_cast %67 : vector<8xf32> to vector<1x8xf32>
    %69 = vector.shape_cast %68 : vector<1x8xf32> to vector<1x1x8xf32>
    %c0_42 = arith.constant 0 : index
    %c1_43 = arith.constant 1 : index
    %c0_44 = arith.constant 0 : index
    %70 = vector.load %arg6[%c0_42, %c1_43, %c0_44] : memref<1x2x8xf32, #tpu.memory_space<vmem>>, vector<1x1x8xf32>
    tpu.vector_store %arg6[%c0_42, %c1_43, %c0_44], %69 {strides = array<i32>} : memref<1x2x8xf32, #tpu.memory_space<vmem>>, vector<1x1x8xf32>,
    return
  }
  func.func @transform_0(%arg0: i32) -> (i32, i32, i32, i32) {
    %c0_i32 = arith.constant 0 : i32
    %c0_i32_0 = arith.constant 0 : i32
    %c0_i32_1 = arith.constant 0 : i32
    %c0_i32_2 = arith.constant 0 : i32
    return %arg0, %c0_i32, %c0_i32_0, %c0_i32_1 : i32, i32, i32, i32
  }
  func.func @transform_1(%arg0: i32) -> (i32, i32) {
    %c0_i32 = arith.constant 0 : i32
    %c0_i32_0 = arith.constant 0 : i32
    %c0_i32_1 = arith.constant 0 : i32
    return %c0_i32, %c0_i32_0 : i32, i32
  }
  func.func @transform_2(%arg0: i32) -> (i32, i32, i32) {
    %c0_i32 = arith.constant 0 : i32
    %c0_i32_0 = arith.constant 0 : i32
    %c0_i32_1 = arith.constant 0 : i32
    return %arg0, %c0_i32, %c0_i32_0 : i32, i32, i32
  }
  func.func @transform_3(%arg0: i32) -> (i32, i32, i32) {
    %c0_i32 = arith.constant 0 : i32
    %c0_i32_0 = arith.constant 0 : i32
    %c0_i32_1 = arith.constant 0 : i32
    return %arg0, %c0_i32, %c0_i32_0 : i32, i32, i32
  }
  func.func @transform_4(%arg0: i32) -> (i32, i32, i32) {
    %c0_i32 = arith.constant 0 : i32
    %c0_i32_0 = arith.constant 0 : i32
    %c0_i32_1 = arith.constant 0 : i32
    return %arg0, %c0_i32, %c0_i32_0 : i32, i32, i32
  }
  func.func @transform_5(%arg0: i32) -> (i32, i32, i32) {
    %c0_i32 = arith.constant 0 : i32
    %c0_i32_0 = arith.constant 0 : i32
    %c0_i32_1 = arith.constant 0 : i32
    return %arg0, %c0_i32, %c0_i32_0 : i32, i32, i32
  }
}

</mosaic_0001>

<llo_original>
// kernel: tpu_custom_call.1
$region0: #{tpu_custom_call.1}
  #allocation0 [shape = 'u32[]', space=smem, size = 0x4, offset = 0x4, fixed_abs, tag = 'smem constant byte address 0x4 - core index']
  #allocation1 [shape = 'u32[144,128]{1,0:T(1,128)}', space=vmem, size = 0x12000, scoped, tag = 'internal scratch']
  #allocation2 [shape = 'bf16[256,36]{1,0:T(8,128)(2,1)}', space=vmem, size = 0x10000, scoped, tag = 'scratch operand']
  %s0 = inlined_call_operand.vmem [shape: bf16[2,18,18,4], index: 0, kind: input, shape index: {}]
  %s1 = inlined_call_operand.vmem [shape: bf16[36,16], index: 1, kind: input, shape index: {}]
  %s2 = inlined_call_operand.vmem [shape: bf16[2,256,8], index: 2, kind: output, shape index: {0}]
  %s3 = inlined_call_operand.hbm [shape: f32[2,2,8], index: 3, kind: output, shape index: {1}]
  %s4 = inlined_call_operand.vmem [shape: bf16[2,256,8], index: 4, kind: output, shape index: {2}]
  %s5 = inlined_call_operand.hbm [shape: f32[2,2,8], index: 5, kind: output, shape index: {3}]
  %6 = xla_tuple %s2, %s3, %s4, %s5
  %s7 = sld [smem:[#allocation0]]
  $region65: #{tpu_custom_call.1} parent=0
    _
  %s9 = ssub.s32 1, %s7
  %s10 = scalar_select 0, %s9, %s7
  $region1: #{tpu_custom_call.1} parent=0
    #allocation3 [shape = 'u8[2048]{0}', space=vmem, size = 0x800, scoped, tag = 'output window, operand 1']
    #allocation4 [shape = 's32[2]{0}', space=sflag, size = 0x8, scoped, tag = 'scoped memory for tpu_custom_call.1']
    #allocation5 [shape = 'u8[2048]{0}', space=vmem, size = 0x800, scoped, tag = 'output window, operand 3']
    #allocation6 [shape = 's32[2]{0}', space=sflag, size = 0x8, scoped, tag = 'scoped memory for tpu_custom_call.1']
    %11 = vsyncpa [#allocation4], 0
    %s12 = scalar_lea.sflag [#allocation4], 1
    %13 = vsyncpa %s12, 0
    %14 = vsyncpa [#allocation6], 0
    %s15 = scalar_lea.sflag [#allocation6], 1
    %16 = vsyncpa %s15, 0
    loop: start=0, step=1, limit=4
    $region2: #{tpu_custom_call.1} parent=1 // loop_pre_header
      _
    $region3: #{tpu_custom_call.1} parent=1 // loop_header
      %s18 = sphi 0, %s22
      %p19 = scmp.ge.s32.totalorder %s18, 4
      %s28 = sphi 0, %s30
      %s31 = sphi 0, %s28
      %s32 = sphi 0, %s31
      %s48 = sphi 0, %s32
      %s52 = sphi 0, %s52
      %s54 = sphi 0, %s52
      %s55 = sphi 0, %s54
      %s69 = sphi 0, %s55
      %s75 = sphi 0, %s77
      %s78 = sphi 0, %s75
      %s79 = sphi 0, %s78
      %s95 = sphi 0, %s79
      %s101 = sphi 0, %s103
      %s104 = sphi 0, %s101
      %s105 = sphi 0, %s104
      %s121 = sphi 0, %s105
      %s127 = sphi 0, %s129
      %s130 = sphi 0, %s127
      %s131 = sphi 0, %s130
      %s147 = sphi 0, %s131
      %s153 = sphi 0, %s155
      %s156 = sphi 0, %s153
      %s157 = sphi 0, %s156
      %s173 = sphi 0, %s157
    $region4: #{tpu_custom_call.1} parent=1 // loop_header_branch
      %21 = sbr.rel (%p19) target = $region8
    $region5: #{tpu_custom_call.1} parent=1 // loop_body
      %s23 = ssub.s32 %s18, 1
      %s24 = ssub.s32 %s18, 2
      %s25 = sadd.s32 %s18, 1
      %s26 = ssub.s32 %s18, %s25
      %p27 = scmp.eq.s32.totalorder %s26, 0
      %s29 = sadd.s32 %s28, 1
      %s30 = scalar_select %p27, %s28, %s29
      %p33 = pneg %p27
      %p34 = scmp.eq.s32.totalorder %s18, 1
      %p35 = por %p33, %p34
      %p36 = scmp.ne.s32.totalorder %s28, %s31
      %p37 = scmp.eq.s32.totalorder %s18, 0
      %p38 = por %p36, %p37
      %p39 = scmp.ne.s32.totalorder %s28, %s31
      %p40 = scmp.eq.s32.totalorder %s23, 1
      %p41 = por %p39, %p40
      %p42 = scmp.ne.s32.totalorder %s31, %s32
      %p43 = scmp.eq.s32.totalorder %s23, 0
      %p44 = por %p42, %p43
      %p45 = scmp.ne.s32.totalorder %s31, %s32
      %p46 = scmp.eq.s32.totalorder %s24, 1
      %p47 = por %p45, %p46
      %p49 = scmp.ne.s32.totalorder %s32, %s48
      %p50 = scmp.eq.s32.totalorder %s24, 0
      %p51 = por %p49, %p50
      %s53 = sadd.s32 %s52, 1
      %p56 = scmp.eq.s32.totalorder %s18, 1
      %p57 = scmp.ne.s32.totalorder %s52, %s54
      %p58 = scmp.eq.s32.totalorder %s18, 0
      %p59 = por %p57, %p58
      %p60 = scmp.ne.s32.totalorder %s52, %s54
      %p61 = scmp.eq.s32.totalorder %s23, 1
      %p62 = por %p60, %p61
      %p63 = scmp.ne.s32.totalorder %s54, %s55
      %p64 = scmp.eq.s32.totalorder %s23, 0
      %p65 = por %p63, %p64
      %p66 = scmp.ne.s32.totalorder %s54, %s55
      %p67 = scmp.eq.s32.totalorder %s24, 1
      %p68 = por %p66, %p67
      %p70 = scmp.ne.s32.totalorder %s55, %s69
      %p71 = scmp.eq.s32.totalorder %s24, 0
      %p72 = por %p70, %p71
      %s73 = ssub.s32 %s18, %s25
      %p74 = scmp.eq.s32.totalorder %s73, 0
      %s76 = sadd.s32 %s75, 1
      %s77 = scalar_select %p74, %s75, %s76
      %p80 = pneg %p74
      %p81 = scmp.eq.s32.totalorder %s18, 1
      %p82 = por %p80, %p81
      %p83 = scmp.ne.s32.totalorder %s75, %s78
      %p84 = scmp.eq.s32.totalorder %s18, 0
      %p85 = por %p83, %p84
      %p86 = scmp.ne.s32.totalorder %s75, %s78
      %p87 = scmp.eq.s32.totalorder %s23, 1
      %p88 = por %p86, %p87
      %p89 = scmp.ne.s32.totalorder %s78, %s79
      %p90 = scmp.eq.s32.totalorder %s23, 0
      %p91 = por %p89, %p90
      %p92 = scmp.ne.s32.totalorder %s78, %s79
      %p93 = scmp.eq.s32.totalorder %s24, 1
      %p94 = por %p92, %p93
      %p96 = scmp.ne.s32.totalorder %s79, %s95
      %p97 = scmp.eq.s32.totalorder %s24, 0
      %p98 = por %p96, %p97
      %s99 = ssub.s32 %s18, %s25
      %p100 = scmp.eq.s32.totalorder %s99, 0
      %s102 = sadd.s32 %s101, 1
      %s103 = scalar_select %p100, %s101, %s102
      %p106 = pneg %p100
      %p107 = scmp.eq.s32.totalorder %s18, 1
      %p108 = por %p106, %p107
      %p109 = scmp.ne.s32.totalorder %s101, %s104
      %p110 = scmp.eq.s32.totalorder %s18, 0
      %p111 = por %p109, %p110
      %p112 = scmp.ne.s32.totalorder %s101, %s104
      %p113 = scmp.eq.s32.totalorder %s23, 1
      %p114 = por %p112, %p113
      %p115 = scmp.ne.s32.totalorder %s104, %s105
      %p116 = scmp.eq.s32.totalorder %s23, 0
      %p117 = por %p115, %p116
      %p118 = scmp.ne.s32.totalorder %s104, %s105
      %p119 = scmp.eq.s32.totalorder %s24, 1
      %p120 = por %p118, %p119
      %p122 = scmp.ne.s32.totalorder %s105, %s121
      %p123 = scmp.eq.s32.totalorder %s24, 0
      %p124 = por %p122, %p123
      %s125 = ssub.s32 %s18, %s25
      %p126 = scmp.eq.s32.totalorder %s125, 0
      %s128 = sadd.s32 %s127, 1
      %s129 = scalar_select %p126, %s127, %s128
      %p132 = pneg %p126
      %p133 = scmp.eq.s32.totalorder %s18, 1
      %p134 = por %p132, %p133
      %p135 = scmp.ne.s32.totalorder %s127, %s130
      %p136 = scmp.eq.s32.totalorder %s18, 0
      %p137 = por %p135, %p136
      %p138 = scmp.ne.s32.totalorder %s127, %s130
      %p139 = scmp.eq.s32.totalorder %s23, 1
      %p140 = por %p138, %p139
      %p141 = scmp.ne.s32.totalorder %s130, %s131
      %p142 = scmp.eq.s32.totalorder %s23, 0
      %p143 = por %p141, %p142
      %p144 = scmp.ne.s32.totalorder %s130, %s131
      %p145 = scmp.eq.s32.totalorder %s24, 1
      %p146 = por %p144, %p145
      %p148 = scmp.ne.s32.totalorder %s131, %s147
      %p149 = scmp.eq.s32.totalorder %s24, 0
      %p150 = por %p148, %p149
      %s151 = ssub.s32 %s18, %s25
      %p152 = scmp.eq.s32.totalorder %s151, 0
      %s154 = sadd.s32 %s153, 1
      %s155 = scalar_select %p152, %s153, %s154
      %p158 = pneg %p152
      %p159 = scmp.eq.s32.totalorder %s18, 1
      %p160 = por %p158, %p159
      %p161 = scmp.ne.s32.totalorder %s153, %s156
      %p162 = scmp.eq.s32.totalorder %s18, 0
      %p163 = por %p161, %p162
      %p164 = scmp.ne.s32.totalorder %s153, %s156
      %p165 = scmp.eq.s32.totalorder %s23, 1
      %p166 = por %p164, %p165
      %p167 = scmp.ne.s32.totalorder %s156, %s157
      %p168 = scmp.eq.s32.totalorder %s23, 0
      %p169 = por %p167, %p168
      %p170 = scmp.ne.s32.totalorder %s156, %s157
      %p171 = scmp.eq.s32.totalorder %s24, 1
      %p172 = por %p170, %p171
      %p174 = scmp.ne.s32.totalorder %s157, %s173
      %p175 = scmp.eq.s32.totalorder %s24, 0
      %p176 = por %p174, %p175
      %p177 = scmp.le.s32.totalorder 1, %s18
      %p178 = scmp.lt.s32.totalorder %s18, 3
      %p179 = pnand %p177, %p178
      %p180 = pneg %p179
      // Predicated region
      $region9: #{tpu_custom_call.1} parent=5 // pred_check
        _
      $region10: #{tpu_custom_call.1} parent=5 // pred_check_branch
        %182 = sbr.rel (%p179) target = $region12
      $region11: #{tpu_custom_call.1} parent=5 // pred_region
        %s183 = ssub.s32 %s18, 1
        // Predicated region
        $region13: #{tpu_custom_call.1} parent=11 // pred_check
          %p184 = pneg %p65
        $region14: #{tpu_custom_call.1} parent=11 // pred_check_branch
          %186 = sbr.rel (%p184) target = $region16
        $region15: #{tpu_custom_call.1} parent=11 // pred_region
          _
        $region16: #{tpu_custom_call.1} parent=11 // pred_fallthru
          _
      $region12: #{tpu_custom_call.1} parent=5 // pred_fallthru
        _
      %p187 = scmp.lt.s32.totalorder %s18, 2
      // Predicated region
      $region17: #{tpu_custom_call.1} parent=5 // pred_check
        %p188 = pneg %p187
      $region18: #{tpu_custom_call.1} parent=5 // pred_check_branch
        %190 = sbr.rel (%p188) target = $region20
      $region19: #{tpu_custom_call.1} parent=5 // pred_region
        // Predicated region
        $region21: #{tpu_custom_call.1} parent=19 // pred_check
          %p191 = pneg %p38
        $region22: #{tpu_custom_call.1} parent=19 // pred_check_branch
          %193 = sbr.rel (%p191) target = $region24
        $region23: #{tpu_custom_call.1} parent=19 // pred_region
          %p194 = scmp.lt.s32.totalorder %s18, 1
          %s195 = scalar_select %p194, %s18, 1
          %s196 = smul.addr %s195, 54
          %s197 = smul.addr %s196, 4
          %s198 = scalar_lea.vmem %s0, %s197
        $region24: #{tpu_custom_call.1} parent=19 // pred_fallthru
          _
      $region20: #{tpu_custom_call.1} parent=5 // pred_fallthru
        _
      %p199 = scmp.le.s32.totalorder 1, %s18
      %p200 = scmp.lt.s32.totalorder %s18, 3
      %p201 = pnand %p199, %p200
      %p202 = pneg %p201
      // Predicated region
      $region25: #{tpu_custom_call.1} parent=5 // pred_check
        _
      $region26: #{tpu_custom_call.1} parent=5 // pred_check_branch
        %204 = sbr.rel (%p201) target = $region28
      $region27: #{tpu_custom_call.1} parent=5 // pred_region
        %s205 = ssub.s32 %s18, 1
        %p206 = scmp.lt.s32.totalorder %s23, 1
        %s207 = scalar_select %p206, %s23, 1
        %s208 = smul.addr %s207, 54
        %s209 = smul.addr %s208, 4
        %s210 = scalar_lea.vmem %s0, %s209
        %p211 = pneg %p44
        %p212 = pneg %p41
        %p213 = pneg %p65
        %p214 = pneg %p62
        %p215 = pneg %p91
        %p216 = pneg %p88
        %p217 = scmp.lt.s32.totalorder %s23, 1
        %s218 = scalar_select %p217, %s23, 1
        %s219 = smul.addr %s218, 32
        %s220 = smul.addr %s219, 4
        %s221 = scalar_lea.vmem %s2, %s220
        %p222 = pneg %p117
        %p223 = pneg %p114
        %s224 = sand.u32 %s104, 1
        %s225 = scalar_lea.sflag [#allocation4], %s224
        %s226 = sand.u32 %s104, 1
        %s227 = smul.addr %s226, 2
        %s228 = scalar_lea.vmem [#allocation3], %s227
        %p229 = pneg %p143
        %p230 = pneg %p140
        %p231 = scmp.lt.s32.totalorder %s23, 1
        %s232 = scalar_select %p231, %s23, 1
        %s233 = smul.addr %s232, 32
        %s234 = smul.addr %s233, 4
        %s235 = scalar_lea.vmem %s4, %s234
        %p236 = pneg %p169
        %p237 = pneg %p166
        %s238 = sand.u32 %s156, 1
        %s239 = scalar_lea.sflag [#allocation6], %s238
        %s240 = sand.u32 %s156, 1
        %s241 = smul.addr %s240, 2
        %s242 = scalar_lea.vmem [#allocation5], %s241
        %p243 = scmp.lt.s32.totalorder %s23, 1
        %s244 = scalar_select %p243, %s23, 1
        %s245 = smul.addr %s244, 54
        %s246 = smul.addr %s245, 4
        %s247 = scalar_lea.vmem %s0, %s246
        %p248 = scmp.lt.s32.totalorder %s23, 1
        %s249 = scalar_select %p248, %s23, 1
        %s250 = smul.addr %s249, 32
        %s251 = smul.addr %s250, 4
        %s252 = scalar_lea.vmem %s2, %s251
        %p253 = scmp.lt.s32.totalorder %s23, 1
        %s254 = scalar_select %p253, %s23, 1
        %s255 = smul.addr %s254, 32
        %s256 = smul.addr %s255, 4
        %s257 = scalar_lea.vmem %s4, %s256
        %v259 = vld [vmem:[%s247] sm:$0xf]
        %v260 = vld [vmem:[%s247 + $0x4] sm:$0xf]
        %v261 = vld [vmem:[%s247 + $0x8] sm:$0x1]
        %v262 = vld [vmem:[%s247 + $0xc] sm:$0xf]
        %v263 = vld [vmem:[%s247 + $0x10] sm:$0xf]
        %v264 = vld [vmem:[%s247 + $0x14] sm:$0x1]
        %v265 = vld [vmem:[%s247 + $0x18] sm:$0xf]
        %v266 = vld [vmem:[%s247 + $0x1c] sm:$0xf]
        %v267 = vld [vmem:[%s247 + $0x20] sm:$0x1]
        %v268 = vld [vmem:[%s247 + $0x24] sm:$0xf]
        %v269 = vld [vmem:[%s247 + $0x28] sm:$0xf]
        %v270 = vld [vmem:[%s247 + $0x2c] sm:$0x1]
        %v271 = vld [vmem:[%s247 + $0x30] sm:$0xf]
        %v272 = vld [vmem:[%s247 + $0x34] sm:$0xf]
        %v273 = vld [vmem:[%s247 + $0x38] sm:$0x1]
        %v274 = vld [vmem:[%s247 + $0x3c] sm:$0xf]
        %v275 = vld [vmem:[%s247 + $0x40] sm:$0xf]
        %v276 = vld [vmem:[%s247 + $0x44] sm:$0x1]
        %v277 = vld [vmem:[%s247 + $0x48] sm:$0xf]
        %v278 = vld [vmem:[%s247 + $0x4c] sm:$0xf]
        %v279 = vld [vmem:[%s247 + $0x50] sm:$0x1]
        %v280 = vld [vmem:[%s247 + $0x54] sm:$0xf]
        %v281 = vld [vmem:[%s247 + $0x58] sm:$0xf]
        %v282 = vld [vmem:[%s247 + $0x5c] sm:$0x1]
        %v283 = vld [vmem:[%s247 + $0x60] sm:$0xf]
        %v284 = vld [vmem:[%s247 + $0x64] sm:$0xf]
        %v285 = vld [vmem:[%s247 + $0x68] sm:$0x1]
        %v286 = vld [vmem:[%s247 + $0x6c] sm:$0xf]
        %v287 = vld [vmem:[%s247 + $0x70] sm:$0xf]
        %v288 = vld [vmem:[%s247 + $0x74] sm:$0x1]
        %v289 = vld [vmem:[%s247 + $0x78] sm:$0xf]
        %v290 = vld [vmem:[%s247 + $0x7c] sm:$0xf]
        %v291 = vld [vmem:[%s247 + $0x80] sm:$0x1]
        %v292 = vld [vmem:[%s247 + $0x84] sm:$0xf]
        %v293 = vld [vmem:[%s247 + $0x88] sm:$0xf]
        %v294 = vld [vmem:[%s247 + $0x8c] sm:$0x1]
        %v295 = vld [vmem:[%s247 + $0x90] sm:$0xf]
        %v296 = vld [vmem:[%s247 + $0x94] sm:$0xf]
        %v297 = vld [vmem:[%s247 + $0x98] sm:$0x1]
        %v298 = vld [vmem:[%s247 + $0x9c] sm:$0xf]
        %v299 = vld [vmem:[%s247 + $0xa0] sm:$0xf]
        %v300 = vld [vmem:[%s247 + $0xa4] sm:$0x1]
        %v301 = vld [vmem:[%s247 + $0xa8] sm:$0xf]
        %v302 = vld [vmem:[%s247 + $0xac] sm:$0xf]
        %v303 = vld [vmem:[%s247 + $0xb0] sm:$0x1]
        %v304 = vld [vmem:[%s247 + $0xb4] sm:$0xf]
        %v305 = vld [vmem:[%s247 + $0xb8] sm:$0xf]
        %v306 = vld [vmem:[%s247 + $0xbc] sm:$0x1]
        %v307 = vunpack.c.l.bf16 %v259
        %v308 = vunpack.c.l.bf16 %v260
        %v309 = vunpack.c.l.bf16 %v261
        %v310 = vunpack.c.l.bf16 %v262
        %v311 = vunpack.c.l.bf16 %v263
        %v312 = vunpack.c.l.bf16 %v264
        %v313 = vunpack.c.l.bf16 %v265
        %v314 = vunpack.c.l.bf16 %v266
        %v315 = vunpack.c.l.bf16 %v267
        %v316 = vunpack.c.l.bf16 %v268
        %v317 = vunpack.c.l.bf16 %v269
        %v318 = vunpack.c.l.bf16 %v270
        %v319 = vunpack.c.l.bf16 %v271
        %v320 = vunpack.c.l.bf16 %v272
        %v321 = vunpack.c.l.bf16 %v273
        %v322 = vunpack.c.l.bf16 %v274
        %v323 = vunpack.c.l.bf16 %v275
        %v324 = vunpack.c.l.bf16 %v276
        %v325 = vunpack.c.l.bf16 %v277
        %v326 = vunpack.c.l.bf16 %v278
        %v327 = vunpack.c.l.bf16 %v279
        %v328 = vunpack.c.l.bf16 %v280
        %v329 = vunpack.c.l.bf16 %v281
        %v330 = vunpack.c.l.bf16 %v282
        %v331 = vunpack.c.l.bf16 %v283
        %v332 = vunpack.c.l.bf16 %v284
        %v333 = vunpack.c.l.bf16 %v285
        %v334 = vunpack.c.l.bf16 %v286
        %v335 = vunpack.c.l.bf16 %v287
        %v336 = vunpack.c.l.bf16 %v288
        %v337 = vunpack.c.l.bf16 %v289
        %v338 = vunpack.c.l.bf16 %v290
        %v339 = vunpack.c.l.bf16 %v291
        %v340 = vunpack.c.l.bf16 %v292
        %v341 = vunpack.c.l.bf16 %v293
        %v342 = vunpack.c.l.bf16 %v294
        %v343 = vunpack.c.l.bf16 %v295
        %v344 = vunpack.c.l.bf16 %v296
        %v345 = vunpack.c.l.bf16 %v297
        %v346 = vunpack.c.l.bf16 %v298
        %v347 = vunpack.c.l.bf16 %v299
        %v348 = vunpack.c.l.bf16 %v300
        %v349 = vunpack.c.l.bf16 %v301
        %v350 = vunpack.c.l.bf16 %v302
        %v351 = vunpack.c.l.bf16 %v303
        %v352 = vunpack.c.l.bf16 %v304
        %v353 = vunpack.c.l.bf16 %v305
        %v354 = vunpack.c.l.bf16 %v306
        %v355 = vpack.c.bf16 %v308, %v307
        %v356 = vpack.c.bf16 %v311, %v310
        %v357 = vpack.c.bf16 %v314, %v313
        %v358 = vpack.c.bf16 %v317, %v316
        %v359 = vpack.c.bf16 %v320, %v319
        %v360 = vpack.c.bf16 %v323, %v322
        %v361 = vpack.c.bf16 %v326, %v325
        %v362 = vpack.c.bf16 %v329, %v328
        %v363 = vpack.c.bf16 %v332, %v331
        %v364 = vpack.c.bf16 %v335, %v334
        %v365 = vpack.c.bf16 %v338, %v337
        %v366 = vpack.c.bf16 %v341, %v340
        %v367 = vpack.c.bf16 %v344, %v343
        %v368 = vpack.c.bf16 %v347, %v346
        %v369 = vpack.c.bf16 %v350, %v349
        %v370 = vpack.c.bf16 %v353, %v352
        %v387 = vunpack.c.l.b16 %v355
        %v388 = vunpack.c.h.b16 %v355
        %v389 = vunpack.c.l.b16 %v356
        %v390 = vunpack.c.h.b16 %v356
        %v391 = vunpack.c.l.b16 %v357
        %v392 = vunpack.c.h.b16 %v357
        %v393 = vunpack.c.l.b16 %v358
        %v394 = vunpack.c.h.b16 %v358
        %v395 = vunpack.c.l.b16 %v359
        %v396 = vunpack.c.h.b16 %v359
        %v397 = vunpack.c.l.b16 %v360
        %v398 = vunpack.c.h.b16 %v360
        %v399 = vunpack.c.l.b16 %v361
        %v400 = vunpack.c.h.b16 %v361
        %v401 = vunpack.c.l.b16 %v362
        %v402 = vunpack.c.h.b16 %v362
        %v403 = vunpack.c.l.b16 %v363
        %v404 = vunpack.c.h.b16 %v363
        %v405 = vunpack.c.l.b16 %v364
        %v406 = vunpack.c.h.b16 %v364
        %v407 = vunpack.c.l.b16 %v365
        %v408 = vunpack.c.h.b16 %v365
        %v409 = vunpack.c.l.b16 %v366
        %v410 = vunpack.c.h.b16 %v366
        %v411 = vunpack.c.l.b16 %v367
        %v412 = vunpack.c.h.b16 %v367
        %v413 = vunpack.c.l.b16 %v368
        %v414 = vunpack.c.h.b16 %v368
        %v415 = vunpack.c.l.b16 %v369
        %v416 = vunpack.c.h.b16 %v369
        %v417 = vunpack.c.l.b16 %v370
        %v418 = vunpack.c.h.b16 %v370
        %v419 = vpack.c.b16 %v387, %v387
        %v420 = vpack.c.b16 %v388, %v388
        %v421 = vpack.c.b16 %v389, %v389
        %v422 = vpack.c.b16 %v390, %v390
        %v423 = vpack.c.b16 %v391, %v391
        %v424 = vpack.c.b16 %v392, %v392
        %v425 = vpack.c.b16 %v393, %v393
        %v426 = vpack.c.b16 %v394, %v394
        %v427 = vpack.c.b16 %v395, %v395
        %v428 = vpack.c.b16 %v396, %v396
        %v429 = vpack.c.b16 %v397, %v397
        %v430 = vpack.c.b16 %v398, %v398
        %v431 = vpack.c.b16 %v399, %v399
        %v432 = vpack.c.b16 %v400, %v400
        %v433 = vpack.c.b16 %v401, %v401
        %v434 = vpack.c.b16 %v402, %v402
        %v435 = vpack.c.b16 %v403, %v403
        %v436 = vpack.c.b16 %v404, %v404
        %v437 = vpack.c.b16 %v405, %v405
        %v438 = vpack.c.b16 %v406, %v406
        %v439 = vpack.c.b16 %v407, %v407
        %v440 = vpack.c.b16 %v408, %v408
        %v441 = vpack.c.b16 %v409, %v409
        %v442 = vpack.c.b16 %v410, %v410
        %v443 = vpack.c.b16 %v411, %v411
        %v444 = vpack.c.b16 %v412, %v412
        %v445 = vpack.c.b16 %v413, %v413
        %v446 = vpack.c.b16 %v414, %v414
        %v447 = vpack.c.b16 %v415, %v415
        %v448 = vpack.c.b16 %v416, %v416
        %v449 = vpack.c.b16 %v417, %v417
        %v450 = vpack.c.b16 %v418, %v418
        %vm483 = vcmask 27648
        %484 = vst.msk [vmem:[#allocation2] sm:$0xf] %vm483, %v419
        %485 = vst.msk [vmem:[#allocation2 + $0x4] sm:$0xf] %vm483, %v420
        %486 = vst.msk [vmem:[#allocation2 + $0x8] sm:$0xf] %vm483, %v421
        %487 = vst.msk [vmem:[#allocation2 + $0xc] sm:$0xf] %vm483, %v422
        %488 = vst.msk [vmem:[#allocation2 + $0x10] sm:$0xf] %vm483, %v423
        %489 = vst.msk [vmem:[#allocation2 + $0x14] sm:$0xf] %vm483, %v424
        %490 = vst.msk [vmem:[#allocation2 + $0x18] sm:$0xf] %vm483, %v425
        %491 = vst.msk [vmem:[#allocation2 + $0x1c] sm:$0xf] %vm483, %v426
        %492 = vst.msk [vmem:[#allocation2 + $0x20] sm:$0xf] %vm483, %v427
        %493 = vst.msk [vmem:[#allocation2 + $0x24] sm:$0xf] %vm483, %v428
        %494 = vst.msk [vmem:[#allocation2 + $0x28] sm:$0xf] %vm483, %v429
        %495 = vst.msk [vmem:[#allocation2 + $0x2c] sm:$0xf] %vm483, %v430
        %496 = vst.msk [vmem:[#allocation2 + $0x30] sm:$0xf] %vm483, %v431
        %497 = vst.msk [vmem:[#allocation2 + $0x34] sm:$0xf] %vm483, %v432
        %498 = vst.msk [vmem:[#allocation2 + $0x38] sm:$0xf] %vm483, %v433
        %499 = vst.msk [vmem:[#allocation2 + $0x3c] sm:$0xf] %vm483, %v434
        %500 = vst.msk [vmem:[#allocation2 + $0x40] sm:$0xf] %vm483, %v435
        %501 = vst.msk [vmem:[#allocation2 + $0x44] sm:$0xf] %vm483, %v436
        %502 = vst.msk [vmem:[#allocation2 + $0x48] sm:$0xf] %vm483, %v437
        %503 = vst.msk [vmem:[#allocation2 + $0x4c] sm:$0xf] %vm483, %v438
        %504 = vst.msk [vmem:[#allocation2 + $0x50] sm:$0xf] %vm483, %v439
        %505 = vst.msk [vmem:[#allocation2 + $0x54] sm:$0xf] %vm483, %v440
        %506 = vst.msk [vmem:[#allocation2 + $0x58] sm:$0xf] %vm483, %v441
        %507 = vst.msk [vmem:[#allocation2 + $0x5c] sm:$0xf] %vm483, %v442
        %508 = vst.msk [vmem:[#allocation2 + $0x60] sm:$0xf] %vm483, %v443
        %509 = vst.msk [vmem:[#allocation2 + $0x64] sm:$0xf] %vm483, %v444
        %510 = vst.msk [vmem:[#allocation2 + $0x68] sm:$0xf] %vm483, %v445
        %511 = vst.msk [vmem:[#allocation2 + $0x6c] sm:$0xf] %vm483, %v446
        %512 = vst.msk [vmem:[#allocation2 + $0x70] sm:$0xf] %vm483, %v447
        %513 = vst.msk [vmem:[#allocation2 + $0x74] sm:$0xf] %vm483, %v448
        %514 = vst.msk [vmem:[#allocation2 + $0x78] sm:$0xf] %vm483, %v449
        %515 = vst.msk [vmem:[#allocation2 + $0x7c] sm:$0xf] %vm483, %v450
        %vm564 = vcmask 1046528
        %v565 = vrot.slane %v307, 1
        %v566 = vrot.slane %v308, 1
        %v567 = vsel %vm564, %v565, %v566
        %v568 = vrot.slane %v309, 1
        %v569 = vsel %vm564, %v566, %v568
        %v570 = vrot.slane %v310, 1
        %v571 = vrot.slane %v311, 1
        %v572 = vsel %vm564, %v570, %v571
        %v573 = vrot.slane %v312, 1
        %v574 = vsel %vm564, %v571, %v573
        %v575 = vrot.slane %v313, 1
        %v576 = vrot.slane %v314, 1
        %v577 = vsel %vm564, %v575, %v576
        %v578 = vrot.slane %v315, 1
        %v579 = vsel %vm564, %v576, %v578
        %v580 = vrot.slane %v316, 1
        %v581 = vrot.slane %v317, 1
        %v582 = vsel %vm564, %v580, %v581
        %v583 = vrot.slane %v318, 1
        %v584 = vsel %vm564, %v581, %v583
        %v585 = vrot.slane %v319, 1
        %v586 = vrot.slane %v320, 1
        %v587 = vsel %vm564, %v585, %v586
        %v588 = vrot.slane %v321, 1
        %v589 = vsel %vm564, %v586, %v588
        %v590 = vrot.slane %v322, 1
        %v591 = vrot.slane %v323, 1
        %v592 = vsel %vm564, %v590, %v591
        %v593 = vrot.slane %v324, 1
        %v594 = vsel %vm564, %v591, %v593
        %v595 = vrot.slane %v325, 1
        %v596 = vrot.slane %v326, 1
        %v597 = vsel %vm564, %v595, %v596
        %v598 = vrot.slane %v327, 1
        %v599 = vsel %vm564, %v596, %v598
        %v600 = vrot.slane %v328, 1
        %v601 = vrot.slane %v329, 1
        %v602 = vsel %vm564, %v600, %v601
        %v603 = vrot.slane %v330, 1
        %v604 = vsel %vm564, %v601, %v603
        %v605 = vrot.slane %v331, 1
        %v606 = vrot.slane %v332, 1
        %v607 = vsel %vm564, %v605, %v606
        %v608 = vrot.slane %v333, 1
        %v609 = vsel %vm564, %v606, %v608
        %v610 = vrot.slane %v334, 1
        %v611 = vrot.slane %v335, 1
        %v612 = vsel %vm564, %v610, %v611
        %v613 = vrot.slane %v336, 1
        %v614 = vsel %vm564, %v611, %v613
        %v615 = vrot.slane %v337, 1
        %v616 = vrot.slane %v338, 1
        %v617 = vsel %vm564, %v615, %v616
        %v618 = vrot.slane %v339, 1
        %v619 = vsel %vm564, %v616, %v618
        %v620 = vrot.slane %v340, 1
        %v621 = vrot.slane %v341, 1
        %v622 = vsel %vm564, %v620, %v621
        %v623 = vrot.slane %v342, 1
        %v624 = vsel %vm564, %v621, %v623
        %v625 = vrot.slane %v343, 1
        %v626 = vrot.slane %v344, 1
        %v627 = vsel %vm564, %v625, %v626
        %v628 = vrot.slane %v345, 1
        %v629 = vsel %vm564, %v626, %v628
        %v630 = vrot.slane %v346, 1
        %v631 = vrot.slane %v347, 1
        %v632 = vsel %vm564, %v630, %v631
        %v633 = vrot.slane %v348, 1
        %v634 = vsel %vm564, %v631, %v633
        %v635 = vrot.slane %v349, 1
        %v636 = vrot.slane %v350, 1
        %v637 = vsel %vm564, %v635, %v636
        %v638 = vrot.slane %v351, 1
        %v639 = vsel %vm564, %v636, %v638
        %v640 = vrot.slane %v352, 1
        %v641 = vrot.slane %v353, 1
        %v642 = vsel %vm564, %v640, %v641
        %v643 = vrot.slane %v354, 1
        %v644 = vsel %vm564, %v641, %v643
        %v677 = vpack.c.bf16 %v569, %v567
        %v678 = vpack.c.bf16 %v574, %v572
        %v679 = vpack.c.bf16 %v579, %v577
        %v680 = vpack.c.bf16 %v584, %v582
        %v681 = vpack.c.bf16 %v589, %v587
        %v682 = vpack.c.bf16 %v594, %v592
        %v683 = vpack.c.bf16 %v599, %v597
        %v684 = vpack.c.bf16 %v604, %v602
        %v685 = vpack.c.bf16 %v609, %v607
        %v686 = vpack.c.bf16 %v614, %v612
        %v687 = vpack.c.bf16 %v619, %v617
        %v688 = vpack.c.bf16 %v624, %v622
        %v689 = vpack.c.bf16 %v629, %v627
        %v690 = vpack.c.bf16 %v634, %v632
        %v691 = vpack.c.bf16 %v639, %v637
        %v692 = vpack.c.bf16 %v644, %v642
        %v709 = vunpack.c.l.b16 %v677
        %v710 = vunpack.c.h.b16 %v677
        %v711 = vunpack.c.l.b16 %v678
        %v712 = vunpack.c.h.b16 %v678
        %v713 = vunpack.c.l.b16 %v679
        %v714 = vunpack.c.h.b16 %v679
        %v715 = vunpack.c.l.b16 %v680
        %v716 = vunpack.c.h.b16 %v680
        %v717 = vunpack.c.l.b16 %v681
        %v718 = vunpack.c.h.b16 %v681
        %v719 = vunpack.c.l.b16 %v682
        %v720 = vunpack.c.h.b16 %v682
        %v721 = vunpack.c.l.b16 %v683
        %v722 = vunpack.c.h.b16 %v683
        %v723 = vunpack.c.l.b16 %v684
        %v724 = vunpack.c.h.b16 %v684
        %v725 = vunpack.c.l.b16 %v685
        %v726 = vunpack.c.h.b16 %v685
        %v727 = vunpack.c.l.b16 %v686
        %v728 = vunpack.c.h.b16 %v686
        %v729 = vunpack.c.l.b16 %v687
        %v730 = vunpack.c.h.b16 %v687
        %v731 = vunpack.c.l.b16 %v688
        %v732 = vunpack.c.h.b16 %v688
        %v733 = vunpack.c.l.b16 %v689
        %v734 = vunpack.c.h.b16 %v689
        %v735 = vunpack.c.l.b16 %v690
        %v736 = vunpack.c.h.b16 %v690
        %v737 = vunpack.c.l.b16 %v691
        %v738 = vunpack.c.h.b16 %v691
        %v739 = vunpack.c.l.b16 %v692
        %v740 = vunpack.c.h.b16 %v692
        %v741 = vpack.c.b16 %v709, %v709
        %v742 = vpack.c.b16 %v710, %v710
        %v743 = vpack.c.b16 %v711, %v711
        %v744 = vpack.c.b16 %v712, %v712
        %v745 = vpack.c.b16 %v713, %v713
        %v746 = vpack.c.b16 %v714, %v714
        %v747 = vpack.c.b16 %v715, %v715
        %v748 = vpack.c.b16 %v716, %v716
        %v749 = vpack.c.b16 %v717, %v717
        %v750 = vpack.c.b16 %v718, %v718
        %v751 = vpack.c.b16 %v719, %v719
        %v752 = vpack.c.b16 %v720, %v720
        %v753 = vpack.c.b16 %v721, %v721
        %v754 = vpack.c.b16 %v722, %v722
        %v755 = vpack.c.b16 %v723, %v723
        %v756 = vpack.c.b16 %v724, %v724
        %v757 = vpack.c.b16 %v725, %v725
        %v758 = vpack.c.b16 %v726, %v726
        %v759 = vpack.c.b16 %v727, %v727
        %v760 = vpack.c.b16 %v728, %v728
        %v761 = vpack.c.b16 %v729, %v729
        %v762 = vpack.c.b16 %v730, %v730
        %v763 = vpack.c.b16 %v731, %v731
        %v764 = vpack.c.b16 %v732, %v732
        %v765 = vpack.c.b16 %v733, %v733
        %v766 = vpack.c.b16 %v734, %v734
        %v767 = vpack.c.b16 %v735, %v735
        %v768 = vpack.c.b16 %v736, %v736
        %v769 = vpack.c.b16 %v737, %v737
        %v770 = vpack.c.b16 %v738, %v738
        %v771 = vpack.c.b16 %v739, %v739
        %v772 = vpack.c.b16 %v740, %v740
        %773 = vrot.lane.b32.xlu0 %v741, 4
        %v774 = vpop.permute.xlu0 %773
        %775 = vrot.lane.b32.xlu0 %v742, 4
        %v776 = vpop.permute.xlu0 %775
        %777 = vrot.lane.b32.xlu0 %v743, 4
        %v778 = vpop.permute.xlu0 %777
        %779 = vrot.lane.b32.xlu0 %v744, 4
        %v780 = vpop.permute.xlu0 %779
        %781 = vrot.lane.b32.xlu0 %v745, 4
        %v782 = vpop.permute.xlu0 %781
        %783 = vrot.lane.b32.xlu0 %v746, 4
        %v784 = vpop.permute.xlu0 %783
        %785 = vrot.lane.b32.xlu0 %v747, 4
        %v786 = vpop.permute.xlu0 %785
        %787 = vrot.lane.b32.xlu0 %v748, 4
        %v788 = vpop.permute.xlu0 %787
        %789 = vrot.lane.b32.xlu0 %v749, 4
        %v790 = vpop.permute.xlu0 %789
        %791 = vrot.lane.b32.xlu0 %v750, 4
        %v792 = vpop.permute.xlu0 %791
        %793 = vrot.lane.b32.xlu0 %v751, 4
        %v794 = vpop.permute.xlu0 %793
        %795 = vrot.lane.b32.xlu0 %v752, 4
        %v796 = vpop.permute.xlu0 %795
        %797 = vrot.lane.b32.xlu0 %v753, 4
        %v798 = vpop.permute.xlu0 %797
        %799 = vrot.lane.b32.xlu0 %v754, 4
        %v800 = vpop.permute.xlu0 %799
        %801 = vrot.lane.b32.xlu0 %v755, 4
        %v802 = vpop.permute.xlu0 %801
        %803 = vrot.lane.b32.xlu0 %v756, 4
        %v804 = vpop.permute.xlu0 %803
        %805 = vrot.lane.b32.xlu0 %v757, 4
        %v806 = vpop.permute.xlu0 %805
        %807 = vrot.lane.b32.xlu0 %v758, 4
        %v808 = vpop.permute.xlu0 %807
        %809 = vrot.lane.b32.xlu0 %v759, 4
        %v810 = vpop.permute.xlu0 %809
        %811 = vrot.lane.b32.xlu0 %v760, 4
        %v812 = vpop.permute.xlu0 %811
        %813 = vrot.lane.b32.xlu0 %v761, 4
        %v814 = vpop.permute.xlu0 %813
        %815 = vrot.lane.b32.xlu0 %v762, 4
        %v816 = vpop.permute.xlu0 %815
        %817 = vrot.lane.b32.xlu0 %v763, 4
        %v818 = vpop.permute.xlu0 %817
        %819 = vrot.lane.b32.xlu0 %v764, 4
        %v820 = vpop.permute.xlu0 %819
        %821 = vrot.lane.b32.xlu0 %v765, 4
        %v822 = vpop.permute.xlu0 %821
        %823 = vrot.lane.b32.xlu0 %v766, 4
        %v824 = vpop.permute.xlu0 %823
        %825 = vrot.lane.b32.xlu0 %v767, 4
        %v826 = vpop.permute.xlu0 %825
        %827 = vrot.lane.b32.xlu0 %v768, 4
        %v828 = vpop.permute.xlu0 %827
        %829 = vrot.lane.b32.xlu0 %v769, 4
        %v830 = vpop.permute.xlu0 %829
        %831 = vrot.lane.b32.xlu0 %v770, 4
        %v832 = vpop.permute.xlu0 %831
        %833 = vrot.lane.b32.xlu0 %v771, 4
        %v834 = vpop.permute.xlu0 %833
        %835 = vrot.lane.b32.xlu0 %v772, 4
        %v836 = vpop.permute.xlu0 %835
        %vm869 = vcmask 60448
        %870 = vst.msk [vmem:[#allocation2] sm:$0xf] %vm869, %v774
        %871 = vst.msk [vmem:[#allocation2 + $0x4] sm:$0xf] %vm869, %v776
        %872 = vst.msk [vmem:[#allocation2 + $0x8] sm:$0xf] %vm869, %v778
        %873 = vst.msk [vmem:[#allocation2 + $0xc] sm:$0xf] %vm869, %v780
        %874 = vst.msk [vmem:[#allocation2 + $0x10] sm:$0xf] %vm869, %v782
        %875 = vst.msk [vmem:[#allocation2 + $0x14] sm:$0xf] %vm869, %v784
        %876 = vst.msk [vmem:[#allocation2 + $0x18] sm:$0xf] %vm869, %v786
        %877 = vst.msk [vmem:[#allocation2 + $0x1c] sm:$0xf] %vm869, %v788
        %878 = vst.msk [vmem:[#allocation2 + $0x20] sm:$0xf] %vm869, %v790
        %879 = vst.msk [vmem:[#allocation2 + $0x24] sm:$0xf] %vm869, %v792
        %880 = vst.msk [vmem:[#allocation2 + $0x28] sm:$0xf] %vm869, %v794
        %881 = vst.msk [vmem:[#allocation2 + $0x2c] sm:$0xf] %vm869, %v796
        %882 = vst.msk [vmem:[#allocation2 + $0x30] sm:$0xf] %vm869, %v798
        %883 = vst.msk [vmem:[#allocation2 + $0x34] sm:$0xf] %vm869, %v800
        %884 = vst.msk [vmem:[#allocation2 + $0x38] sm:$0xf] %vm869, %v802
        %885 = vst.msk [vmem:[#allocation2 + $0x3c] sm:$0xf] %vm869, %v804
        %886 = vst.msk [vmem:[#allocation2 + $0x40] sm:$0xf] %vm869, %v806
        %887 = vst.msk [vmem:[#allocation2 + $0x44] sm:$0xf] %vm869, %v808
        %888 = vst.msk [vmem:[#allocation2 + $0x48] sm:$0xf] %vm869, %v810
        %889 = vst.msk [vmem:[#allocation2 + $0x4c] sm:$0xf] %vm869, %v812
        %890 = vst.msk [vmem:[#allocation2 + $0x50] sm:$0xf] %vm869, %v814
        %891 = vst.msk [vmem:[#allocation2 + $0x54] sm:$0xf] %vm869, %v816
        %892 = vst.msk [vmem:[#allocation2 + $0x58] sm:$0xf] %vm869, %v818
        %893 = vst.msk [vmem:[#allocation2 + $0x5c] sm:$0xf] %vm869, %v820
        %894 = vst.msk [vmem:[#allocation2 + $0x60] sm:$0xf] %vm869, %v822
        %895 = vst.msk [vmem:[#allocation2 + $0x64] sm:$0xf] %vm869, %v824
        %896 = vst.msk [vmem:[#allocation2 + $0x68] sm:$0xf] %vm869, %v826
        %897 = vst.msk [vmem:[#allocation2 + $0x6c] sm:$0xf] %vm869, %v828
        %898 = vst.msk [vmem:[#allocation2 + $0x70] sm:$0xf] %vm869, %v830
        %899 = vst.msk [vmem:[#allocation2 + $0x74] sm:$0xf] %vm869, %v832
        %900 = vst.msk [vmem:[#allocation2 + $0x78] sm:$0xf] %vm869, %v834
        %901 = vst.msk [vmem:[#allocation2 + $0x7c] sm:$0xf] %vm869, %v836
        %vm902 = vcmask 1045504
        %v903 = vrot.slane %v307, 2
        %v904 = vrot.slane %v308, 2
        %v905 = vsel %vm902, %v903, %v904
        %v906 = vrot.slane %v309, 2
        %v907 = vsel %vm902, %v904, %v906
        %v908 = vrot.slane %v310, 2
        %v909 = vrot.slane %v311, 2
        %v910 = vsel %vm902, %v908, %v909
        %v911 = vrot.slane %v312, 2
        %v912 = vsel %vm902, %v909, %v911
        %v913 = vrot.slane %v313, 2
        %v914 = vrot.slane %v314, 2
        %v915 = vsel %vm902, %v913, %v914
        %v916 = vrot.slane %v315, 2
        %v917 = vsel %vm902, %v914, %v916
        %v918 = vrot.slane %v316, 2
        %v919 = vrot.slane %v317, 2
        %v920 = vsel %vm902, %v918, %v919
        %v921 = vrot.slane %v318, 2
        %v922 = vsel %vm902, %v919, %v921
        %v923 = vrot.slane %v319, 2
        %v924 = vrot.slane %v320, 2
        %v925 = vsel %vm902, %v923, %v924
        %v926 = vrot.slane %v321, 2
        %v927 = vsel %vm902, %v924, %v926
        %v928 = vrot.slane %v322, 2
        %v929 = vrot.slane %v323, 2
        %v930 = vsel %vm902, %v928, %v929
        %v931 = vrot.slane %v324, 2
        %v932 = vsel %vm902, %v929, %v931
        %v933 = vrot.slane %v325, 2
        %v934 = vrot.slane %v326, 2
        %v935 = vsel %vm902, %v933, %v934
        %v936 = vrot.slane %v327, 2
        %v937 = vsel %vm902, %v934, %v936
        %v938 = vrot.slane %v328, 2
        %v939 = vrot.slane %v329, 2
        %v940 = vsel %vm902, %v938, %v939
        %v941 = vrot.slane %v330, 2
        %v942 = vsel %vm902, %v939, %v941
        %v943 = vrot.slane %v331, 2
        %v944 = vrot.slane %v332, 2
        %v945 = vsel %vm902, %v943, %v944
        %v946 = vrot.slane %v333, 2
        %v947 = vsel %vm902, %v944, %v946
        %v948 = vrot.slane %v334, 2
        %v949 = vrot.slane %v335, 2
        %v950 = vsel %vm902, %v948, %v949
        %v951 = vrot.slane %v336, 2
        %v952 = vsel %vm902, %v949, %v951
        %v953 = vrot.slane %v337, 2
        %v954 = vrot.slane %v338, 2
        %v955 = vsel %vm902, %v953, %v954
        %v956 = vrot.slane %v339, 2
        %v957 = vsel %vm902, %v954, %v956
        %v958 = vrot.slane %v340, 2
        %v959 = vrot.slane %v341, 2
        %v960 = vsel %vm902, %v958, %v959
        %v961 = vrot.slane %v342, 2
        %v962 = vsel %vm902, %v959, %v961
        %v963 = vrot.slane %v343, 2
        %v964 = vrot.slane %v344, 2
        %v965 = vsel %vm902, %v963, %v964
        %v966 = vrot.slane %v345, 2
        %v967 = vsel %vm902, %v964, %v966
        %v968 = vrot.slane %v346, 2
        %v969 = vrot.slane %v347, 2
        %v970 = vsel %vm902, %v968, %v969
        %v971 = vrot.slane %v348, 2
        %v972 = vsel %vm902, %v969, %v971
        %v973 = vrot.slane %v349, 2
        %v974 = vrot.slane %v350, 2
        %v975 = vsel %vm902, %v973, %v974
        %v976 = vrot.slane %v351, 2
        %v977 = vsel %vm902, %v974, %v976
        %v978 = vrot.slane %v352, 2
        %v979 = vrot.slane %v353, 2
        %v980 = vsel %vm902, %v978, %v979
        %v981 = vrot.slane %v354, 2
        %v982 = vsel %vm902, %v979, %v981
        %v1015 = vpack.c.bf16 %v907, %v905
        %v1016 = vpack.c.bf16 %v912, %v910
        %v1017 = vpack.c.bf16 %v917, %v915
        %v1018 = vpack.c.bf16 %v922, %v920
        %v1019 = vpack.c.bf16 %v927, %v925
        %v1020 = vpack.c.bf16 %v932, %v930
        %v1021 = vpack.c.bf16 %v937, %v935
        %v1022 = vpack.c.bf16 %v942, %v940
        %v1023 = vpack.c.bf16 %v947, %v945
        %v1024 = vpack.c.bf16 %v952, %v950
        %v1025 = vpack.c.bf16 %v957, %v955
        %v1026 = vpack.c.bf16 %v962, %v960
        %v1027 = vpack.c.bf16 %v967, %v965
        %v1028 = vpack.c.bf16 %v972, %v970
        %v1029 = vpack.c.bf16 %v977, %v975
        %v1030 = vpack.c.bf16 %v982, %v980
        %v1047 = vunpack.c.l.b16 %v1015
        %v1048 = vunpack.c.h.b16 %v1015
        %v1049 = vunpack.c.l.b16 %v1016
        %v1050 = vunpack.c.h.b16 %v1016
        %v1051 = vunpack.c.l.b16 %v1017
        %v1052 = vunpack.c.h.b16 %v1017
        %v1053 = vunpack.c.l.b16 %v1018
        %v1054 = vunpack.c.h.b16 %v1018
        %v1055 = vunpack.c.l.b16 %v1019
        %v1056 = vunpack.c.h.b16 %v1019
        %v1057 = vunpack.c.l.b16 %v1020
        %v1058 = vunpack.c.h.b16 %v1020
        %v1059 = vunpack.c.l.b16 %v1021
        %v1060 = vunpack.c.h.b16 %v1021
        %v1061 = vunpack.c.l.b16 %v1022
        %v1062 = vunpack.c.h.b16 %v1022
        %v1063 = vunpack.c.l.b16 %v1023
        %v1064 = vunpack.c.h.b16 %v1023
        %v1065 = vunpack.c.l.b16 %v1024
        %v1066 = vunpack.c.h.b16 %v1024
        %v1067 = vunpack.c.l.b16 %v1025
        %v1068 = vunpack.c.h.b16 %v1025
        %v1069 = vunpack.c.l.b16 %v1026
        %v1070 = vunpack.c.h.b16 %v1026
        %v1071 = vunpack.c.l.b16 %v1027
        %v1072 = vunpack.c.h.b16 %v1027
        %v1073 = vunpack.c.l.b16 %v1028
        %v1074 = vunpack.c.h.b16 %v1028
        %v1075 = vunpack.c.l.b16 %v1029
        %v1076 = vunpack.c.h.b16 %v1029
        %v1077 = vunpack.c.l.b16 %v1030
        %v1078 = vunpack.c.h.b16 %v1030
        %v1079 = vpack.c.b16 %v1047, %v1047
        %v1080 = vpack.c.b16 %v1048, %v1048
        %v1081 = vpack.c.b16 %v1049, %v1049
        %v1082 = vpack.c.b16 %v1050, %v1050
        %v1083 = vpack.c.b16 %v1051, %v1051
        %v1084 = vpack.c.b16 %v1052, %v1052
        %v1085 = vpack.c.b16 %v1053, %v1053
        %v1086 = vpack.c.b16 %v1054, %v1054
        %v1087 = vpack.c.b16 %v1055, %v1055
        %v1088 = vpack.c.b16 %v1056, %v1056
        %v1089 = vpack.c.b16 %v1057, %v1057
        %v1090 = vpack.c.b16 %v1058, %v1058
        %v1091 = vpack.c.b16 %v1059, %v1059
        %v1092 = vpack.c.b16 %v1060, %v1060
        %v1093 = vpack.c.b16 %v1061, %v1061
        %v1094 = vpack.c.b16 %v1062, %v1062
        %v1095 = vpack.c.b16 %v1063, %v1063
        %v1096 = vpack.c.b16 %v1064, %v1064
        %v1097 = vpack.c.b16 %v1065, %v1065
        %v1098 = vpack.c.b16 %v1066, %v1066
        %v1099 = vpack.c.b16 %v1067, %v1067
        %v1100 = vpack.c.b16 %v1068, %v1068
        %v1101 = vpack.c.b16 %v1069, %v1069
        %v1102 = vpack.c.b16 %v1070, %v1070
        %v1103 = vpack.c.b16 %v1071, %v1071
        %v1104 = vpack.c.b16 %v1072, %v1072
        %v1105 = vpack.c.b16 %v1073, %v1073
        %v1106 = vpack.c.b16 %v1074, %v1074
        %v1107 = vpack.c.b16 %v1075, %v1075
        %v1108 = vpack.c.b16 %v1076, %v1076
        %v1109 = vpack.c.b16 %v1077, %v1077
        %v1110 = vpack.c.b16 %v1078, %v1078
        %1111 = vrot.lane.b32.xlu0 %v1079, 8
        %v1112 = vpop.permute.xlu0 %1111
        %1113 = vrot.lane.b32.xlu0 %v1080, 8
        %v1114 = vpop.permute.xlu0 %1113
        %1115 = vrot.lane.b32.xlu0 %v1081, 8
        %v1116 = vpop.permute.xlu0 %1115
        %1117 = vrot.lane.b32.xlu0 %v1082, 8
        %v1118 = vpop.permute.xlu0 %1117
        %1119 = vrot.lane.b32.xlu0 %v1083, 8
        %v1120 = vpop.permute.xlu0 %1119
        %1121 = vrot.lane.b32.xlu0 %v1084, 8
        %v1122 = vpop.permute.xlu0 %1121
        %1123 = vrot.lane.b32.xlu0 %v1085, 8
        %v1124 = vpop.permute.xlu0 %1123
        %1125 = vrot.lane.b32.xlu0 %v1086, 8
        %v1126 = vpop.permute.xlu0 %1125
        %1127 = vrot.lane.b32.xlu0 %v1087, 8
        %v1128 = vpop.permute.xlu0 %1127
        %1129 = vrot.lane.b32.xlu0 %v1088, 8
        %v1130 = vpop.permute.xlu0 %1129
        %1131 = vrot.lane.b32.xlu0 %v1089, 8
        %v1132 = vpop.permute.xlu0 %1131
        %1133 = vrot.lane.b32.xlu0 %v1090, 8
        %v1134 = vpop.permute.xlu0 %1133
        %1135 = vrot.lane.b32.xlu0 %v1091, 8
        %v1136 = vpop.permute.xlu0 %1135
        %1137 = vrot.lane.b32.xlu0 %v1092, 8
        %v1138 = vpop.permute.xlu0 %1137
        %1139 = vrot.lane.b32.xlu0 %v1093, 8
        %v1140 = vpop.permute.xlu0 %1139
        %1141 = vrot.lane.b32.xlu0 %v1094, 8
        %v1142 = vpop.permute.xlu0 %1141
        %1143 = vrot.lane.b32.xlu0 %v1095, 8
        %v1144 = vpop.permute.xlu0 %1143
        %1145 = vrot.lane.b32.xlu0 %v1096, 8
        %v1146 = vpop.permute.xlu0 %1145
        %1147 = vrot.lane.b32.xlu0 %v1097, 8
        %v1148 = vpop.permute.xlu0 %1147
        %1149 = vrot.lane.b32.xlu0 %v1098, 8
        %v1150 = vpop.permute.xlu0 %1149
        %1151 = vrot.lane.b32.xlu0 %v1099, 8
        %v1152 = vpop.permute.xlu0 %1151
        %1153 = vrot.lane.b32.xlu0 %v1100, 8
        %v1154 = vpop.permute.xlu0 %1153
        %1155 = vrot.lane.b32.xlu0 %v1101, 8
        %v1156 = vpop.permute.xlu0 %1155
        %1157 = vrot.lane.b32.xlu0 %v1102, 8
        %v1158 = vpop.permute.xlu0 %1157
        %1159 = vrot.lane.b32.xlu0 %v1103, 8
        %v1160 = vpop.permute.xlu0 %1159
        %1161 = vrot.lane.b32.xlu0 %v1104, 8
        %v1162 = vpop.permute.xlu0 %1161
        %1163 = vrot.lane.b32.xlu0 %v1105, 8
        %v1164 = vpop.permute.xlu0 %1163
        %1165 = vrot.lane.b32.xlu0 %v1106, 8
        %v1166 = vpop.permute.xlu0 %1165
        %1167 = vrot.lane.b32.xlu0 %v1107, 8
        %v1168 = vpop.permute.xlu0 %1167
        %1169 = vrot.lane.b32.xlu0 %v1108, 8
        %v1170 = vpop.permute.xlu0 %1169
        %1171 = vrot.lane.b32.xlu0 %v1109, 8
        %v1172 = vpop.permute.xlu0 %1171
        %1173 = vrot.lane.b32.xlu0 %v1110, 8
        %v1174 = vpop.permute.xlu0 %1173
        %vm1207 = vcmask 93248
        %1208 = vst.msk [vmem:[#allocation2] sm:$0xf] %vm1207, %v1112
        %1209 = vst.msk [vmem:[#allocation2 + $0x4] sm:$0xf] %vm1207, %v1114
        %1210 = vst.msk [vmem:[#allocation2 + $0x8] sm:$0xf] %vm1207, %v1116
        %1211 = vst.msk [vmem:[#allocation2 + $0xc] sm:$0xf] %vm1207, %v1118
        %1212 = vst.msk [vmem:[#allocation2 + $0x10] sm:$0xf] %vm1207, %v1120
        %1213 = vst.msk [vmem:[#allocation2 + $0x14] sm:$0xf] %vm1207, %v1122
        %1214 = vst.msk [vmem:[#allocation2 + $0x18] sm:$0xf] %vm1207, %v1124
        %1215 = vst.msk [vmem:[#allocation2 + $0x1c] sm:$0xf] %vm1207, %v1126
        %1216 = vst.msk [vmem:[#allocation2 + $0x20] sm:$0xf] %vm1207, %v1128
        %1217 = vst.msk [vmem:[#allocation2 + $0x24] sm:$0xf] %vm1207, %v1130
        %1218 = vst.msk [vmem:[#allocation2 + $0x28] sm:$0xf] %vm1207, %v1132
        %1219 = vst.msk [vmem:[#allocation2 + $0x2c] sm:$0xf] %vm1207, %v1134
        %1220 = vst.msk [vmem:[#allocation2 + $0x30] sm:$0xf] %vm1207, %v1136
        %1221 = vst.msk [vmem:[#allocation2 + $0x34] sm:$0xf] %vm1207, %v1138
        %1222 = vst.msk [vmem:[#allocation2 + $0x38] sm:$0xf] %vm1207, %v1140
        %1223 = vst.msk [vmem:[#allocation2 + $0x3c] sm:$0xf] %vm1207, %v1142
        %1224 = vst.msk [vmem:[#allocation2 + $0x40] sm:$0xf] %vm1207, %v1144
        %1225 = vst.msk [vmem:[#allocation2 + $0x44] sm:$0xf] %vm1207, %v1146
        %1226 = vst.msk [vmem:[#allocation2 + $0x48] sm:$0xf] %vm1207, %v1148
        %1227 = vst.msk [vmem:[#allocation2 + $0x4c] sm:$0xf] %vm1207, %v1150
        %1228 = vst.msk [vmem:[#allocation2 + $0x50] sm:$0xf] %vm1207, %v1152
        %1229 = vst.msk [vmem:[#allocation2 + $0x54] sm:$0xf] %vm1207, %v1154
        %1230 = vst.msk [vmem:[#allocation2 + $0x58] sm:$0xf] %vm1207, %v1156
        %1231 = vst.msk [vmem:[#allocation2 + $0x5c] sm:$0xf] %vm1207, %v1158
        %1232 = vst.msk [vmem:[#allocation2 + $0x60] sm:$0xf] %vm1207, %v1160
        %1233 = vst.msk [vmem:[#allocation2 + $0x64] sm:$0xf] %vm1207, %v1162
        %1234 = vst.msk [vmem:[#allocation2 + $0x68] sm:$0xf] %vm1207, %v1164
        %1235 = vst.msk [vmem:[#allocation2 + $0x6c] sm:$0xf] %vm1207, %v1166
        %1236 = vst.msk [vmem:[#allocation2 + $0x70] sm:$0xf] %vm1207, %v1168
        %1237 = vst.msk [vmem:[#allocation2 + $0x74] sm:$0xf] %vm1207, %v1170
        %1238 = vst.msk [vmem:[#allocation2 + $0x78] sm:$0xf] %vm1207, %v1172
        %1239 = vst.msk [vmem:[#allocation2 + $0x7c] sm:$0xf] %vm1207, %v1174
        %s1240 = scalar_lea.vmem %s247, 12
        %v1241 = vld [vmem:[%s1240] sm:$0xf]
        %v1242 = vld [vmem:[%s1240 + $0x4] sm:$0xf]
        %v1243 = vld [vmem:[%s1240 + $0x8] sm:$0x1]
        %v1244 = vld [vmem:[%s1240 + $0xc] sm:$0xf]
        %v1245 = vld [vmem:[%s1240 + $0x10] sm:$0xf]
        %v1246 = vld [vmem:[%s1240 + $0x14] sm:$0x1]
        %v1247 = vld [vmem:[%s1240 + $0x18] sm:$0xf]
        %v1248 = vld [vmem:[%s1240 + $0x1c] sm:$0xf]
        %v1249 = vld [vmem:[%s1240 + $0x20] sm:$0x1]
        %v1250 = vld [vmem:[%s1240 + $0x24] sm:$0xf]
        %v1251 = vld [vmem:[%s1240 + $0x28] sm:$0xf]
        %v1252 = vld [vmem:[%s1240 + $0x2c] sm:$0x1]
        %v1253 = vld [vmem:[%s1240 + $0x30] sm:$0xf]
        %v1254 = vld [vmem:[%s1240 + $0x34] sm:$0xf]
        %v1255 = vld [vmem:[%s1240 + $0x38] sm:$0x1]
        %v1256 = vld [vmem:[%s1240 + $0x3c] sm:$0xf]
        %v1257 = vld [vmem:[%s1240 + $0x40] sm:$0xf]
        %v1258 = vld [vmem:[%s1240 + $0x44] sm:$0x1]
        %v1259 = vld [vmem:[%s1240 + $0x48] sm:$0xf]
        %v1260 = vld [vmem:[%s1240 + $0x4c] sm:$0xf]
        %v1261 = vld [vmem:[%s1240 + $0x50] sm:$0x1]
        %v1262 = vld [vmem:[%s1240 + $0x54] sm:$0xf]
        %v1263 = vld [vmem:[%s1240 + $0x58] sm:$0xf]
        %v1264 = vld [vmem:[%s1240 + $0x5c] sm:$0x1]
        %v1265 = vld [vmem:[%s1240 + $0x60] sm:$0xf]
        %v1266 = vld [vmem:[%s1240 + $0x64] sm:$0xf]
        %v1267 = vld [vmem:[%s1240 + $0x68] sm:$0x1]
        %v1268 = vld [vmem:[%s1240 + $0x6c] sm:$0xf]
        %v1269 = vld [vmem:[%s1240 + $0x70] sm:$0xf]
        %v1270 = vld [vmem:[%s1240 + $0x74] sm:$0x1]
        %v1271 = vld [vmem:[%s1240 + $0x78] sm:$0xf]
        %v1272 = vld [vmem:[%s1240 + $0x7c] sm:$0xf]
        %v1273 = vld [vmem:[%s1240 + $0x80] sm:$0x1]
        %v1274 = vld [vmem:[%s1240 + $0x84] sm:$0xf]
        %v1275 = vld [vmem:[%s1240 + $0x88] sm:$0xf]
        %v1276 = vld [vmem:[%s1240 + $0x8c] sm:$0x1]
        %v1277 = vld [vmem:[%s1240 + $0x90] sm:$0xf]
        %v1278 = vld [vmem:[%s1240 + $0x94] sm:$0xf]
        %v1279 = vld [vmem:[%s1240 + $0x98] sm:$0x1]
        %v1280 = vld [vmem:[%s1240 + $0x9c] sm:$0xf]
        %v1281 = vld [vmem:[%s1240 + $0xa0] sm:$0xf]
        %v1282 = vld [vmem:[%s1240 + $0xa4] sm:$0x1]
        %v1283 = vld [vmem:[%s1240 + $0xa8] sm:$0xf]
        %v1284 = vld [vmem:[%s1240 + $0xac] sm:$0xf]
        %v1285 = vld [vmem:[%s1240 + $0xb0] sm:$0x1]
        %v1286 = vld [vmem:[%s1240 + $0xb4] sm:$0xf]
        %v1287 = vld [vmem:[%s1240 + $0xb8] sm:$0xf]
        %v1288 = vld [vmem:[%s1240 + $0xbc] sm:$0x1]
        %v1289 = vunpack.c.l.bf16 %v1241
        %v1290 = vunpack.c.l.bf16 %v1242
        %v1291 = vunpack.c.l.bf16 %v1243
        %v1292 = vunpack.c.l.bf16 %v1244
        %v1293 = vunpack.c.l.bf16 %v1245
        %v1294 = vunpack.c.l.bf16 %v1246
        %v1295 = vunpack.c.l.bf16 %v1247
        %v1296 = vunpack.c.l.bf16 %v1248
        %v1297 = vunpack.c.l.bf16 %v1249
        %v1298 = vunpack.c.l.bf16 %v1250
        %v1299 = vunpack.c.l.bf16 %v1251
        %v1300 = vunpack.c.l.bf16 %v1252
        %v1301 = vunpack.c.l.bf16 %v1253
        %v1302 = vunpack.c.l.bf16 %v1254
        %v1303 = vunpack.c.l.bf16 %v1255
        %v1304 = vunpack.c.l.bf16 %v1256
        %v1305 = vunpack.c.l.bf16 %v1257
        %v1306 = vunpack.c.l.bf16 %v1258
        %v1307 = vunpack.c.l.bf16 %v1259
        %v1308 = vunpack.c.l.bf16 %v1260
        %v1309 = vunpack.c.l.bf16 %v1261
        %v1310 = vunpack.c.l.bf16 %v1262
        %v1311 = vunpack.c.l.bf16 %v1263
        %v1312 = vunpack.c.l.bf16 %v1264
        %v1313 = vunpack.c.l.bf16 %v1265
        %v1314 = vunpack.c.l.bf16 %v1266
        %v1315 = vunpack.c.l.bf16 %v1267
        %v1316 = vunpack.c.l.bf16 %v1268
        %v1317 = vunpack.c.l.bf16 %v1269
        %v1318 = vunpack.c.l.bf16 %v1270
        %v1319 = vunpack.c.l.bf16 %v1271
        %v1320 = vunpack.c.l.bf16 %v1272
        %v1321 = vunpack.c.l.bf16 %v1273
        %v1322 = vunpack.c.l.bf16 %v1274
        %v1323 = vunpack.c.l.bf16 %v1275
        %v1324 = vunpack.c.l.bf16 %v1276
        %v1325 = vunpack.c.l.bf16 %v1277
        %v1326 = vunpack.c.l.bf16 %v1278
        %v1327 = vunpack.c.l.bf16 %v1279
        %v1328 = vunpack.c.l.bf16 %v1280
        %v1329 = vunpack.c.l.bf16 %v1281
        %v1330 = vunpack.c.l.bf16 %v1282
        %v1331 = vunpack.c.l.bf16 %v1283
        %v1332 = vunpack.c.l.bf16 %v1284
        %v1333 = vunpack.c.l.bf16 %v1285
        %v1334 = vunpack.c.l.bf16 %v1286
        %v1335 = vunpack.c.l.bf16 %v1287
        %v1336 = vunpack.c.l.bf16 %v1288
        %v1337 = vpack.c.bf16 %v1290, %v1289
        %v1338 = vpack.c.bf16 %v1293, %v1292
        %v1339 = vpack.c.bf16 %v1296, %v1295
        %v1340 = vpack.c.bf16 %v1299, %v1298
        %v1341 = vpack.c.bf16 %v1302, %v1301
        %v1342 = vpack.c.bf16 %v1305, %v1304
        %v1343 = vpack.c.bf16 %v1308, %v1307
        %v1344 = vpack.c.bf16 %v1311, %v1310
        %v1345 = vpack.c.bf16 %v1314, %v1313
        %v1346 = vpack.c.bf16 %v1317, %v1316
        %v1347 = vpack.c.bf16 %v1320, %v1319
        %v1348 = vpack.c.bf16 %v1323, %v1322
        %v1349 = vpack.c.bf16 %v1326, %v1325
        %v1350 = vpack.c.bf16 %v1329, %v1328
        %v1351 = vpack.c.bf16 %v1332, %v1331
        %v1352 = vpack.c.bf16 %v1335, %v1334
        %v1369 = vunpack.c.l.b16 %v1337
        %v1370 = vunpack.c.h.b16 %v1337
        %v1371 = vunpack.c.l.b16 %v1338
        %v1372 = vunpack.c.h.b16 %v1338
        %v1373 = vunpack.c.l.b16 %v1339
        %v1374 = vunpack.c.h.b16 %v1339
        %v1375 = vunpack.c.l.b16 %v1340
        %v1376 = vunpack.c.h.b16 %v1340
        %v1377 = vunpack.c.l.b16 %v1341
        %v1378 = vunpack.c.h.b16 %v1341
        %v1379 = vunpack.c.l.b16 %v1342
        %v1380 = vunpack.c.h.b16 %v1342
        %v1381 = vunpack.c.l.b16 %v1343
        %v1382 = vunpack.c.h.b16 %v1343
        %v1383 = vunpack.c.l.b16 %v1344
        %v1384 = vunpack.c.h.b16 %v1344
        %v1385 = vunpack.c.l.b16 %v1345
        %v1386 = vunpack.c.h.b16 %v1345
        %v1387 = vunpack.c.l.b16 %v1346
        %v1388 = vunpack.c.h.b16 %v1346
        %v1389 = vunpack.c.l.b16 %v1347
        %v1390 = vunpack.c.h.b16 %v1347
        %v1391 = vunpack.c.l.b16 %v1348
        %v1392 = vunpack.c.h.b16 %v1348
        %v1393 = vunpack.c.l.b16 %v1349
        %v1394 = vunpack.c.h.b16 %v1349
        %v1395 = vunpack.c.l.b16 %v1350
        %v1396 = vunpack.c.h.b16 %v1350
        %v1397 = vunpack.c.l.b16 %v1351
        %v1398 = vunpack.c.h.b16 %v1351
        %v1399 = vunpack.c.l.b16 %v1352
        %v1400 = vunpack.c.h.b16 %v1352
        %v1401 = vpack.c.b16 %v1369, %v1369
        %v1402 = vpack.c.b16 %v1370, %v1370
        %v1403 = vpack.c.b16 %v1371, %v1371
        %v1404 = vpack.c.b16 %v1372, %v1372
        %v1405 = vpack.c.b16 %v1373, %v1373
        %v1406 = vpack.c.b16 %v1374, %v1374
        %v1407 = vpack.c.b16 %v1375, %v1375
        %v1408 = vpack.c.b16 %v1376, %v1376
        %v1409 = vpack.c.b16 %v1377, %v1377
        %v1410 = vpack.c.b16 %v1378, %v1378
        %v1411 = vpack.c.b16 %v1379, %v1379
        %v1412 = vpack.c.b16 %v1380, %v1380
        %v1413 = vpack.c.b16 %v1381, %v1381
        %v1414 = vpack.c.b16 %v1382, %v1382
        %v1415 = vpack.c.b16 %v1383, %v1383
        %v1416 = vpack.c.b16 %v1384, %v1384
        %v1417 = vpack.c.b16 %v1385, %v1385
        %v1418 = vpack.c.b16 %v1386, %v1386
        %v1419 = vpack.c.b16 %v1387, %v1387
        %v1420 = vpack.c.b16 %v1388, %v1388
        %v1421 = vpack.c.b16 %v1389, %v1389
        %v1422 = vpack.c.b16 %v1390, %v1390
        %v1423 = vpack.c.b16 %v1391, %v1391
        %v1424 = vpack.c.b16 %v1392, %v1392
        %v1425 = vpack.c.b16 %v1393, %v1393
        %v1426 = vpack.c.b16 %v1394, %v1394
        %v1427 = vpack.c.b16 %v1395, %v1395
        %v1428 = vpack.c.b16 %v1396, %v1396
        %v1429 = vpack.c.b16 %v1397, %v1397
        %v1430 = vpack.c.b16 %v1398, %v1398
        %v1431 = vpack.c.b16 %v1399, %v1399
        %v1432 = vpack.c.b16 %v1400, %v1400
        %1433 = vrot.lane.b32.xlu0 %v1401, 12
        %v1434 = vpop.permute.xlu0 %1433
        %1435 = vrot.lane.b32.xlu0 %v1402, 12
        %v1436 = vpop.permute.xlu0 %1435
        %1437 = vrot.lane.b32.xlu0 %v1403, 12
        %v1438 = vpop.permute.xlu0 %1437
        %1439 = vrot.lane.b32.xlu0 %v1404, 12
        %v1440 = vpop.permute.xlu0 %1439
        %1441 = vrot.lane.b32.xlu0 %v1405, 12
        %v1442 = vpop.permute.xlu0 %1441
        %1443 = vrot.lane.b32.xlu0 %v1406, 12
        %v1444 = vpop.permute.xlu0 %1443
        %1445 = vrot.lane.b32.xlu0 %v1407, 12
        %v1446 = vpop.permute.xlu0 %1445
        %1447 = vrot.lane.b32.xlu0 %v1408, 12
        %v1448 = vpop.permute.xlu0 %1447
        %1449 = vrot.lane.b32.xlu0 %v1409, 12
        %v1450 = vpop.permute.xlu0 %1449
        %1451 = vrot.lane.b32.xlu0 %v1410, 12
        %v1452 = vpop.permute.xlu0 %1451
        %1453 = vrot.lane.b32.xlu0 %v1411, 12
        %v1454 = vpop.permute.xlu0 %1453
        %1455 = vrot.lane.b32.xlu0 %v1412, 12
        %v1456 = vpop.permute.xlu0 %1455
        %1457 = vrot.lane.b32.xlu0 %v1413, 12
        %v1458 = vpop.permute.xlu0 %1457
        %1459 = vrot.lane.b32.xlu0 %v1414, 12
        %v1460 = vpop.permute.xlu0 %1459
        %1461 = vrot.lane.b32.xlu0 %v1415, 12
        %v1462 = vpop.permute.xlu0 %1461
        %1463 = vrot.lane.b32.xlu0 %v1416, 12
        %v1464 = vpop.permute.xlu0 %1463
        %1465 = vrot.lane.b32.xlu0 %v1417, 12
        %v1466 = vpop.permute.xlu0 %1465
        %1467 = vrot.lane.b32.xlu0 %v1418, 12
        %v1468 = vpop.permute.xlu0 %1467
        %1469 = vrot.lane.b32.xlu0 %v1419, 12
        %v1470 = vpop.permute.xlu0 %1469
        %1471 = vrot.lane.b32.xlu0 %v1420, 12
        %v1472 = vpop.permute.xlu0 %1471
        %1473 = vrot.lane.b32.xlu0 %v1421, 12
        %v1474 = vpop.permute.xlu0 %1473
        %1475 = vrot.lane.b32.xlu0 %v1422, 12
        %v1476 = vpop.permute.xlu0 %1475
        %1477 = vrot.lane.b32.xlu0 %v1423, 12
        %v1478 = vpop.permute.xlu0 %1477
        %1479 = vrot.lane.b32.xlu0 %v1424, 12
        %v1480 = vpop.permute.xlu0 %1479
        %1481 = vrot.lane.b32.xlu0 %v1425, 12
        %v1482 = vpop.permute.xlu0 %1481
        %1483 = vrot.lane.b32.xlu0 %v1426, 12
        %v1484 = vpop.permute.xlu0 %1483
        %1485 = vrot.lane.b32.xlu0 %v1427, 12
        %v1486 = vpop.permute.xlu0 %1485
        %1487 = vrot.lane.b32.xlu0 %v1428, 12
        %v1488 = vpop.permute.xlu0 %1487
        %1489 = vrot.lane.b32.xlu0 %v1429, 12
        %v1490 = vpop.permute.xlu0 %1489
        %1491 = vrot.lane.b32.xlu0 %v1430, 12
        %v1492 = vpop.permute.xlu0 %1491
        %1493 = vrot.lane.b32.xlu0 %v1431, 12
        %v1494 = vpop.permute.xlu0 %1493
        %1495 = vrot.lane.b32.xlu0 %v1432, 12
        %v1496 = vpop.permute.xlu0 %1495
        %vm1529 = vcmask 126048
        %1530 = vst.msk [vmem:[#allocation2] sm:$0xf] %vm1529, %v1434
        %1531 = vst.msk [vmem:[#allocation2 + $0x4] sm:$0xf] %vm1529, %v1436
        %1532 = vst.msk [vmem:[#allocation2 + $0x8] sm:$0xf] %vm1529, %v1438
        %1533 = vst.msk [vmem:[#allocation2 + $0xc] sm:$0xf] %vm1529, %v1440
        %1534 = vst.msk [vmem:[#allocation2 + $0x10] sm:$0xf] %vm1529, %v1442
        %1535 = vst.msk [vmem:[#allocation2 + $0x14] sm:$0xf] %vm1529, %v1444
        %1536 = vst.msk [vmem:[#allocation2 + $0x18] sm:$0xf] %vm1529, %v1446
        %1537 = vst.msk [vmem:[#allocation2 + $0x1c] sm:$0xf] %vm1529, %v1448
        %1538 = vst.msk [vmem:[#allocation2 + $0x20] sm:$0xf] %vm1529, %v1450
        %1539 = vst.msk [vmem:[#allocation2 + $0x24] sm:$0xf] %vm1529, %v1452
        %1540 = vst.msk [vmem:[#allocation2 + $0x28] sm:$0xf] %vm1529, %v1454
        %1541 = vst.msk [vmem:[#allocation2 + $0x2c] sm:$0xf] %vm1529, %v1456
        %1542 = vst.msk [vmem:[#allocation2 + $0x30] sm:$0xf] %vm1529, %v1458
        %1543 = vst.msk [vmem:[#allocation2 + $0x34] sm:$0xf] %vm1529, %v1460
        %1544 = vst.msk [vmem:[#allocation2 + $0x38] sm:$0xf] %vm1529, %v1462
        %1545 = vst.msk [vmem:[#allocation2 + $0x3c] sm:$0xf] %vm1529, %v1464
        %1546 = vst.msk [vmem:[#allocation2 + $0x40] sm:$0xf] %vm1529, %v1466
        %1547 = vst.msk [vmem:[#allocation2 + $0x44] sm:$0xf] %vm1529, %v1468
        %1548 = vst.msk [vmem:[#allocation2 + $0x48] sm:$0xf] %vm1529, %v1470
        %1549 = vst.msk [vmem:[#allocation2 + $0x4c] sm:$0xf] %vm1529, %v1472
        %1550 = vst.msk [vmem:[#allocation2 + $0x50] sm:$0xf] %vm1529, %v1474
        %1551 = vst.msk [vmem:[#allocation2 + $0x54] sm:$0xf] %vm1529, %v1476
        %1552 = vst.msk [vmem:[#allocation2 + $0x58] sm:$0xf] %vm1529, %v1478
        %1553 = vst.msk [vmem:[#allocation2 + $0x5c] sm:$0xf] %vm1529, %v1480
        %1554 = vst.msk [vmem:[#allocation2 + $0x60] sm:$0xf] %vm1529, %v1482
        %1555 = vst.msk [vmem:[#allocation2 + $0x64] sm:$0xf] %vm1529, %v1484
        %1556 = vst.msk [vmem:[#allocation2 + $0x68] sm:$0xf] %vm1529, %v1486
        %1557 = vst.msk [vmem:[#allocation2 + $0x6c] sm:$0xf] %vm1529, %v1488
        %1558 = vst.msk [vmem:[#allocation2 + $0x70] sm:$0xf] %vm1529, %v1490
        %1559 = vst.msk [vmem:[#allocation2 + $0x74] sm:$0xf] %vm1529, %v1492
        %1560 = vst.msk [vmem:[#allocation2 + $0x78] sm:$0xf] %vm1529, %v1494
        %1561 = vst.msk [vmem:[#allocation2 + $0x7c] sm:$0xf] %vm1529, %v1496
        %v1610 = vrot.slane %v1289, 1
        %v1611 = vrot.slane %v1290, 1
        %v1612 = vsel %vm564, %v1610, %v1611
        %v1613 = vrot.slane %v1291, 1
        %v1614 = vsel %vm564, %v1611, %v1613
        %v1615 = vrot.slane %v1292, 1
        %v1616 = vrot.slane %v1293, 1
        %v1617 = vsel %vm564, %v1615, %v1616
        %v1618 = vrot.slane %v1294, 1
        %v1619 = vsel %vm564, %v1616, %v1618
        %v1620 = vrot.slane %v1295, 1
        %v1621 = vrot.slane %v1296, 1
        %v1622 = vsel %vm564, %v1620, %v1621
        %v1623 = vrot.slane %v1297, 1
        %v1624 = vsel %vm564, %v1621, %v1623
        %v1625 = vrot.slane %v1298, 1
        %v1626 = vrot.slane %v1299, 1
        %v1627 = vsel %vm564, %v1625, %v1626
        %v1628 = vrot.slane %v1300, 1
        %v1629 = vsel %vm564, %v1626, %v1628
        %v1630 = vrot.slane %v1301, 1
        %v1631 = vrot.slane %v1302, 1
        %v1632 = vsel %vm564, %v1630, %v1631
        %v1633 = vrot.slane %v1303, 1
        %v1634 = vsel %vm564, %v1631, %v1633
        %v1635 = vrot.slane %v1304, 1
        %v1636 = vrot.slane %v1305, 1
        %v1637 = vsel %vm564, %v1635, %v1636
        %v1638 = vrot.slane %v1306, 1
        %v1639 = vsel %vm564, %v1636, %v1638
        %v1640 = vrot.slane %v1307, 1
        %v1641 = vrot.slane %v1308, 1
        %v1642 = vsel %vm564, %v1640, %v1641
        %v1643 = vrot.slane %v1309, 1
        %v1644 = vsel %vm564, %v1641, %v1643
        %v1645 = vrot.slane %v1310, 1
        %v1646 = vrot.slane %v1311, 1
        %v1647 = vsel %vm564, %v1645, %v1646
        %v1648 = vrot.slane %v1312, 1
        %v1649 = vsel %vm564, %v1646, %v1648
        %v1650 = vrot.slane %v1313, 1
        %v1651 = vrot.slane %v1314, 1
        %v1652 = vsel %vm564, %v1650, %v1651
        %v1653 = vrot.slane %v1315, 1
        %v1654 = vsel %vm564, %v1651, %v1653
        %v1655 = vrot.slane %v1316, 1
        %v1656 = vrot.slane %v1317, 1
        %v1657 = vsel %vm564, %v1655, %v1656
        %v1658 = vrot.slane %v1318, 1
        %v1659 = vsel %vm564, %v1656, %v1658
        %v1660 = vrot.slane %v1319, 1
        %v1661 = vrot.slane %v1320, 1
        %v1662 = vsel %vm564, %v1660, %v1661
        %v1663 = vrot.slane %v1321, 1
        %v1664 = vsel %vm564, %v1661, %v1663
        %v1665 = vrot.slane %v1322, 1
        %v1666 = vrot.slane %v1323, 1
        %v1667 = vsel %vm564, %v1665, %v1666
        %v1668 = vrot.slane %v1324, 1
        %v1669 = vsel %vm564, %v1666, %v1668
        %v1670 = vrot.slane %v1325, 1
        %v1671 = vrot.slane %v1326, 1
        %v1672 = vsel %vm564, %v1670, %v1671
        %v1673 = vrot.slane %v1327, 1
        %v1674 = vsel %vm564, %v1671, %v1673
        %v1675 = vrot.slane %v1328, 1
        %v1676 = vrot.slane %v1329, 1
        %v1677 = vsel %vm564, %v1675, %v1676
        %v1678 = vrot.slane %v1330, 1
        %v1679 = vsel %vm564, %v1676, %v1678
        %v1680 = vrot.slane %v1331, 1
        %v1681 = vrot.slane %v1332, 1
        %v1682 = vsel %vm564, %v1680, %v1681
        %v1683 = vrot.slane %v1333, 1
        %v1684 = vsel %vm564, %v1681, %v1683
        %v1685 = vrot.slane %v1334, 1
        %v1686 = vrot.slane %v1335, 1
        %v1687 = vsel %vm564, %v1685, %v1686
        %v1688 = vrot.slane %v1336, 1
        %v1689 = vsel %vm564, %v1686, %v1688
        %v1722 = vpack.c.bf16 %v1614, %v1612
        %v1723 = vpack.c.bf16 %v1619, %v1617
        %v1724 = vpack.c.bf16 %v1624, %v1622
        %v1725 = vpack.c.bf16 %v1629, %v1627
        %v1726 = vpack.c.bf16 %v1634, %v1632
        %v1727 = vpack.c.bf16 %v1639, %v1637
        %v1728 = vpack.c.bf16 %v1644, %v1642
        %v1729 = vpack.c.bf16 %v1649, %v1647
        %v1730 = vpack.c.bf16 %v1654, %v1652
        %v1731 = vpack.c.bf16 %v1659, %v1657
        %v1732 = vpack.c.bf16 %v1664, %v1662
        %v1733 = vpack.c.bf16 %v1669, %v1667
        %v1734 = vpack.c.bf16 %v1674, %v1672
        %v1735 = vpack.c.bf16 %v1679, %v1677
        %v1736 = vpack.c.bf16 %v1684, %v1682
        %v1737 = vpack.c.bf16 %v1689, %v1687
        %v1754 = vunpack.c.l.b16 %v1722
        %v1755 = vunpack.c.h.b16 %v1722
        %v1756 = vunpack.c.l.b16 %v1723
        %v1757 = vunpack.c.h.b16 %v1723
        %v1758 = vunpack.c.l.b16 %v1724
        %v1759 = vunpack.c.h.b16 %v1724
        %v1760 = vunpack.c.l.b16 %v1725
        %v1761 = vunpack.c.h.b16 %v1725
        %v1762 = vunpack.c.l.b16 %v1726
        %v1763 = vunpack.c.h.b16 %v1726
        %v1764 = vunpack.c.l.b16 %v1727
        %v1765 = vunpack.c.h.b16 %v1727
        %v1766 = vunpack.c.l.b16 %v1728
        %v1767 = vunpack.c.h.b16 %v1728
        %v1768 = vunpack.c.l.b16 %v1729
        %v1769 = vunpack.c.h.b16 %v1729
        %v1770 = vunpack.c.l.b16 %v1730
        %v1771 = vunpack.c.h.b16 %v1730
        %v1772 = vunpack.c.l.b16 %v1731
        %v1773 = vunpack.c.h.b16 %v1731
        %v1774 = vunpack.c.l.b16 %v1732
        %v1775 = vunpack.c.h.b16 %v1732
        %v1776 = vunpack.c.l.b16 %v1733
        %v1777 = vunpack.c.h.b16 %v1733
        %v1778 = vunpack.c.l.b16 %v1734
        %v1779 = vunpack.c.h.b16 %v1734
        %v1780 = vunpack.c.l.b16 %v1735
        %v1781 = vunpack.c.h.b16 %v1735
        %v1782 = vunpack.c.l.b16 %v1736
        %v1783 = vunpack.c.h.b16 %v1736
        %v1784 = vunpack.c.l.b16 %v1737
        %v1785 = vunpack.c.h.b16 %v1737
        %v1786 = vpack.c.b16 %v1754, %v1754
        %v1787 = vpack.c.b16 %v1755, %v1755
        %v1788 = vpack.c.b16 %v1756, %v1756
        %v1789 = vpack.c.b16 %v1757, %v1757
        %v1790 = vpack.c.b16 %v1758, %v1758
        %v1791 = vpack.c.b16 %v1759, %v1759
        %v1792 = vpack.c.b16 %v1760, %v1760
        %v1793 = vpack.c.b16 %v1761, %v1761
        %v1794 = vpack.c.b16 %v1762, %v1762
        %v1795 = vpack.c.b16 %v1763, %v1763
        %v1796 = vpack.c.b16 %v1764, %v1764
        %v1797 = vpack.c.b16 %v1765, %v1765
        %v1798 = vpack.c.b16 %v1766, %v1766
        %v1799 = vpack.c.b16 %v1767, %v1767
        %v1800 = vpack.c.b16 %v1768, %v1768
        %v1801 = vpack.c.b16 %v1769, %v1769
        %v1802 = vpack.c.b16 %v1770, %v1770
        %v1803 = vpack.c.b16 %v1771, %v1771
        %v1804 = vpack.c.b16 %v1772, %v1772
        %v1805 = vpack.c.b16 %v1773, %v1773
        %v1806 = vpack.c.b16 %v1774, %v1774
        %v1807 = vpack.c.b16 %v1775, %v1775
        %v1808 = vpack.c.b16 %v1776, %v1776
        %v1809 = vpack.c.b16 %v1777, %v1777
        %v1810 = vpack.c.b16 %v1778, %v1778
        %v1811 = vpack.c.b16 %v1779, %v1779
        %v1812 = vpack.c.b16 %v1780, %v1780
        %v1813 = vpack.c.b16 %v1781, %v1781
        %v1814 = vpack.c.b16 %v1782, %v1782
        %v1815 = vpack.c.b16 %v1783, %v1783
        %v1816 = vpack.c.b16 %v1784, %v1784
        %v1817 = vpack.c.b16 %v1785, %v1785
        %1818 = vrot.lane.b32.xlu0 %v1786, 16
        %v1819 = vpop.permute.xlu0 %1818
        %1820 = vrot.lane.b32.xlu0 %v1787, 16
        %v1821 = vpop.permute.xlu0 %1820
        %1822 = vrot.lane.b32.xlu0 %v1788, 16
        %v1823 = vpop.permute.xlu0 %1822
        %1824 = vrot.lane.b32.xlu0 %v1789, 16
        %v1825 = vpop.permute.xlu0 %1824
        %1826 = vrot.lane.b32.xlu0 %v1790, 16
        %v1827 = vpop.permute.xlu0 %1826
        %1828 = vrot.lane.b32.xlu0 %v1791, 16
        %v1829 = vpop.permute.xlu0 %1828
        %1830 = vrot.lane.b32.xlu0 %v1792, 16
        %v1831 = vpop.permute.xlu0 %1830
        %1832 = vrot.lane.b32.xlu0 %v1793, 16
        %v1833 = vpop.permute.xlu0 %1832
        %1834 = vrot.lane.b32.xlu0 %v1794, 16
        %v1835 = vpop.permute.xlu0 %1834
        %1836 = vrot.lane.b32.xlu0 %v1795, 16
        %v1837 = vpop.permute.xlu0 %1836
        %1838 = vrot.lane.b32.xlu0 %v1796, 16
        %v1839 = vpop.permute.xlu0 %1838
        %1840 = vrot.lane.b32.xlu0 %v1797, 16
        %v1841 = vpop.permute.xlu0 %1840
        %1842 = vrot.lane.b32.xlu0 %v1798, 16
        %v1843 = vpop.permute.xlu0 %1842
        %1844 = vrot.lane.b32.xlu0 %v1799, 16
        %v1845 = vpop.permute.xlu0 %1844
        %1846 = vrot.lane.b32.xlu0 %v1800, 16
        %v1847 = vpop.permute.xlu0 %1846
        %1848 = vrot.lane.b32.xlu0 %v1801, 16
        %v1849 = vpop.permute.xlu0 %1848
        %1850 = vrot.lane.b32.xlu0 %v1802, 16
        %v1851 = vpop.permute.xlu0 %1850
        %1852 = vrot.lane.b32.xlu0 %v1803, 16
        %v1853 = vpop.permute.xlu0 %1852
        %1854 = vrot.lane.b32.xlu0 %v1804, 16
        %v1855 = vpop.permute.xlu0 %1854
        %1856 = vrot.lane.b32.xlu0 %v1805, 16
        %v1857 = vpop.permute.xlu0 %1856
        %1858 = vrot.lane.b32.xlu0 %v1806, 16
        %v1859 = vpop.permute.xlu0 %1858
        %1860 = vrot.lane.b32.xlu0 %v1807, 16
        %v1861 = vpop.permute.xlu0 %1860
        %1862 = vrot.lane.b32.xlu0 %v1808, 16
        %v1863 = vpop.permute.xlu0 %1862
        %1864 = vrot.lane.b32.xlu0 %v1809, 16
        %v1865 = vpop.permute.xlu0 %1864
        %1866 = vrot.lane.b32.xlu0 %v1810, 16
        %v1867 = vpop.permute.xlu0 %1866
        %1868 = vrot.lane.b32.xlu0 %v1811, 16
        %v1869 = vpop.permute.xlu0 %1868
        %1870 = vrot.lane.b32.xlu0 %v1812, 16
        %v1871 = vpop.permute.xlu0 %1870
        %1872 = vrot.lane.b32.xlu0 %v1813, 16
        %v1873 = vpop.permute.xlu0 %1872
        %1874 = vrot.lane.b32.xlu0 %v1814, 16
        %v1875 = vpop.permute.xlu0 %1874
        %1876 = vrot.lane.b32.xlu0 %v1815, 16
        %v1877 = vpop.permute.xlu0 %1876
        %1878 = vrot.lane.b32.xlu0 %v1816, 16
        %v1879 = vpop.permute.xlu0 %1878
        %1880 = vrot.lane.b32.xlu0 %v1817, 16
        %v1881 = vpop.permute.xlu0 %1880
        %vm1914 = vcmask 158848
        %1915 = vst.msk [vmem:[#allocation2] sm:$0xf] %vm1914, %v1819
        %1916 = vst.msk [vmem:[#allocation2 + $0x4] sm:$0xf] %vm1914, %v1821
        %1917 = vst.msk [vmem:[#allocation2 + $0x8] sm:$0xf] %vm1914, %v1823
        %1918 = vst.msk [vmem:[#allocation2 + $0xc] sm:$0xf] %vm1914, %v1825
        %1919 = vst.msk [vmem:[#allocation2 + $0x10] sm:$0xf] %vm1914, %v1827
        %1920 = vst.msk [vmem:[#allocation2 + $0x14] sm:$0xf] %vm1914, %v1829
        %1921 = vst.msk [vmem:[#allocation2 + $0x18] sm:$0xf] %vm1914, %v1831
        %1922 = vst.msk [vmem:[#allocation2 + $0x1c] sm:$0xf] %vm1914, %v1833
        %1923 = vst.msk [vmem:[#allocation2 + $0x20] sm:$0xf] %vm1914, %v1835
        %1924 = vst.msk [vmem:[#allocation2 + $0x24] sm:$0xf] %vm1914, %v1837
        %1925 = vst.msk [vmem:[#allocation2 + $0x28] sm:$0xf] %vm1914, %v1839
        %1926 = vst.msk [vmem:[#allocation2 + $0x2c] sm:$0xf] %vm1914, %v1841
        %1927 = vst.msk [vmem:[#allocation2 + $0x30] sm:$0xf] %vm1914, %v1843
        %1928 = vst.msk [vmem:[#allocation2 + $0x34] sm:$0xf] %vm1914, %v1845
        %1929 = vst.msk [vmem:[#allocation2 + $0x38] sm:$0xf] %vm1914, %v1847
        %1930 = vst.msk [vmem:[#allocation2 + $0x3c] sm:$0xf] %vm1914, %v1849
        %1931 = vst.msk [vmem:[#allocation2 + $0x40] sm:$0xf] %vm1914, %v1851
        %1932 = vst.msk [vmem:[#allocation2 + $0x44] sm:$0xf] %vm1914, %v1853
        %1933 = vst.msk [vmem:[#allocation2 + $0x48] sm:$0xf] %vm1914, %v1855
        %1934 = vst.msk [vmem:[#allocation2 + $0x4c] sm:$0xf] %vm1914, %v1857
        %1935 = vst.msk [vmem:[#allocation2 + $0x50] sm:$0xf] %vm1914, %v1859
        %1936 = vst.msk [vmem:[#allocation2 + $0x54] sm:$0xf] %vm1914, %v1861
        %1937 = vst.msk [vmem:[#allocation2 + $0x58] sm:$0xf] %vm1914, %v1863
        %1938 = vst.msk [vmem:[#allocation2 + $0x5c] sm:$0xf] %vm1914, %v1865
        %1939 = vst.msk [vmem:[#allocation2 + $0x60] sm:$0xf] %vm1914, %v1867
        %1940 = vst.msk [vmem:[#allocation2 + $0x64] sm:$0xf] %vm1914, %v1869
        %1941 = vst.msk [vmem:[#allocation2 + $0x68] sm:$0xf] %vm1914, %v1871
        %1942 = vst.msk [vmem:[#allocation2 + $0x6c] sm:$0xf] %vm1914, %v1873
        %1943 = vst.msk [vmem:[#allocation2 + $0x70] sm:$0xf] %vm1914, %v1875
        %1944 = vst.msk [vmem:[#allocation2 + $0x74] sm:$0xf] %vm1914, %v1877
        %1945 = vst.msk [vmem:[#allocation2 + $0x78] sm:$0xf] %vm1914, %v1879
        %1946 = vst.msk [vmem:[#allocation2 + $0x7c] sm:$0xf] %vm1914, %v1881
        %v1947 = vrot.slane %v1289, 2
        %v1948 = vrot.slane %v1290, 2
        %v1949 = vsel %vm902, %v1947, %v1948
        %v1950 = vrot.slane %v1291, 2
        %v1951 = vsel %vm902, %v1948, %v1950
        %v1952 = vrot.slane %v1292, 2
        %v1953 = vrot.slane %v1293, 2
        %v1954 = vsel %vm902, %v1952, %v1953
        %v1955 = vrot.slane %v1294, 2
        %v1956 = vsel %vm902, %v1953, %v1955
        %v1957 = vrot.slane %v1295, 2
        %v1958 = vrot.slane %v1296, 2
        %v1959 = vsel %vm902, %v1957, %v1958
        %v1960 = vrot.slane %v1297, 2
        %v1961 = vsel %vm902, %v1958, %v1960
        %v1962 = vrot.slane %v1298, 2
        %v1963 = vrot.slane %v1299, 2
        %v1964 = vsel %vm902, %v1962, %v1963
        %v1965 = vrot.slane %v1300, 2
        %v1966 = vsel %vm902, %v1963, %v1965
        %v1967 = vrot.slane %v1301, 2
        %v1968 = vrot.slane %v1302, 2
        %v1969 = vsel %vm902, %v1967, %v1968
        %v1970 = vrot.slane %v1303, 2
        %v1971 = vsel %vm902, %v1968, %v1970
        %v1972 = vrot.slane %v1304, 2
        %v1973 = vrot.slane %v1305, 2
        %v1974 = vsel %vm902, %v1972, %v1973
        %v1975 = vrot.slane %v1306, 2
        %v1976 = vsel %vm902, %v1973, %v1975
        %v1977 = vrot.slane %v1307, 2
        %v1978 = vrot.slane %v1308, 2
        %v1979 = vsel %vm902, %v1977, %v1978
        %v1980 = vrot.slane %v1309, 2
        %v1981 = vsel %vm902, %v1978, %v1980
        %v1982 = vrot.slane %v1310, 2
        %v1983 = vrot.slane %v1311, 2
        %v1984 = vsel %vm902, %v1982, %v1983
        %v1985 = vrot.slane %v1312, 2
        %v1986 = vsel %vm902, %v1983, %v1985
        %v1987 = vrot.slane %v1313, 2
        %v1988 = vrot.slane %v1314, 2
        %v1989 = vsel %vm902, %v1987, %v1988
        %v1990 = vrot.slane %v1315, 2
        %v1991 = vsel %vm902, %v1988, %v1990
        %v1992 = vrot.slane %v1316, 2
        %v1993 = vrot.slane %v1317, 2
        %v1994 = vsel %vm902, %v1992, %v1993
        %v1995 = vrot.slane %v1318, 2
        %v1996 = vsel %vm902, %v1993, %v1995
        %v1997 = vrot.slane %v1319, 2
        %v1998 = vrot.slane %v1320, 2
        %v1999 = vsel %vm902, %v1997, %v1998
        %v2000 = vrot.slane %v1321, 2
        %v2001 = vsel %vm902, %v1998, %v2000
        %v2002 = vrot.slane %v1322, 2
        %v2003 = vrot.slane %v1323, 2
        %v2004 = vsel %vm902, %v2002, %v2003
        %v2005 = vrot.slane %v1324, 2
        %v2006 = vsel %vm902, %v2003, %v2005
        %v2007 = vrot.slane %v1325, 2
        %v2008 = vrot.slane %v1326, 2
        %v2009 = vsel %vm902, %v2007, %v2008
        %v2010 = vrot.slane %v1327, 2
        %v2011 = vsel %vm902, %v2008, %v2010
        %v2012 = vrot.slane %v1328, 2
        %v2013 = vrot.slane %v1329, 2
        %v2014 = vsel %vm902, %v2012, %v2013
        %v2015 = vrot.slane %v1330, 2
        %v2016 = vsel %vm902, %v2013, %v2015
        %v2017 = vrot.slane %v1331, 2
        %v2018 = vrot.slane %v1332, 2
        %v2019 = vsel %vm902, %v2017, %v2018
        %v2020 = vrot.slane %v1333, 2
        %v2021 = vsel %vm902, %v2018, %v2020
        %v2022 = vrot.slane %v1334, 2
        %v2023 = vrot.slane %v1335, 2
        %v2024 = vsel %vm902, %v2022, %v2023
        %v2025 = vrot.slane %v1336, 2
        %v2026 = vsel %vm902, %v2023, %v2025
        %v2059 = vpack.c.bf16 %v1951, %v1949
        %v2060 = vpack.c.bf16 %v1956, %v1954
        %v2061 = vpack.c.bf16 %v1961, %v1959
        %v2062 = vpack.c.bf16 %v1966, %v1964
        %v2063 = vpack.c.bf16 %v1971, %v1969
        %v2064 = vpack.c.bf16 %v1976, %v1974
        %v2065 = vpack.c.bf16 %v1981, %v1979
        %v2066 = vpack.c.bf16 %v1986, %v1984
        %v2067 = vpack.c.bf16 %v1991, %v1989
        %v2068 = vpack.c.bf16 %v1996, %v1994
        %v2069 = vpack.c.bf16 %v2001, %v1999
        %v2070 = vpack.c.bf16 %v2006, %v2004
        %v2071 = vpack.c.bf16 %v2011, %v2009
        %v2072 = vpack.c.bf16 %v2016, %v2014
        %v2073 = vpack.c.bf16 %v2021, %v2019
        %v2074 = vpack.c.bf16 %v2026, %v2024
        %v2091 = vunpack.c.l.b16 %v2059
        %v2092 = vunpack.c.h.b16 %v2059
        %v2093 = vunpack.c.l.b16 %v2060
        %v2094 = vunpack.c.h.b16 %v2060
        %v2095 = vunpack.c.l.b16 %v2061
        %v2096 = vunpack.c.h.b16 %v2061
        %v2097 = vunpack.c.l.b16 %v2062
        %v2098 = vunpack.c.h.b16 %v2062
        %v2099 = vunpack.c.l.b16 %v2063
        %v2100 = vunpack.c.h.b16 %v2063
        %v2101 = vunpack.c.l.b16 %v2064
        %v2102 = vunpack.c.h.b16 %v2064
        %v2103 = vunpack.c.l.b16 %v2065
        %v2104 = vunpack.c.h.b16 %v2065
        %v2105 = vunpack.c.l.b16 %v2066
        %v2106 = vunpack.c.h.b16 %v2066
        %v2107 = vunpack.c.l.b16 %v2067
        %v2108 = vunpack.c.h.b16 %v2067
        %v2109 = vunpack.c.l.b16 %v2068
        %v2110 = vunpack.c.h.b16 %v2068
        %v2111 = vunpack.c.l.b16 %v2069
        %v2112 = vunpack.c.h.b16 %v2069
        %v2113 = vunpack.c.l.b16 %v2070
        %v2114 = vunpack.c.h.b16 %v2070
        %v2115 = vunpack.c.l.b16 %v2071
        %v2116 = vunpack.c.h.b16 %v2071
        %v2117 = vunpack.c.l.b16 %v2072
        %v2118 = vunpack.c.h.b16 %v2072
        %v2119 = vunpack.c.l.b16 %v2073
        %v2120 = vunpack.c.h.b16 %v2073
        %v2121 = vunpack.c.l.b16 %v2074
        %v2122 = vunpack.c.h.b16 %v2074
        %v2123 = vpack.c.b16 %v2091, %v2091
        %v2124 = vpack.c.b16 %v2092, %v2092
        %v2125 = vpack.c.b16 %v2093, %v2093
        %v2126 = vpack.c.b16 %v2094, %v2094
        %v2127 = vpack.c.b16 %v2095, %v2095
        %v2128 = vpack.c.b16 %v2096, %v2096
        %v2129 = vpack.c.b16 %v2097, %v2097
        %v2130 = vpack.c.b16 %v2098, %v2098
        %v2131 = vpack.c.b16 %v2099, %v2099
        %v2132 = vpack.c.b16 %v2100, %v2100
        %v2133 = vpack.c.b16 %v2101, %v2101
        %v2134 = vpack.c.b16 %v2102, %v2102
        %v2135 = vpack.c.b16 %v2103, %v2103
        %v2136 = vpack.c.b16 %v2104, %v2104
        %v2137 = vpack.c.b16 %v2105, %v2105
        %v2138 = vpack.c.b16 %v2106, %v2106
        %v2139 = vpack.c.b16 %v2107, %v2107
        %v2140 = vpack.c.b16 %v2108, %v2108
        %v2141 = vpack.c.b16 %v2109, %v2109
        %v2142 = vpack.c.b16 %v2110, %v2110
        %v2143 = vpack.c.b16 %v2111, %v2111
        %v2144 = vpack.c.b16 %v2112, %v2112
        %v2145 = vpack.c.b16 %v2113, %v2113
        %v2146 = vpack.c.b16 %v2114, %v2114
        %v2147 = vpack.c.b16 %v2115, %v2115
        %v2148 = vpack.c.b16 %v2116, %v2116
        %v2149 = vpack.c.b16 %v2117, %v2117
        %v2150 = vpack.c.b16 %v2118, %v2118
        %v2151 = vpack.c.b16 %v2119, %v2119
        %v2152 = vpack.c.b16 %v2120, %v2120
        %v2153 = vpack.c.b16 %v2121, %v2121
        %v2154 = vpack.c.b16 %v2122, %v2122
        %2155 = vrot.lane.b32.xlu0 %v2123, 20
        %v2156 = vpop.permute.xlu0 %2155
        %2157 = vrot.lane.b32.xlu0 %v2124, 20
        %v2158 = vpop.permute.xlu0 %2157
        %2159 = vrot.lane.b32.xlu0 %v2125, 20
        %v2160 = vpop.permute.xlu0 %2159
        %2161 = vrot.lane.b32.xlu0 %v2126, 20
        %v2162 = vpop.permute.xlu0 %2161
        %2163 = vrot.lane.b32.xlu0 %v2127, 20
        %v2164 = vpop.permute.xlu0 %2163
        %2165 = vrot.lane.b32.xlu0 %v2128, 20
        %v2166 = vpop.permute.xlu0 %2165
        %2167 = vrot.lane.b32.xlu0 %v2129, 20
        %v2168 = vpop.permute.xlu0 %2167
        %2169 = vrot.lane.b32.xlu0 %v2130, 20
        %v2170 = vpop.permute.xlu0 %2169
        %2171 = vrot.lane.b32.xlu0 %v2131, 20
        %v2172 = vpop.permute.xlu0 %2171
        %2173 = vrot.lane.b32.xlu0 %v2132, 20
        %v2174 = vpop.permute.xlu0 %2173
        %2175 = vrot.lane.b32.xlu0 %v2133, 20
        %v2176 = vpop.permute.xlu0 %2175
        %2177 = vrot.lane.b32.xlu0 %v2134, 20
        %v2178 = vpop.permute.xlu0 %2177
        %2179 = vrot.lane.b32.xlu0 %v2135, 20
        %v2180 = vpop.permute.xlu0 %2179
        %2181 = vrot.lane.b32.xlu0 %v2136, 20
        %v2182 = vpop.permute.xlu0 %2181
        %2183 = vrot.lane.b32.xlu0 %v2137, 20
        %v2184 = vpop.permute.xlu0 %2183
        %2185 = vrot.lane.b32.xlu0 %v2138, 20
        %v2186 = vpop.permute.xlu0 %2185
        %2187 = vrot.lane.b32.xlu0 %v2139, 20
        %v2188 = vpop.permute.xlu0 %2187
        %2189 = vrot.lane.b32.xlu0 %v2140, 20
        %v2190 = vpop.permute.xlu0 %2189
        %2191 = vrot.lane.b32.xlu0 %v2141, 20
        %v2192 = vpop.permute.xlu0 %2191
        %2193 = vrot.lane.b32.xlu0 %v2142, 20
        %v2194 = vpop.permute.xlu0 %2193
        %2195 = vrot.lane.b32.xlu0 %v2143, 20
        %v2196 = vpop.permute.xlu0 %2195
        %2197 = vrot.lane.b32.xlu0 %v2144, 20
        %v2198 = vpop.permute.xlu0 %2197
        %2199 = vrot.lane.b32.xlu0 %v2145, 20
        %v2200 = vpop.permute.xlu0 %2199
        %2201 = vrot.lane.b32.xlu0 %v2146, 20
        %v2202 = vpop.permute.xlu0 %2201
        %2203 = vrot.lane.b32.xlu0 %v2147, 20
        %v2204 = vpop.permute.xlu0 %2203
        %2205 = vrot.lane.b32.xlu0 %v2148, 20
        %v2206 = vpop.permute.xlu0 %2205
        %2207 = vrot.lane.b32.xlu0 %v2149, 20
        %v2208 = vpop.permute.xlu0 %2207
        %2209 = vrot.lane.b32.xlu0 %v2150, 20
        %v2210 = vpop.permute.xlu0 %2209
        %2211 = vrot.lane.b32.xlu0 %v2151, 20
        %v2212 = vpop.permute.xlu0 %2211
        %2213 = vrot.lane.b32.xlu0 %v2152, 20
        %v2214 = vpop.permute.xlu0 %2213
        %2215 = vrot.lane.b32.xlu0 %v2153, 20
        %v2216 = vpop.permute.xlu0 %2215
        %2217 = vrot.lane.b32.xlu0 %v2154, 20
        %v2218 = vpop.permute.xlu0 %2217
        %vm2251 = vcmask 191648
        %2252 = vst.msk [vmem:[#allocation2] sm:$0xf] %vm2251, %v2156
        %2253 = vst.msk [vmem:[#allocation2 + $0x4] sm:$0xf] %vm2251, %v2158
        %2254 = vst.msk [vmem:[#allocation2 + $0x8] sm:$0xf] %vm2251, %v2160
        %2255 = vst.msk [vmem:[#allocation2 + $0xc] sm:$0xf] %vm2251, %v2162
        %2256 = vst.msk [vmem:[#allocation2 + $0x10] sm:$0xf] %vm2251, %v2164
        %2257 = vst.msk [vmem:[#allocation2 + $0x14] sm:$0xf] %vm2251, %v2166
        %2258 = vst.msk [vmem:[#allocation2 + $0x18] sm:$0xf] %vm2251, %v2168
        %2259 = vst.msk [vmem:[#allocation2 + $0x1c] sm:$0xf] %vm2251, %v2170
        %2260 = vst.msk [vmem:[#allocation2 + $0x20] sm:$0xf] %vm2251, %v2172
        %2261 = vst.msk [vmem:[#allocation2 + $0x24] sm:$0xf] %vm2251, %v2174
        %2262 = vst.msk [vmem:[#allocation2 + $0x28] sm:$0xf] %vm2251, %v2176
        %2263 = vst.msk [vmem:[#allocation2 + $0x2c] sm:$0xf] %vm2251, %v2178
        %2264 = vst.msk [vmem:[#allocation2 + $0x30] sm:$0xf] %vm2251, %v2180
        %2265 = vst.msk [vmem:[#allocation2 + $0x34] sm:$0xf] %vm2251, %v2182
        %2266 = vst.msk [vmem:[#allocation2 + $0x38] sm:$0xf] %vm2251, %v2184
        %2267 = vst.msk [vmem:[#allocation2 + $0x3c] sm:$0xf] %vm2251, %v2186
        %2268 = vst.msk [vmem:[#allocation2 + $0x40] sm:$0xf] %vm2251, %v2188
        %2269 = vst.msk [vmem:[#allocation2 + $0x44] sm:$0xf] %vm2251, %v2190
        %2270 = vst.msk [vmem:[#allocation2 + $0x48] sm:$0xf] %vm2251, %v2192
        %2271 = vst.msk [vmem:[#allocation2 + $0x4c] sm:$0xf] %vm2251, %v2194
        %2272 = vst.msk [vmem:[#allocation2 + $0x50] sm:$0xf] %vm2251, %v2196
        %2273 = vst.msk [vmem:[#allocation2 + $0x54] sm:$0xf] %vm2251, %v2198
        %2274 = vst.msk [vmem:[#allocation2 + $0x58] sm:$0xf] %vm2251, %v2200
        %2275 = vst.msk [vmem:[#allocation2 + $0x5c] sm:$0xf] %vm2251, %v2202
        %2276 = vst.msk [vmem:[#allocation2 + $0x60] sm:$0xf] %vm2251, %v2204
        %2277 = vst.msk [vmem:[#allocation2 + $0x64] sm:$0xf] %vm2251, %v2206
        %2278 = vst.msk [vmem:[#allocation2 + $0x68] sm:$0xf] %vm2251, %v2208
        %2279 = vst.msk [vmem:[#allocation2 + $0x6c] sm:$0xf] %vm2251, %v2210
        %2280 = vst.msk [vmem:[#allocation2 + $0x70] sm:$0xf] %vm2251, %v2212
        %2281 = vst.msk [vmem:[#allocation2 + $0x74] sm:$0xf] %vm2251, %v2214
        %2282 = vst.msk [vmem:[#allocation2 + $0x78] sm:$0xf] %vm2251, %v2216
        %2283 = vst.msk [vmem:[#allocation2 + $0x7c] sm:$0xf] %vm2251, %v2218
        %s2284 = scalar_lea.vmem %s247, 24
        %v2285 = vld [vmem:[%s2284] sm:$0xf]
        %v2286 = vld [vmem:[%s2284 + $0x4] sm:$0xf]
        %v2287 = vld [vmem:[%s2284 + $0x8] sm:$0x1]
        %v2288 = vld [vmem:[%s2284 + $0xc] sm:$0xf]
        %v2289 = vld [vmem:[%s2284 + $0x10] sm:$0xf]
        %v2290 = vld [vmem:[%s2284 + $0x14] sm:$0x1]
        %v2291 = vld [vmem:[%s2284 + $0x18] sm:$0xf]
        %v2292 = vld [vmem:[%s2284 + $0x1c] sm:$0xf]
        %v2293 = vld [vmem:[%s2284 + $0x20] sm:$0x1]
        %v2294 = vld [vmem:[%s2284 + $0x24] sm:$0xf]
        %v2295 = vld [vmem:[%s2284 + $0x28] sm:$0xf]
        %v2296 = vld [vmem:[%s2284 + $0x2c] sm:$0x1]
        %v2297 = vld [vmem:[%s2284 + $0x30] sm:$0xf]
        %v2298 = vld [vmem:[%s2284 + $0x34] sm:$0xf]
        %v2299 = vld [vmem:[%s2284 + $0x38] sm:$0x1]
        %v2300 = vld [vmem:[%s2284 + $0x3c] sm:$0xf]
        %v2301 = vld [vmem:[%s2284 + $0x40] sm:$0xf]
        %v2302 = vld [vmem:[%s2284 + $0x44] sm:$0x1]
        %v2303 = vld [vmem:[%s2284 + $0x48] sm:$0xf]
        %v2304 = vld [vmem:[%s2284 + $0x4c] sm:$0xf]
        %v2305 = vld [vmem:[%s2284 + $0x50] sm:$0x1]
        %v2306 = vld [vmem:[%s2284 + $0x54] sm:$0xf]
        %v2307 = vld [vmem:[%s2284 + $0x58] sm:$0xf]
        %v2308 = vld [vmem:[%s2284 + $0x5c] sm:$0x1]
        %v2309 = vld [vmem:[%s2284 + $0x60] sm:$0xf]
        %v2310 = vld [vmem:[%s2284 + $0x64] sm:$0xf]
        %v2311 = vld [vmem:[%s2284 + $0x68] sm:$0x1]
        %v2312 = vld [vmem:[%s2284 + $0x6c] sm:$0xf]
        %v2313 = vld [vmem:[%s2284 + $0x70] sm:$0xf]
        %v2314 = vld [vmem:[%s2284 + $0x74] sm:$0x1]
        %v2315 = vld [vmem:[%s2284 + $0x78] sm:$0xf]
        %v2316 = vld [vmem:[%s2284 + $0x7c] sm:$0xf]
        %v2317 = vld [vmem:[%s2284 + $0x80] sm:$0x1]
        %v2318 = vld [vmem:[%s2284 + $0x84] sm:$0xf]
        %v2319 = vld [vmem:[%s2284 + $0x88] sm:$0xf]
        %v2320 = vld [vmem:[%s2284 + $0x8c] sm:$0x1]
        %v2321 = vld [vmem:[%s2284 + $0x90] sm:$0xf]
        %v2322 = vld [vmem:[%s2284 + $0x94] sm:$0xf]
        %v2323 = vld [vmem:[%s2284 + $0x98] sm:$0x1]
        %v2324 = vld [vmem:[%s2284 + $0x9c] sm:$0xf]
        %v2325 = vld [vmem:[%s2284 + $0xa0] sm:$0xf]
        %v2326 = vld [vmem:[%s2284 + $0xa4] sm:$0x1]
        %v2327 = vld [vmem:[%s2284 + $0xa8] sm:$0xf]
        %v2328 = vld [vmem:[%s2284 + $0xac] sm:$0xf]
        %v2329 = vld [vmem:[%s2284 + $0xb0] sm:$0x1]
        %v2330 = vld [vmem:[%s2284 + $0xb4] sm:$0xf]
        %v2331 = vld [vmem:[%s2284 + $0xb8] sm:$0xf]
        %v2332 = vld [vmem:[%s2284 + $0xbc] sm:$0x1]
        %v2333 = vunpack.c.l.bf16 %v2285
        %v2334 = vunpack.c.l.bf16 %v2286
        %v2335 = vunpack.c.l.bf16 %v2287
        %v2336 = vunpack.c.l.bf16 %v2288
        %v2337 = vunpack.c.l.bf16 %v2289
        %v2338 = vunpack.c.l.bf16 %v2290
        %v2339 = vunpack.c.l.bf16 %v2291
        %v2340 = vunpack.c.l.bf16 %v2292
        %v2341 = vunpack.c.l.bf16 %v2293
        %v2342 = vunpack.c.l.bf16 %v2294
        %v2343 = vunpack.c.l.bf16 %v2295
        %v2344 = vunpack.c.l.bf16 %v2296
        %v2345 = vunpack.c.l.bf16 %v2297
        %v2346 = vunpack.c.l.bf16 %v2298
        %v2347 = vunpack.c.l.bf16 %v2299
        %v2348 = vunpack.c.l.bf16 %v2300
        %v2349 = vunpack.c.l.bf16 %v2301
        %v2350 = vunpack.c.l.bf16 %v2302
        %v2351 = vunpack.c.l.bf16 %v2303
        %v2352 = vunpack.c.l.bf16 %v2304
        %v2353 = vunpack.c.l.bf16 %v2305
        %v2354 = vunpack.c.l.bf16 %v2306
        %v2355 = vunpack.c.l.bf16 %v2307
        %v2356 = vunpack.c.l.bf16 %v2308
        %v2357 = vunpack.c.l.bf16 %v2309
        %v2358 = vunpack.c.l.bf16 %v2310
        %v2359 = vunpack.c.l.bf16 %v2311
        %v2360 = vunpack.c.l.bf16 %v2312
        %v2361 = vunpack.c.l.bf16 %v2313
        %v2362 = vunpack.c.l.bf16 %v2314
        %v2363 = vunpack.c.l.bf16 %v2315
        %v2364 = vunpack.c.l.bf16 %v2316
        %v2365 = vunpack.c.l.bf16 %v2317
        %v2366 = vunpack.c.l.bf16 %v2318
        %v2367 = vunpack.c.l.bf16 %v2319
        %v2368 = vunpack.c.l.bf16 %v2320
        %v2369 = vunpack.c.l.bf16 %v2321
        %v2370 = vunpack.c.l.bf16 %v2322
        %v2371 = vunpack.c.l.bf16 %v2323
        %v2372 = vunpack.c.l.bf16 %v2324
        %v2373 = vunpack.c.l.bf16 %v2325
        %v2374 = vunpack.c.l.bf16 %v2326
        %v2375 = vunpack.c.l.bf16 %v2327
        %v2376 = vunpack.c.l.bf16 %v2328
        %v2377 = vunpack.c.l.bf16 %v2329
        %v2378 = vunpack.c.l.bf16 %v2330
        %v2379 = vunpack.c.l.bf16 %v2331
        %v2380 = vunpack.c.l.bf16 %v2332
        %v2381 = vpack.c.bf16 %v2334, %v2333
        %v2382 = vpack.c.bf16 %v2337, %v2336
        %v2383 = vpack.c.bf16 %v2340, %v2339
        %v2384 = vpack.c.bf16 %v2343, %v2342
        %v2385 = vpack.c.bf16 %v2346, %v2345
        %v2386 = vpack.c.bf16 %v2349, %v2348
        %v2387 = vpack.c.bf16 %v2352, %v2351
        %v2388 = vpack.c.bf16 %v2355, %v2354
        %v2389 = vpack.c.bf16 %v2358, %v2357
        %v2390 = vpack.c.bf16 %v2361, %v2360
        %v2391 = vpack.c.bf16 %v2364, %v2363
        %v2392 = vpack.c.bf16 %v2367, %v2366
        %v2393 = vpack.c.bf16 %v2370, %v2369
        %v2394 = vpack.c.bf16 %v2373, %v2372
        %v2395 = vpack.c.bf16 %v2376, %v2375
        %v2396 = vpack.c.bf16 %v2379, %v2378
        %v2413 = vunpack.c.l.b16 %v2381
        %v2414 = vunpack.c.h.b16 %v2381
        %v2415 = vunpack.c.l.b16 %v2382
        %v2416 = vunpack.c.h.b16 %v2382
        %v2417 = vunpack.c.l.b16 %v2383
        %v2418 = vunpack.c.h.b16 %v2383
        %v2419 = vunpack.c.l.b16 %v2384
        %v2420 = vunpack.c.h.b16 %v2384
        %v2421 = vunpack.c.l.b16 %v2385
        %v2422 = vunpack.c.h.b16 %v2385
        %v2423 = vunpack.c.l.b16 %v2386
        %v2424 = vunpack.c.h.b16 %v2386
        %v2425 = vunpack.c.l.b16 %v2387
        %v2426 = vunpack.c.h.b16 %v2387
        %v2427 = vunpack.c.l.b16 %v2388
        %v2428 = vunpack.c.h.b16 %v2388
        %v2429 = vunpack.c.l.b16 %v2389
        %v2430 = vunpack.c.h.b16 %v2389
        %v2431 = vunpack.c.l.b16 %v2390
        %v2432 = vunpack.c.h.b16 %v2390
        %v2433 = vunpack.c.l.b16 %v2391
        %v2434 = vunpack.c.h.b16 %v2391
        %v2435 = vunpack.c.l.b16 %v2392
        %v2436 = vunpack.c.h.b16 %v2392
        %v2437 = vunpack.c.l.b16 %v2393
        %v2438 = vunpack.c.h.b16 %v2393
        %v2439 = vunpack.c.l.b16 %v2394
        %v2440 = vunpack.c.h.b16 %v2394
        %v2441 = vunpack.c.l.b16 %v2395
        %v2442 = vunpack.c.h.b16 %v2395
        %v2443 = vunpack.c.l.b16 %v2396
        %v2444 = vunpack.c.h.b16 %v2396
        %v2445 = vpack.c.b16 %v2413, %v2413
        %v2446 = vpack.c.b16 %v2414, %v2414
        %v2447 = vpack.c.b16 %v2415, %v2415
        %v2448 = vpack.c.b16 %v2416, %v2416
        %v2449 = vpack.c.b16 %v2417, %v2417
        %v2450 = vpack.c.b16 %v2418, %v2418
        %v2451 = vpack.c.b16 %v2419, %v2419
        %v2452 = vpack.c.b16 %v2420, %v2420
        %v2453 = vpack.c.b16 %v2421, %v2421
        %v2454 = vpack.c.b16 %v2422, %v2422
        %v2455 = vpack.c.b16 %v2423, %v2423
        %v2456 = vpack.c.b16 %v2424, %v2424
        %v2457 = vpack.c.b16 %v2425, %v2425
        %v2458 = vpack.c.b16 %v2426, %v2426
        %v2459 = vpack.c.b16 %v2427, %v2427
        %v2460 = vpack.c.b16 %v2428, %v2428
        %v2461 = vpack.c.b16 %v2429, %v2429
        %v2462 = vpack.c.b16 %v2430, %v2430
        %v2463 = vpack.c.b16 %v2431, %v2431
        %v2464 = vpack.c.b16 %v2432, %v2432
        %v2465 = vpack.c.b16 %v2433, %v2433
        %v2466 = vpack.c.b16 %v2434, %v2434
        %v2467 = vpack.c.b16 %v2435, %v2435
        %v2468 = vpack.c.b16 %v2436, %v2436
        %v2469 = vpack.c.b16 %v2437, %v2437
        %v2470 = vpack.c.b16 %v2438, %v2438
        %v2471 = vpack.c.b16 %v2439, %v2439
        %v2472 = vpack.c.b16 %v2440, %v2440
        %v2473 = vpack.c.b16 %v2441, %v2441
        %v2474 = vpack.c.b16 %v2442, %v2442
        %v2475 = vpack.c.b16 %v2443, %v2443
        %v2476 = vpack.c.b16 %v2444, %v2444
        %2477 = vrot.lane.b32.xlu0 %v2445, 24
        %v2478 = vpop.permute.xlu0 %2477
        %2479 = vrot.lane.b32.xlu0 %v2446, 24
        %v2480 = vpop.permute.xlu0 %2479
        %2481 = vrot.lane.b32.xlu0 %v2447, 24
        %v2482 = vpop.permute.xlu0 %2481
        %2483 = vrot.lane.b32.xlu0 %v2448, 24
        %v2484 = vpop.permute.xlu0 %2483
        %2485 = vrot.lane.b32.xlu0 %v2449, 24
        %v2486 = vpop.permute.xlu0 %2485
        %2487 = vrot.lane.b32.xlu0 %v2450, 24
        %v2488 = vpop.permute.xlu0 %2487
        %2489 = vrot.lane.b32.xlu0 %v2451, 24
        %v2490 = vpop.permute.xlu0 %2489
        %2491 = vrot.lane.b32.xlu0 %v2452, 24
        %v2492 = vpop.permute.xlu0 %2491
        %2493 = vrot.lane.b32.xlu0 %v2453, 24
        %v2494 = vpop.permute.xlu0 %2493
        %2495 = vrot.lane.b32.xlu0 %v2454, 24
        %v2496 = vpop.permute.xlu0 %2495
        %2497 = vrot.lane.b32.xlu0 %v2455, 24
        %v2498 = vpop.permute.xlu0 %2497
        %2499 = vrot.lane.b32.xlu0 %v2456, 24
        %v2500 = vpop.permute.xlu0 %2499
        %2501 = vrot.lane.b32.xlu0 %v2457, 24
        %v2502 = vpop.permute.xlu0 %2501
        %2503 = vrot.lane.b32.xlu0 %v2458, 24
        %v2504 = vpop.permute.xlu0 %2503
        %2505 = vrot.lane.b32.xlu0 %v2459, 24
        %v2506 = vpop.permute.xlu0 %2505
        %2507 = vrot.lane.b32.xlu0 %v2460, 24
        %v2508 = vpop.permute.xlu0 %2507
        %2509 = vrot.lane.b32.xlu0 %v2461, 24
        %v2510 = vpop.permute.xlu0 %2509
        %2511 = vrot.lane.b32.xlu0 %v2462, 24
        %v2512 = vpop.permute.xlu0 %2511
        %2513 = vrot.lane.b32.xlu0 %v2463, 24
        %v2514 = vpop.permute.xlu0 %2513
        %2515 = vrot.lane.b32.xlu0 %v2464, 24
        %v2516 = vpop.permute.xlu0 %2515
        %2517 = vrot.lane.b32.xlu0 %v2465, 24
        %v2518 = vpop.permute.xlu0 %2517
        %2519 = vrot.lane.b32.xlu0 %v2466, 24
        %v2520 = vpop.permute.xlu0 %2519
        %2521 = vrot.lane.b32.xlu0 %v2467, 24
        %v2522 = vpop.permute.xlu0 %2521
        %2523 = vrot.lane.b32.xlu0 %v2468, 24
        %v2524 = vpop.permute.xlu0 %2523
        %2525 = vrot.lane.b32.xlu0 %v2469, 24
        %v2526 = vpop.permute.xlu0 %2525
        %2527 = vrot.lane.b32.xlu0 %v2470, 24
        %v2528 = vpop.permute.xlu0 %2527
        %2529 = vrot.lane.b32.xlu0 %v2471, 24
        %v2530 = vpop.permute.xlu0 %2529
        %2531 = vrot.lane.b32.xlu0 %v2472, 24
        %v2532 = vpop.permute.xlu0 %2531
        %2533 = vrot.lane.b32.xlu0 %v2473, 24
        %v2534 = vpop.permute.xlu0 %2533
        %2535 = vrot.lane.b32.xlu0 %v2474, 24
        %v2536 = vpop.permute.xlu0 %2535
        %2537 = vrot.lane.b32.xlu0 %v2475, 24
        %v2538 = vpop.permute.xlu0 %2537
        %2539 = vrot.lane.b32.xlu0 %v2476, 24
        %v2540 = vpop.permute.xlu0 %2539
        %vm2573 = vcmask 224448
        %2574 = vst.msk [vmem:[#allocation2] sm:$0xf] %vm2573, %v2478
        %2575 = vst.msk [vmem:[#allocation2 + $0x4] sm:$0xf] %vm2573, %v2480
        %2576 = vst.msk [vmem:[#allocation2 + $0x8] sm:$0xf] %vm2573, %v2482
        %2577 = vst.msk [vmem:[#allocation2 + $0xc] sm:$0xf] %vm2573, %v2484
        %2578 = vst.msk [vmem:[#allocation2 + $0x10] sm:$0xf] %vm2573, %v2486
        %2579 = vst.msk [vmem:[#allocation2 + $0x14] sm:$0xf] %vm2573, %v2488
        %2580 = vst.msk [vmem:[#allocation2 + $0x18] sm:$0xf] %vm2573, %v2490
        %2581 = vst.msk [vmem:[#allocation2 + $0x1c] sm:$0xf] %vm2573, %v2492
        %2582 = vst.msk [vmem:[#allocation2 + $0x20] sm:$0xf] %vm2573, %v2494
        %2583 = vst.msk [vmem:[#allocation2 + $0x24] sm:$0xf] %vm2573, %v2496
        %2584 = vst.msk [vmem:[#allocation2 + $0x28] sm:$0xf] %vm2573, %v2498
        %2585 = vst.msk [vmem:[#allocation2 + $0x2c] sm:$0xf] %vm2573, %v2500
        %2586 = vst.msk [vmem:[#allocation2 + $0x30] sm:$0xf] %vm2573, %v2502
        %2587 = vst.msk [vmem:[#allocation2 + $0x34] sm:$0xf] %vm2573, %v2504
        %2588 = vst.msk [vmem:[#allocation2 + $0x38] sm:$0xf] %vm2573, %v2506
        %2589 = vst.msk [vmem:[#allocation2 + $0x3c] sm:$0xf] %vm2573, %v2508
        %2590 = vst.msk [vmem:[#allocation2 + $0x40] sm:$0xf] %vm2573, %v2510
        %2591 = vst.msk [vmem:[#allocation2 + $0x44] sm:$0xf] %vm2573, %v2512
        %2592 = vst.msk [vmem:[#allocation2 + $0x48] sm:$0xf] %vm2573, %v2514
        %2593 = vst.msk [vmem:[#allocation2 + $0x4c] sm:$0xf] %vm2573, %v2516
        %2594 = vst.msk [vmem:[#allocation2 + $0x50] sm:$0xf] %vm2573, %v2518
        %2595 = vst.msk [vmem:[#allocation2 + $0x54] sm:$0xf] %vm2573, %v2520
        %2596 = vst.msk [vmem:[#allocation2 + $0x58] sm:$0xf] %vm2573, %v2522
        %2597 = vst.msk [vmem:[#allocation2 + $0x5c] sm:$0xf] %vm2573, %v2524
        %2598 = vst.msk [vmem:[#allocation2 + $0x60] sm:$0xf] %vm2573, %v2526
        %2599 = vst.msk [vmem:[#allocation2 + $0x64] sm:$0xf] %vm2573, %v2528
        %2600 = vst.msk [vmem:[#allocation2 + $0x68] sm:$0xf] %vm2573, %v2530
        %2601 = vst.msk [vmem:[#allocation2 + $0x6c] sm:$0xf] %vm2573, %v2532
        %2602 = vst.msk [vmem:[#allocation2 + $0x70] sm:$0xf] %vm2573, %v2534
        %2603 = vst.msk [vmem:[#allocation2 + $0x74] sm:$0xf] %vm2573, %v2536
        %2604 = vst.msk [vmem:[#allocation2 + $0x78] sm:$0xf] %vm2573, %v2538
        %2605 = vst.msk [vmem:[#allocation2 + $0x7c] sm:$0xf] %vm2573, %v2540
        %v2654 = vrot.slane %v2333, 1
        %v2655 = vrot.slane %v2334, 1
        %v2656 = vsel %vm564, %v2654, %v2655
        %v2657 = vrot.slane %v2335, 1
        %v2658 = vsel %vm564, %v2655, %v2657
        %v2659 = vrot.slane %v2336, 1
        %v2660 = vrot.slane %v2337, 1
        %v2661 = vsel %vm564, %v2659, %v2660
        %v2662 = vrot.slane %v2338, 1
        %v2663 = vsel %vm564, %v2660, %v2662
        %v2664 = vrot.slane %v2339, 1
        %v2665 = vrot.slane %v2340, 1
        %v2666 = vsel %vm564, %v2664, %v2665
        %v2667 = vrot.slane %v2341, 1
        %v2668 = vsel %vm564, %v2665, %v2667
        %v2669 = vrot.slane %v2342, 1
        %v2670 = vrot.slane %v2343, 1
        %v2671 = vsel %vm564, %v2669, %v2670
        %v2672 = vrot.slane %v2344, 1
        %v2673 = vsel %vm564, %v2670, %v2672
        %v2674 = vrot.slane %v2345, 1
        %v2675 = vrot.slane %v2346, 1
        %v2676 = vsel %vm564, %v2674, %v2675
        %v2677 = vrot.slane %v2347, 1
        %v2678 = vsel %vm564, %v2675, %v2677
        %v2679 = vrot.slane %v2348, 1
        %v2680 = vrot.slane %v2349, 1
        %v2681 = vsel %vm564, %v2679, %v2680
        %v2682 = vrot.slane %v2350, 1
        %v2683 = vsel %vm564, %v2680, %v2682
        %v2684 = vrot.slane %v2351, 1
        %v2685 = vrot.slane %v2352, 1
        %v2686 = vsel %vm564, %v2684, %v2685
        %v2687 = vrot.slane %v2353, 1
        %v2688 = vsel %vm564, %v2685, %v2687
        %v2689 = vrot.slane %v2354, 1
        %v2690 = vrot.slane %v2355, 1
        %v2691 = vsel %vm564, %v2689, %v2690
        %v2692 = vrot.slane %v2356, 1
        %v2693 = vsel %vm564, %v2690, %v2692
        %v2694 = vrot.slane %v2357, 1
        %v2695 = vrot.slane %v2358, 1
        %v2696 = vsel %vm564, %v2694, %v2695
        %v2697 = vrot.slane %v2359, 1
        %v2698 = vsel %vm564, %v2695, %v2697
        %v2699 = vrot.slane %v2360, 1
        %v2700 = vrot.slane %v2361, 1
        %v2701 = vsel %vm564, %v2699, %v2700
        %v2702 = vrot.slane %v2362, 1
        %v2703 = vsel %vm564, %v2700, %v2702
        %v2704 = vrot.slane %v2363, 1
        %v2705 = vrot.slane %v2364, 1
        %v2706 = vsel %vm564, %v2704, %v2705
        %v2707 = vrot.slane %v2365, 1
        %v2708 = vsel %vm564, %v2705, %v2707
        %v2709 = vrot.slane %v2366, 1
        %v2710 = vrot.slane %v2367, 1
        %v2711 = vsel %vm564, %v2709, %v2710
        %v2712 = vrot.slane %v2368, 1
        %v2713 = vsel %vm564, %v2710, %v2712
        %v2714 = vrot.slane %v2369, 1
        %v2715 = vrot.slane %v2370, 1
        %v2716 = vsel %vm564, %v2714, %v2715
        %v2717 = vrot.slane %v2371, 1
        %v2718 = vsel %vm564, %v2715, %v2717
        %v2719 = vrot.slane %v2372, 1
        %v2720 = vrot.slane %v2373, 1
        %v2721 = vsel %vm564, %v2719, %v2720
        %v2722 = vrot.slane %v2374, 1
        %v2723 = vsel %vm564, %v2720, %v2722
        %v2724 = vrot.slane %v2375, 1
        %v2725 = vrot.slane %v2376, 1
        %v2726 = vsel %vm564, %v2724, %v2725
        %v2727 = vrot.slane %v2377, 1
        %v2728 = vsel %vm564, %v2725, %v2727
        %v2729 = vrot.slane %v2378, 1
        %v2730 = vrot.slane %v2379, 1
        %v2731 = vsel %vm564, %v2729, %v2730
        %v2732 = vrot.slane %v2380, 1
        %v2733 = vsel %vm564, %v2730, %v2732
        %v2766 = vpack.c.bf16 %v2658, %v2656
        %v2767 = vpack.c.bf16 %v2663, %v2661
        %v2768 = vpack.c.bf16 %v2668, %v2666
        %v2769 = vpack.c.bf16 %v2673, %v2671
        %v2770 = vpack.c.bf16 %v2678, %v2676
        %v2771 = vpack.c.bf16 %v2683, %v2681
        %v2772 = vpack.c.bf16 %v2688, %v2686
        %v2773 = vpack.c.bf16 %v2693, %v2691
        %v2774 = vpack.c.bf16 %v2698, %v2696
        %v2775 = vpack.c.bf16 %v2703, %v2701
        %v2776 = vpack.c.bf16 %v2708, %v2706
        %v2777 = vpack.c.bf16 %v2713, %v2711
        %v2778 = vpack.c.bf16 %v2718, %v2716
        %v2779 = vpack.c.bf16 %v2723, %v2721
        %v2780 = vpack.c.bf16 %v2728, %v2726
        %v2781 = vpack.c.bf16 %v2733, %v2731
        %v2798 = vunpack.c.l.b16 %v2766
        %v2799 = vunpack.c.h.b16 %v2766
        %v2800 = vunpack.c.l.b16 %v2767
        %v2801 = vunpack.c.h.b16 %v2767
        %v2802 = vunpack.c.l.b16 %v2768
        %v2803 = vunpack.c.h.b16 %v2768
        %v2804 = vunpack.c.l.b16 %v2769
        %v2805 = vunpack.c.h.b16 %v2769
        %v2806 = vunpack.c.l.b16 %v2770
        %v2807 = vunpack.c.h.b16 %v2770
        %v2808 = vunpack.c.l.b16 %v2771
        %v2809 = vunpack.c.h.b16 %v2771
        %v2810 = vunpack.c.l.b16 %v2772
        %v2811 = vunpack.c.h.b16 %v2772
        %v2812 = vunpack.c.l.b16 %v2773
        %v2813 = vunpack.c.h.b16 %v2773
        %v2814 = vunpack.c.l.b16 %v2774
        %v2815 = vunpack.c.h.b16 %v2774
        %v2816 = vunpack.c.l.b16 %v2775
        %v2817 = vunpack.c.h.b16 %v2775
        %v2818 = vunpack.c.l.b16 %v2776
        %v2819 = vunpack.c.h.b16 %v2776
        %v2820 = vunpack.c.l.b16 %v2777
        %v2821 = vunpack.c.h.b16 %v2777
        %v2822 = vunpack.c.l.b16 %v2778
        %v2823 = vunpack.c.h.b16 %v2778
        %v2824 = vunpack.c.l.b16 %v2779
        %v2825 = vunpack.c.h.b16 %v2779
        %v2826 = vunpack.c.l.b16 %v2780
        %v2827 = vunpack.c.h.b16 %v2780
        %v2828 = vunpack.c.l.b16 %v2781
        %v2829 = vunpack.c.h.b16 %v2781
        %v2830 = vpack.c.b16 %v2798, %v2798
        %v2831 = vpack.c.b16 %v2799, %v2799
        %v2832 = vpack.c.b16 %v2800, %v2800
        %v2833 = vpack.c.b16 %v2801, %v2801
        %v2834 = vpack.c.b16 %v2802, %v2802
        %v2835 = vpack.c.b16 %v2803, %v2803
        %v2836 = vpack.c.b16 %v2804, %v2804
        %v2837 = vpack.c.b16 %v2805, %v2805
        %v2838 = vpack.c.b16 %v2806, %v2806
        %v2839 = vpack.c.b16 %v2807, %v2807
        %v2840 = vpack.c.b16 %v2808, %v2808
        %v2841 = vpack.c.b16 %v2809, %v2809
        %v2842 = vpack.c.b16 %v2810, %v2810
        %v2843 = vpack.c.b16 %v2811, %v2811
        %v2844 = vpack.c.b16 %v2812, %v2812
        %v2845 = vpack.c.b16 %v2813, %v2813
        %v2846 = vpack.c.b16 %v2814, %v2814
        %v2847 = vpack.c.b16 %v2815, %v2815
        %v2848 = vpack.c.b16 %v2816, %v2816
        %v2849 = vpack.c.b16 %v2817, %v2817
        %v2850 = vpack.c.b16 %v2818, %v2818
        %v2851 = vpack.c.b16 %v2819, %v2819
        %v2852 = vpack.c.b16 %v2820, %v2820
        %v2853 = vpack.c.b16 %v2821, %v2821
        %v2854 = vpack.c.b16 %v2822, %v2822
        %v2855 = vpack.c.b16 %v2823, %v2823
        %v2856 = vpack.c.b16 %v2824, %v2824
        %v2857 = vpack.c.b16 %v2825, %v2825
        %v2858 = vpack.c.b16 %v2826, %v2826
        %v2859 = vpack.c.b16 %v2827, %v2827
        %v2860 = vpack.c.b16 %v2828, %v2828
        %v2861 = vpack.c.b16 %v2829, %v2829
        %2862 = vrot.lane.b32.xlu0 %v2830, 28
        %v2863 = vpop.permute.xlu0 %2862
        %2864 = vrot.lane.b32.xlu0 %v2831, 28
        %v2865 = vpop.permute.xlu0 %2864
        %2866 = vrot.lane.b32.xlu0 %v2832, 28
        %v2867 = vpop.permute.xlu0 %2866
        %2868 = vrot.lane.b32.xlu0 %v2833, 28
        %v2869 = vpop.permute.xlu0 %2868
        %2870 = vrot.lane.b32.xlu0 %v2834, 28
        %v2871 = vpop.permute.xlu0 %2870
        %2872 = vrot.lane.b32.xlu0 %v2835, 28
        %v2873 = vpop.permute.xlu0 %2872
        %2874 = vrot.lane.b32.xlu0 %v2836, 28
        %v2875 = vpop.permute.xlu0 %2874
        %2876 = vrot.lane.b32.xlu0 %v2837, 28
        %v2877 = vpop.permute.xlu0 %2876
        %2878 = vrot.lane.b32.xlu0 %v2838, 28
        %v2879 = vpop.permute.xlu0 %2878
        %2880 = vrot.lane.b32.xlu0 %v2839, 28
        %v2881 = vpop.permute.xlu0 %2880
        %2882 = vrot.lane.b32.xlu0 %v2840, 28
        %v2883 = vpop.permute.xlu0 %2882
        %2884 = vrot.lane.b32.xlu0 %v2841, 28
        %v2885 = vpop.permute.xlu0 %2884
        %2886 = vrot.lane.b32.xlu0 %v2842, 28
        %v2887 = vpop.permute.xlu0 %2886
        %2888 = vrot.lane.b32.xlu0 %v2843, 28
        %v2889 = vpop.permute.xlu0 %2888
        %2890 = vrot.lane.b32.xlu0 %v2844, 28
        %v2891 = vpop.permute.xlu0 %2890
        %2892 = vrot.lane.b32.xlu0 %v2845, 28
        %v2893 = vpop.permute.xlu0 %2892
        %2894 = vrot.lane.b32.xlu0 %v2846, 28
        %v2895 = vpop.permute.xlu0 %2894
        %2896 = vrot.lane.b32.xlu0 %v2847, 28
        %v2897 = vpop.permute.xlu0 %2896
        %2898 = vrot.lane.b32.xlu0 %v2848, 28
        %v2899 = vpop.permute.xlu0 %2898
        %2900 = vrot.lane.b32.xlu0 %v2849, 28
        %v2901 = vpop.permute.xlu0 %2900
        %2902 = vrot.lane.b32.xlu0 %v2850, 28
        %v2903 = vpop.permute.xlu0 %2902
        %2904 = vrot.lane.b32.xlu0 %v2851, 28
        %v2905 = vpop.permute.xlu0 %2904
        %2906 = vrot.lane.b32.xlu0 %v2852, 28
        %v2907 = vpop.permute.xlu0 %2906
        %2908 = vrot.lane.b32.xlu0 %v2853, 28
        %v2909 = vpop.permute.xlu0 %2908
        %2910 = vrot.lane.b32.xlu0 %v2854, 28
        %v2911 = vpop.permute.xlu0 %2910
        %2912 = vrot.lane.b32.xlu0 %v2855, 28
        %v2913 = vpop.permute.xlu0 %2912
        %2914 = vrot.lane.b32.xlu0 %v2856, 28
        %v2915 = vpop.permute.xlu0 %2914
        %2916 = vrot.lane.b32.xlu0 %v2857, 28
        %v2917 = vpop.permute.xlu0 %2916
        %2918 = vrot.lane.b32.xlu0 %v2858, 28
        %v2919 = vpop.permute.xlu0 %2918
        %2920 = vrot.lane.b32.xlu0 %v2859, 28
        %v2921 = vpop.permute.xlu0 %2920
        %2922 = vrot.lane.b32.xlu0 %v2860, 28
        %v2923 = vpop.permute.xlu0 %2922
        %2924 = vrot.lane.b32.xlu0 %v2861, 28
        %v2925 = vpop.permute.xlu0 %2924
        %vm2958 = vcmask 257248
        %2959 = vst.msk [vmem:[#allocation2] sm:$0xf] %vm2958, %v2863
        %2960 = vst.msk [vmem:[#allocation2 + $0x4] sm:$0xf] %vm2958, %v2865
        %2961 = vst.msk [vmem:[#allocation2 + $0x8] sm:$0xf] %vm2958, %v2867
        %2962 = vst.msk [vmem:[#allocation2 + $0xc] sm:$0xf] %vm2958, %v2869
        %2963 = vst.msk [vmem:[#allocation2 + $0x10] sm:$0xf] %vm2958, %v2871
        %2964 = vst.msk [vmem:[#allocation2 + $0x14] sm:$0xf] %vm2958, %v2873
        %2965 = vst.msk [vmem:[#allocation2 + $0x18] sm:$0xf] %vm2958, %v2875
        %2966 = vst.msk [vmem:[#allocation2 + $0x1c] sm:$0xf] %vm2958, %v2877
        %2967 = vst.msk [vmem:[#allocation2 + $0x20] sm:$0xf] %vm2958, %v2879
        %2968 = vst.msk [vmem:[#allocation2 + $0x24] sm:$0xf] %vm2958, %v2881
        %2969 = vst.msk [vmem:[#allocation2 + $0x28] sm:$0xf] %vm2958, %v2883
        %2970 = vst.msk [vmem:[#allocation2 + $0x2c] sm:$0xf] %vm2958, %v2885
        %2971 = vst.msk [vmem:[#allocation2 + $0x30] sm:$0xf] %vm2958, %v2887
        %2972 = vst.msk [vmem:[#allocation2 + $0x34] sm:$0xf] %vm2958, %v2889
        %2973 = vst.msk [vmem:[#allocation2 + $0x38] sm:$0xf] %vm2958, %v2891
        %2974 = vst.msk [vmem:[#allocation2 + $0x3c] sm:$0xf] %vm2958, %v2893
        %2975 = vst.msk [vmem:[#allocation2 + $0x40] sm:$0xf] %vm2958, %v2895
        %2976 = vst.msk [vmem:[#allocation2 + $0x44] sm:$0xf] %vm2958, %v2897
        %2977 = vst.msk [vmem:[#allocation2 + $0x48] sm:$0xf] %vm2958, %v2899
        %2978 = vst.msk [vmem:[#allocation2 + $0x4c] sm:$0xf] %vm2958, %v2901
        %2979 = vst.msk [vmem:[#allocation2 + $0x50] sm:$0xf] %vm2958, %v2903
        %2980 = vst.msk [vmem:[#allocation2 + $0x54] sm:$0xf] %vm2958, %v2905
        %2981 = vst.msk [vmem:[#allocation2 + $0x58] sm:$0xf] %vm2958, %v2907
        %2982 = vst.msk [vmem:[#allocation2 + $0x5c] sm:$0xf] %vm2958, %v2909
        %2983 = vst.msk [vmem:[#allocation2 + $0x60] sm:$0xf] %vm2958, %v2911
        %2984 = vst.msk [vmem:[#allocation2 + $0x64] sm:$0xf] %vm2958, %v2913
        %2985 = vst.msk [vmem:[#allocation2 + $0x68] sm:$0xf] %vm2958, %v2915
        %2986 = vst.msk [vmem:[#allocation2 + $0x6c] sm:$0xf] %vm2958, %v2917
        %2987 = vst.msk [vmem:[#allocation2 + $0x70] sm:$0xf] %vm2958, %v2919
        %2988 = vst.msk [vmem:[#allocation2 + $0x74] sm:$0xf] %vm2958, %v2921
        %2989 = vst.msk [vmem:[#allocation2 + $0x78] sm:$0xf] %vm2958, %v2923
        %2990 = vst.msk [vmem:[#allocation2 + $0x7c] sm:$0xf] %vm2958, %v2925
        %v2991 = vrot.slane %v2333, 2
        %v2992 = vrot.slane %v2334, 2
        %v2993 = vsel %vm902, %v2991, %v2992
        %v2994 = vrot.slane %v2335, 2
        %v2995 = vsel %vm902, %v2992, %v2994
        %v2996 = vrot.slane %v2336, 2
        %v2997 = vrot.slane %v2337, 2
        %v2998 = vsel %vm902, %v2996, %v2997
        %v2999 = vrot.slane %v2338, 2
        %v3000 = vsel %vm902, %v2997, %v2999
        %v3001 = vrot.slane %v2339, 2
        %v3002 = vrot.slane %v2340, 2
        %v3003 = vsel %vm902, %v3001, %v3002
        %v3004 = vrot.slane %v2341, 2
        %v3005 = vsel %vm902, %v3002, %v3004
        %v3006 = vrot.slane %v2342, 2
        %v3007 = vrot.slane %v2343, 2
        %v3008 = vsel %vm902, %v3006, %v3007
        %v3009 = vrot.slane %v2344, 2
        %v3010 = vsel %vm902, %v3007, %v3009
        %v3011 = vrot.slane %v2345, 2
        %v3012 = vrot.slane %v2346, 2
        %v3013 = vsel %vm902, %v3011, %v3012
        %v3014 = vrot.slane %v2347, 2
        %v3015 = vsel %vm902, %v3012, %v3014
        %v3016 = vrot.slane %v2348, 2
        %v3017 = vrot.slane %v2349, 2
        %v3018 = vsel %vm902, %v3016, %v3017
        %v3019 = vrot.slane %v2350, 2
        %v3020 = vsel %vm902, %v3017, %v3019
        %v3021 = vrot.slane %v2351, 2
        %v3022 = vrot.slane %v2352, 2
        %v3023 = vsel %vm902, %v3021, %v3022
        %v3024 = vrot.slane %v2353, 2
        %v3025 = vsel %vm902, %v3022, %v3024
        %v3026 = vrot.slane %v2354, 2
        %v3027 = vrot.slane %v2355, 2
        %v3028 = vsel %vm902, %v3026, %v3027
        %v3029 = vrot.slane %v2356, 2
        %v3030 = vsel %vm902, %v3027, %v3029
        %v3031 = vrot.slane %v2357, 2
        %v3032 = vrot.slane %v2358, 2
        %v3033 = vsel %vm902, %v3031, %v3032
        %v3034 = vrot.slane %v2359, 2
        %v3035 = vsel %vm902, %v3032, %v3034
        %v3036 = vrot.slane %v2360, 2
        %v3037 = vrot.slane %v2361, 2
        %v3038 = vsel %vm902, %v3036, %v3037
        %v3039 = vrot.slane %v2362, 2
        %v3040 = vsel %vm902, %v3037, %v3039
        %v3041 = vrot.slane %v2363, 2
        %v3042 = vrot.slane %v2364, 2
        %v3043 = vsel %vm902, %v3041, %v3042
        %v3044 = vrot.slane %v2365, 2
        %v3045 = vsel %vm902, %v3042, %v3044
        %v3046 = vrot.slane %v2366, 2
        %v3047 = vrot.slane %v2367, 2
        %v3048 = vsel %vm902, %v3046, %v3047
        %v3049 = vrot.slane %v2368, 2
        %v3050 = vsel %vm902, %v3047, %v3049
        %v3051 = vrot.slane %v2369, 2
        %v3052 = vrot.slane %v2370, 2
        %v3053 = vsel %vm902, %v3051, %v3052
        %v3054 = vrot.slane %v2371, 2
        %v3055 = vsel %vm902, %v3052, %v3054
        %v3056 = vrot.slane %v2372, 2
        %v3057 = vrot.slane %v2373, 2
        %v3058 = vsel %vm902, %v3056, %v3057
        %v3059 = vrot.slane %v2374, 2
        %v3060 = vsel %vm902, %v3057, %v3059
        %v3061 = vrot.slane %v2375, 2
        %v3062 = vrot.slane %v2376, 2
        %v3063 = vsel %vm902, %v3061, %v3062
        %v3064 = vrot.slane %v2377, 2
        %v3065 = vsel %vm902, %v3062, %v3064
        %v3066 = vrot.slane %v2378, 2
        %v3067 = vrot.slane %v2379, 2
        %v3068 = vsel %vm902, %v3066, %v3067
        %v3069 = vrot.slane %v2380, 2
        %v3070 = vsel %vm902, %v3067, %v3069
        %v3103 = vpack.c.bf16 %v2995, %v2993
        %v3104 = vpack.c.bf16 %v3000, %v2998
        %v3105 = vpack.c.bf16 %v3005, %v3003
        %v3106 = vpack.c.bf16 %v3010, %v3008
        %v3107 = vpack.c.bf16 %v3015, %v3013
        %v3108 = vpack.c.bf16 %v3020, %v3018
        %v3109 = vpack.c.bf16 %v3025, %v3023
        %v3110 = vpack.c.bf16 %v3030, %v3028
        %v3111 = vpack.c.bf16 %v3035, %v3033
        %v3112 = vpack.c.bf16 %v3040, %v3038
        %v3113 = vpack.c.bf16 %v3045, %v3043
        %v3114 = vpack.c.bf16 %v3050, %v3048
        %v3115 = vpack.c.bf16 %v3055, %v3053
        %v3116 = vpack.c.bf16 %v3060, %v3058
        %v3117 = vpack.c.bf16 %v3065, %v3063
        %v3118 = vpack.c.bf16 %v3070, %v3068
        %v3135 = vunpack.c.l.b16 %v3103
        %v3136 = vunpack.c.h.b16 %v3103
        %v3137 = vunpack.c.l.b16 %v3104
        %v3138 = vunpack.c.h.b16 %v3104
        %v3139 = vunpack.c.l.b16 %v3105
        %v3140 = vunpack.c.h.b16 %v3105
        %v3141 = vunpack.c.l.b16 %v3106
        %v3142 = vunpack.c.h.b16 %v3106
        %v3143 = vunpack.c.l.b16 %v3107
        %v3144 = vunpack.c.h.b16 %v3107
        %v3145 = vunpack.c.l.b16 %v3108
        %v3146 = vunpack.c.h.b16 %v3108
        %v3147 = vunpack.c.l.b16 %v3109
        %v3148 = vunpack.c.h.b16 %v3109
        %v3149 = vunpack.c.l.b16 %v3110
        %v3150 = vunpack.c.h.b16 %v3110
        %v3151 = vunpack.c.l.b16 %v3111
        %v3152 = vunpack.c.h.b16 %v3111
        %v3153 = vunpack.c.l.b16 %v3112
        %v3154 = vunpack.c.h.b16 %v3112
        %v3155 = vunpack.c.l.b16 %v3113
        %v3156 = vunpack.c.h.b16 %v3113
        %v3157 = vunpack.c.l.b16 %v3114
        %v3158 = vunpack.c.h.b16 %v3114
        %v3159 = vunpack.c.l.b16 %v3115
        %v3160 = vunpack.c.h.b16 %v3115
        %v3161 = vunpack.c.l.b16 %v3116
        %v3162 = vunpack.c.h.b16 %v3116
        %v3163 = vunpack.c.l.b16 %v3117
        %v3164 = vunpack.c.h.b16 %v3117
        %v3165 = vunpack.c.l.b16 %v3118
        %v3166 = vunpack.c.h.b16 %v3118
        %v3167 = vpack.c.b16 %v3135, %v3135
        %v3168 = vpack.c.b16 %v3136, %v3136
        %v3169 = vpack.c.b16 %v3137, %v3137
        %v3170 = vpack.c.b16 %v3138, %v3138
        %v3171 = vpack.c.b16 %v3139, %v3139
        %v3172 = vpack.c.b16 %v3140, %v3140
        %v3173 = vpack.c.b16 %v3141, %v3141
        %v3174 = vpack.c.b16 %v3142, %v3142
        %v3175 = vpack.c.b16 %v3143, %v3143
        %v3176 = vpack.c.b16 %v3144, %v3144
        %v3177 = vpack.c.b16 %v3145, %v3145
        %v3178 = vpack.c.b16 %v3146, %v3146
        %v3179 = vpack.c.b16 %v3147, %v3147
        %v3180 = vpack.c.b16 %v3148, %v3148
        %v3181 = vpack.c.b16 %v3149, %v3149
        %v3182 = vpack.c.b16 %v3150, %v3150
        %v3183 = vpack.c.b16 %v3151, %v3151
        %v3184 = vpack.c.b16 %v3152, %v3152
        %v3185 = vpack.c.b16 %v3153, %v3153
        %v3186 = vpack.c.b16 %v3154, %v3154
        %v3187 = vpack.c.b16 %v3155, %v3155
        %v3188 = vpack.c.b16 %v3156, %v3156
        %v3189 = vpack.c.b16 %v3157, %v3157
        %v3190 = vpack.c.b16 %v3158, %v3158
        %v3191 = vpack.c.b16 %v3159, %v3159
        %v3192 = vpack.c.b16 %v3160, %v3160
        %v3193 = vpack.c.b16 %v3161, %v3161
        %v3194 = vpack.c.b16 %v3162, %v3162
        %v3195 = vpack.c.b16 %v3163, %v3163
        %v3196 = vpack.c.b16 %v3164, %v3164
        %v3197 = vpack.c.b16 %v3165, %v3165
        %v3198 = vpack.c.b16 %v3166, %v3166
        %3199 = vrot.lane.b32.xlu0 %v3167, 32
        %v3200 = vpop.permute.xlu0 %3199
        %3201 = vrot.lane.b32.xlu0 %v3168, 32
        %v3202 = vpop.permute.xlu0 %3201
        %3203 = vrot.lane.b32.xlu0 %v3169, 32
        %v3204 = vpop.permute.xlu0 %3203
        %3205 = vrot.lane.b32.xlu0 %v3170, 32
        %v3206 = vpop.permute.xlu0 %3205
        %3207 = vrot.lane.b32.xlu0 %v3171, 32
        %v3208 = vpop.permute.xlu0 %3207
        %3209 = vrot.lane.b32.xlu0 %v3172, 32
        %v3210 = vpop.permute.xlu0 %3209
        %3211 = vrot.lane.b32.xlu0 %v3173, 32
        %v3212 = vpop.permute.xlu0 %3211
        %3213 = vrot.lane.b32.xlu0 %v3174, 32
        %v3214 = vpop.permute.xlu0 %3213
        %3215 = vrot.lane.b32.xlu0 %v3175, 32
        %v3216 = vpop.permute.xlu0 %3215
        %3217 = vrot.lane.b32.xlu0 %v3176, 32
        %v3218 = vpop.permute.xlu0 %3217
        %3219 = vrot.lane.b32.xlu0 %v3177, 32
        %v3220 = vpop.permute.xlu0 %3219
        %3221 = vrot.lane.b32.xlu0 %v3178, 32
        %v3222 = vpop.permute.xlu0 %3221
        %3223 = vrot.lane.b32.xlu0 %v3179, 32
        %v3224 = vpop.permute.xlu0 %3223
        %3225 = vrot.lane.b32.xlu0 %v3180, 32
        %v3226 = vpop.permute.xlu0 %3225
        %3227 = vrot.lane.b32.xlu0 %v3181, 32
        %v3228 = vpop.permute.xlu0 %3227
        %3229 = vrot.lane.b32.xlu0 %v3182, 32
        %v3230 = vpop.permute.xlu0 %3229
        %3231 = vrot.lane.b32.xlu0 %v3183, 32
        %v3232 = vpop.permute.xlu0 %3231
        %3233 = vrot.lane.b32.xlu0 %v3184, 32
        %v3234 = vpop.permute.xlu0 %3233
        %3235 = vrot.lane.b32.xlu0 %v3185, 32
        %v3236 = vpop.permute.xlu0 %3235
        %3237 = vrot.lane.b32.xlu0 %v3186, 32
        %v3238 = vpop.permute.xlu0 %3237
        %3239 = vrot.lane.b32.xlu0 %v3187, 32
        %v3240 = vpop.permute.xlu0 %3239
        %3241 = vrot.lane.b32.xlu0 %v3188, 32
        %v3242 = vpop.permute.xlu0 %3241
        %3243 = vrot.lane.b32.xlu0 %v3189, 32
        %v3244 = vpop.permute.xlu0 %3243
        %3245 = vrot.lane.b32.xlu0 %v3190, 32
        %v3246 = vpop.permute.xlu0 %3245
        %3247 = vrot.lane.b32.xlu0 %v3191, 32
        %v3248 = vpop.permute.xlu0 %3247
        %3249 = vrot.lane.b32.xlu0 %v3192, 32
        %v3250 = vpop.permute.xlu0 %3249
        %3251 = vrot.lane.b32.xlu0 %v3193, 32
        %v3252 = vpop.permute.xlu0 %3251
        %3253 = vrot.lane.b32.xlu0 %v3194, 32
        %v3254 = vpop.permute.xlu0 %3253
        %3255 = vrot.lane.b32.xlu0 %v3195, 32
        %v3256 = vpop.permute.xlu0 %3255
        %3257 = vrot.lane.b32.xlu0 %v3196, 32
        %v3258 = vpop.permute.xlu0 %3257
        %3259 = vrot.lane.b32.xlu0 %v3197, 32
        %v3260 = vpop.permute.xlu0 %3259
        %3261 = vrot.lane.b32.xlu0 %v3198, 32
        %v3262 = vpop.permute.xlu0 %3261
        %vm3295 = vcmask 290048
        %3296 = vst.msk [vmem:[#allocation2] sm:$0xf] %vm3295, %v3200
        %3297 = vst.msk [vmem:[#allocation2 + $0x4] sm:$0xf] %vm3295, %v3202
        %3298 = vst.msk [vmem:[#allocation2 + $0x8] sm:$0xf] %vm3295, %v3204
        %3299 = vst.msk [vmem:[#allocation2 + $0xc] sm:$0xf] %vm3295, %v3206
        %3300 = vst.msk [vmem:[#allocation2 + $0x10] sm:$0xf] %vm3295, %v3208
        %3301 = vst.msk [vmem:[#allocation2 + $0x14] sm:$0xf] %vm3295, %v3210
        %3302 = vst.msk [vmem:[#allocation2 + $0x18] sm:$0xf] %vm3295, %v3212
        %3303 = vst.msk [vmem:[#allocation2 + $0x1c] sm:$0xf] %vm3295, %v3214
        %3304 = vst.msk [vmem:[#allocation2 + $0x20] sm:$0xf] %vm3295, %v3216
        %3305 = vst.msk [vmem:[#allocation2 + $0x24] sm:$0xf] %vm3295, %v3218
        %3306 = vst.msk [vmem:[#allocation2 + $0x28] sm:$0xf] %vm3295, %v3220
        %3307 = vst.msk [vmem:[#allocation2 + $0x2c] sm:$0xf] %vm3295, %v3222
        %3308 = vst.msk [vmem:[#allocation2 + $0x30] sm:$0xf] %vm3295, %v3224
        %3309 = vst.msk [vmem:[#allocation2 + $0x34] sm:$0xf] %vm3295, %v3226
        %3310 = vst.msk [vmem:[#allocation2 + $0x38] sm:$0xf] %vm3295, %v3228
        %3311 = vst.msk [vmem:[#allocation2 + $0x3c] sm:$0xf] %vm3295, %v3230
        %3312 = vst.msk [vmem:[#allocation2 + $0x40] sm:$0xf] %vm3295, %v3232
        %3313 = vst.msk [vmem:[#allocation2 + $0x44] sm:$0xf] %vm3295, %v3234
        %3314 = vst.msk [vmem:[#allocation2 + $0x48] sm:$0xf] %vm3295, %v3236
        %3315 = vst.msk [vmem:[#allocation2 + $0x4c] sm:$0xf] %vm3295, %v3238
        %3316 = vst.msk [vmem:[#allocation2 + $0x50] sm:$0xf] %vm3295, %v3240
        %3317 = vst.msk [vmem:[#allocation2 + $0x54] sm:$0xf] %vm3295, %v3242
        %3318 = vst.msk [vmem:[#allocation2 + $0x58] sm:$0xf] %vm3295, %v3244
        %3319 = vst.msk [vmem:[#allocation2 + $0x5c] sm:$0xf] %vm3295, %v3246
        %3320 = vst.msk [vmem:[#allocation2 + $0x60] sm:$0xf] %vm3295, %v3248
        %3321 = vst.msk [vmem:[#allocation2 + $0x64] sm:$0xf] %vm3295, %v3250
        %3322 = vst.msk [vmem:[#allocation2 + $0x68] sm:$0xf] %vm3295, %v3252
        %3323 = vst.msk [vmem:[#allocation2 + $0x6c] sm:$0xf] %vm3295, %v3254
        %3324 = vst.msk [vmem:[#allocation2 + $0x70] sm:$0xf] %vm3295, %v3256
        %3325 = vst.msk [vmem:[#allocation2 + $0x74] sm:$0xf] %vm3295, %v3258
        %3326 = vst.msk [vmem:[#allocation2 + $0x78] sm:$0xf] %vm3295, %v3260
        %3327 = vst.msk [vmem:[#allocation2 + $0x7c] sm:$0xf] %vm3295, %v3262
        %v3328 = vld [vmem:[#allocation2] sm:$0xf]
        %v3329 = vld [vmem:[#allocation2 + $0x4] sm:$0xf]
        %v3330 = vld [vmem:[#allocation2 + $0x8] sm:$0xf]
        %v3331 = vld [vmem:[#allocation2 + $0xc] sm:$0xf]
        %v3332 = vld [vmem:[#allocation2 + $0x10] sm:$0xf]
        %v3333 = vld [vmem:[#allocation2 + $0x14] sm:$0xf]
        %v3334 = vld [vmem:[#allocation2 + $0x18] sm:$0xf]
        %v3335 = vld [vmem:[#allocation2 + $0x1c] sm:$0xf]
        %v3336 = vld [vmem:[#allocation2 + $0x20] sm:$0xf]
        %v3337 = vld [vmem:[#allocation2 + $0x24] sm:$0xf]
        %v3338 = vld [vmem:[#allocation2 + $0x28] sm:$0xf]
        %v3339 = vld [vmem:[#allocation2 + $0x2c] sm:$0xf]
        %v3340 = vld [vmem:[#allocation2 + $0x30] sm:$0xf]
        %v3341 = vld [vmem:[#allocation2 + $0x34] sm:$0xf]
        %v3342 = vld [vmem:[#allocation2 + $0x38] sm:$0xf]
        %v3343 = vld [vmem:[#allocation2 + $0x3c] sm:$0xf]
        %v3344 = vld [vmem:[#allocation2 + $0x40] sm:$0xf]
        %v3345 = vld [vmem:[#allocation2 + $0x44] sm:$0xf]
        %v3346 = vld [vmem:[#allocation2 + $0x48] sm:$0xf]
        %v3347 = vld [vmem:[#allocation2 + $0x4c] sm:$0xf]
        %v3348 = vld [vmem:[#allocation2 + $0x50] sm:$0xf]
        %v3349 = vld [vmem:[#allocation2 + $0x54] sm:$0xf]
        %v3350 = vld [vmem:[#allocation2 + $0x58] sm:$0xf]
        %v3351 = vld [vmem:[#allocation2 + $0x5c] sm:$0xf]
        %v3352 = vld [vmem:[#allocation2 + $0x60] sm:$0xf]
        %v3353 = vld [vmem:[#allocation2 + $0x64] sm:$0xf]
        %v3354 = vld [vmem:[#allocation2 + $0x68] sm:$0xf]
        %v3355 = vld [vmem:[#allocation2 + $0x6c] sm:$0xf]
        %v3356 = vld [vmem:[#allocation2 + $0x70] sm:$0xf]
        %v3357 = vld [vmem:[#allocation2 + $0x74] sm:$0xf]
        %v3358 = vld [vmem:[#allocation2 + $0x78] sm:$0xf]
        %v3359 = vld [vmem:[#allocation2 + $0x7c] sm:$0xf]
        %v3360 = vld [vmem:[%s1] sm:$0xf]
        %v3361 = vld [vmem:[%s1 + $0x4] sm:$0xf]
        %v3362 = vld [vmem:[%s1 + $0x8] sm:$0xf]
        %v3363 = vld [vmem:[%s1 + $0xc] sm:$0xf]
        %v3364 = vld [vmem:[%s1 + $0x10] sm:$0x3]
        %v3397 = vunpack.c.l.b16 %v3328
        %v3398 = vunpack.c.l.b16 %v3329
        %v3399 = vunpack.c.l.b16 %v3330
        %v3400 = vunpack.c.l.b16 %v3331
        %v3401 = vunpack.c.l.b16 %v3332
        %v3402 = vunpack.c.l.b16 %v3333
        %v3403 = vunpack.c.l.b16 %v3334
        %v3404 = vunpack.c.l.b16 %v3335
        %v3405 = vunpack.c.l.b16 %v3336
        %v3406 = vunpack.c.l.b16 %v3337
        %v3407 = vunpack.c.l.b16 %v3338
        %v3408 = vunpack.c.l.b16 %v3339
        %v3409 = vunpack.c.l.b16 %v3340
        %v3410 = vunpack.c.l.b16 %v3341
        %v3411 = vunpack.c.l.b16 %v3342
        %v3412 = vunpack.c.l.b16 %v3343
        %v3413 = vunpack.c.l.b16 %v3344
        %v3414 = vunpack.c.l.b16 %v3345
        %v3415 = vunpack.c.l.b16 %v3346
        %v3416 = vunpack.c.l.b16 %v3347
        %v3417 = vunpack.c.l.b16 %v3348
        %v3418 = vunpack.c.l.b16 %v3349
        %v3419 = vunpack.c.l.b16 %v3350
        %v3420 = vunpack.c.l.b16 %v3351
        %v3421 = vunpack.c.l.b16 %v3352
        %v3422 = vunpack.c.l.b16 %v3353
        %v3423 = vunpack.c.l.b16 %v3354
        %v3424 = vunpack.c.l.b16 %v3355
        %v3425 = vunpack.c.l.b16 %v3356
        %v3426 = vunpack.c.l.b16 %v3357
        %v3427 = vunpack.c.l.b16 %v3358
        %v3428 = vunpack.c.l.b16 %v3359
        %v3429 = vpack.c.b16 %v3398, %v3397
        %v3430 = vpack.c.b16 %v3400, %v3399
        %v3431 = vpack.c.b16 %v3402, %v3401
        %v3432 = vpack.c.b16 %v3404, %v3403
        %v3433 = vpack.c.b16 %v3406, %v3405
        %v3434 = vpack.c.b16 %v3408, %v3407
        %v3435 = vpack.c.b16 %v3410, %v3409
        %v3436 = vpack.c.b16 %v3412, %v3411
        %v3437 = vpack.c.b16 %v3414, %v3413
        %v3438 = vpack.c.b16 %v3416, %v3415
        %v3439 = vpack.c.b16 %v3418, %v3417
        %v3440 = vpack.c.b16 %v3420, %v3419
        %v3441 = vpack.c.b16 %v3422, %v3421
        %v3442 = vpack.c.b16 %v3424, %v3423
        %v3443 = vpack.c.b16 %v3426, %v3425
        %v3444 = vpack.c.b16 %v3428, %v3427
        %v3450 = vunpack.c.l.b16 %v3360
        %v3451 = vunpack.c.l.b16 %v3361
        %v3452 = vunpack.c.l.b16 %v3362
        %v3453 = vunpack.c.l.b16 %v3363
        %v3454 = vunpack.c.l.b16 %v3364
        %v3455 = vpack.c.b16 %v3451, %v3450
        %v3456 = vpack.c.b16 %v3453, %v3452
        %v3457 = vpack.c.b16 %v3454, %v3454
        %vm3460 = vcmask 293888
        %v3462 = vsel %vm3460, %v3429, 0
        %v3465 = vsel %vm3460, %v3430, 0
        %v3468 = vsel %vm3460, %v3431, 0
        %v3471 = vsel %vm3460, %v3432, 0
        %v3474 = vsel %vm3460, %v3433, 0
        %v3477 = vsel %vm3460, %v3434, 0
        %v3480 = vsel %vm3460, %v3435, 0
        %v3483 = vsel %vm3460, %v3436, 0
        %v3486 = vsel %vm3460, %v3437, 0
        %v3489 = vsel %vm3460, %v3438, 0
        %v3492 = vsel %vm3460, %v3439, 0
        %v3495 = vsel %vm3460, %v3440, 0
        %v3498 = vsel %vm3460, %v3441, 0
        %v3501 = vsel %vm3460, %v3442, 0
        %v3504 = vsel %vm3460, %v3443, 0
        %v3507 = vsel %vm3460, %v3444, 0
        %vm3509 = vcmask 1041408
        %v3511 = vsel %vm3509, %v3457, 0
        %3513 = vmatprep.subr.bf16.mxu0 0
        %3514 = vmatpush1.bf16.msra.mxu0 0
        %3515 = vmatprep.subr.bf16.mxu0 0
        %3516 = vmatpush1.bf16.msra.mxu0 0
        %3517 = vmatprep.subr.bf16.mxu0 0
        %3518 = vmatpush1.bf16.msra.mxu0 0
        %3519 = vmatprep.subr.bf16.mxu0 0
        %3520 = vmatpush1.bf16.msra.mxu0 0
        %3521 = vmatprep.subr.bf16.mxu0 0
        %3522 = vmatpush1.bf16.msra.mxu0 0
        %3523 = vmatprep.subr.bf16.mxu0 0
        %3524 = vmatpush1.bf16.msra.mxu0 %v3511
        %3525 = vmatprep.subr.bf16.mxu0 0
        %3526 = vmatpush1.bf16.msra.mxu0 %v3456
        %3527 = vmatprep.subr.bf16.mxu0 0
        %3528 = vmatpush1.bf16.msra.mxu0 %v3455
        %3529 = vmatprep.subr.bf16.mxu0 0
        %3530 = vmatpush2.bf16.msra.mxu0 0
        %3531 = vmatprep.subr.bf16.mxu0 0
        %3532 = vmatpush2.bf16.msra.mxu0 0
        %3533 = vmatprep.subr.bf16.mxu0 0
        %3534 = vmatpush2.bf16.msra.mxu0 0
        %3535 = vmatprep.subr.bf16.mxu0 0
        %3536 = vmatpush2.bf16.msra.mxu0 0
        %3537 = vmatprep.subr.bf16.mxu0 0
        %3538 = vmatpush2.bf16.msra.mxu0 0
        %3539 = vmatprep.subr.bf16.mxu0 0
        %3540 = vmatpush2.bf16.msra.mxu0 0
        %3541 = vmatprep.subr.bf16.mxu0 0
        %3542 = vmatpush2.bf16.msra.mxu0 0
        %3543 = vmatprep.subr.bf16.mxu0 0
        %3544 = vmatpush2.bf16.msra.mxu0 0
        %3545 = vmatprep.mubr.bf16.mxu0 0
        %3546 = vmatmul.mubr.bf16.gmra.mxu0 %v3462
        %v3547 = vpop.f32.mrf.mxu0
        %v3548 = vadd.f32 0.0, %v3547
        %v3549 = vpop.f32.mrf.mxu0
        %v3550 = vpop.f32.mrf.mxu0
        %v3551 = vadd.f32 0.0, %v3550
        %v3552 = vpop.f32.mrf.mxu0
        %3553 = vmatprep.mubr.bf16.mxu0 0
        %3554 = vmatmul.mubr.bf16.gmra.mxu0 %v3465
        %v3555 = vpop.f32.mrf.mxu0
        %v3556 = vadd.f32 0.0, %v3555
        %v3557 = vpop.f32.mrf.mxu0
        %v3558 = vpop.f32.mrf.mxu0
        %v3559 = vadd.f32 0.0, %v3558
        %v3560 = vpop.f32.mrf.mxu0
        %3561 = vmatprep.mubr.bf16.mxu0 0
        %3562 = vmatmul.mubr.bf16.gmra.mxu0 %v3468
        %v3563 = vpop.f32.mrf.mxu0
        %v3564 = vadd.f32 0.0, %v3563
        %v3565 = vpop.f32.mrf.mxu0
        %v3566 = vpop.f32.mrf.mxu0
        %v3567 = vadd.f32 0.0, %v3566
        %v3568 = vpop.f32.mrf.mxu0
        %3569 = vmatprep.mubr.bf16.mxu0 0
        %3570 = vmatmul.mubr.bf16.gmra.mxu0 %v3471
        %v3571 = vpop.f32.mrf.mxu0
        %v3572 = vadd.f32 0.0, %v3571
        %v3573 = vpop.f32.mrf.mxu0
        %v3574 = vpop.f32.mrf.mxu0
        %v3575 = vadd.f32 0.0, %v3574
        %v3576 = vpop.f32.mrf.mxu0
        %3577 = vmatprep.mubr.bf16.mxu0 0
        %3578 = vmatmul.mubr.bf16.gmra.mxu0 %v3474
        %v3579 = vpop.f32.mrf.mxu0
        %v3580 = vadd.f32 0.0, %v3579
        %v3581 = vpop.f32.mrf.mxu0
        %v3582 = vpop.f32.mrf.mxu0
        %v3583 = vadd.f32 0.0, %v3582
        %v3584 = vpop.f32.mrf.mxu0
        %3585 = vmatprep.mubr.bf16.mxu0 0
        %3586 = vmatmul.mubr.bf16.gmra.mxu0 %v3477
        %v3587 = vpop.f32.mrf.mxu0
        %v3588 = vadd.f32 0.0, %v3587
        %v3589 = vpop.f32.mrf.mxu0
        %v3590 = vpop.f32.mrf.mxu0
        %v3591 = vadd.f32 0.0, %v3590
        %v3592 = vpop.f32.mrf.mxu0
        %3593 = vmatprep.mubr.bf16.mxu0 0
        %3594 = vmatmul.mubr.bf16.gmra.mxu0 %v3480
        %v3595 = vpop.f32.mrf.mxu0
        %v3596 = vadd.f32 0.0, %v3595
        %v3597 = vpop.f32.mrf.mxu0
        %v3598 = vpop.f32.mrf.mxu0
        %v3599 = vadd.f32 0.0, %v3598
        %v3600 = vpop.f32.mrf.mxu0
        %3601 = vmatprep.mubr.bf16.mxu0 0
        %3602 = vmatmul.mubr.bf16.gmra.mxu0 %v3483
        %v3603 = vpop.f32.mrf.mxu0
        %v3604 = vadd.f32 0.0, %v3603
        %v3605 = vpop.f32.mrf.mxu0
        %v3606 = vpop.f32.mrf.mxu0
        %v3607 = vadd.f32 0.0, %v3606
        %v3608 = vpop.f32.mrf.mxu0
        %3609 = vmatprep.mubr.bf16.mxu0 0
        %3610 = vmatmul.mubr.bf16.gmra.mxu0 %v3486
        %v3611 = vpop.f32.mrf.mxu0
        %v3612 = vadd.f32 0.0, %v3611
        %v3613 = vpop.f32.mrf.mxu0
        %v3614 = vpop.f32.mrf.mxu0
        %v3615 = vadd.f32 0.0, %v3614
        %v3616 = vpop.f32.mrf.mxu0
        %3617 = vmatprep.mubr.bf16.mxu0 0
        %3618 = vmatmul.mubr.bf16.gmra.mxu0 %v3489
        %v3619 = vpop.f32.mrf.mxu0
        %v3620 = vadd.f32 0.0, %v3619
        %v3621 = vpop.f32.mrf.mxu0
        %v3622 = vpop.f32.mrf.mxu0
        %v3623 = vadd.f32 0.0, %v3622
        %v3624 = vpop.f32.mrf.mxu0
        %3625 = vmatprep.mubr.bf16.mxu0 0
        %3626 = vmatmul.mubr.bf16.gmra.mxu0 %v3492
        %v3627 = vpop.f32.mrf.mxu0
        %v3628 = vadd.f32 0.0, %v3627
        %v3629 = vpop.f32.mrf.mxu0
        %v3630 = vpop.f32.mrf.mxu0
        %v3631 = vadd.f32 0.0, %v3630
        %v3632 = vpop.f32.mrf.mxu0
        %3633 = vmatprep.mubr.bf16.mxu0 0
        %3634 = vmatmul.mubr.bf16.gmra.mxu0 %v3495
        %v3635 = vpop.f32.mrf.mxu0
        %v3636 = vadd.f32 0.0, %v3635
        %v3637 = vpop.f32.mrf.mxu0
        %v3638 = vpop.f32.mrf.mxu0
        %v3639 = vadd.f32 0.0, %v3638
        %v3640 = vpop.f32.mrf.mxu0
        %3641 = vmatprep.mubr.bf16.mxu0 0
        %3642 = vmatmul.mubr.bf16.gmra.mxu0 %v3498
        %v3643 = vpop.f32.mrf.mxu0
        %v3644 = vadd.f32 0.0, %v3643
        %v3645 = vpop.f32.mrf.mxu0
        %v3646 = vpop.f32.mrf.mxu0
        %v3647 = vadd.f32 0.0, %v3646
        %v3648 = vpop.f32.mrf.mxu0
        %3649 = vmatprep.mubr.bf16.mxu0 0
        %3650 = vmatmul.mubr.bf16.gmra.mxu0 %v3501
        %v3651 = vpop.f32.mrf.mxu0
        %v3652 = vadd.f32 0.0, %v3651
        %v3653 = vpop.f32.mrf.mxu0
        %v3654 = vpop.f32.mrf.mxu0
        %v3655 = vadd.f32 0.0, %v3654
        %v3656 = vpop.f32.mrf.mxu0
        %3657 = vmatprep.mubr.bf16.mxu0 0
        %3658 = vmatmul.mubr.bf16.gmra.mxu0 %v3504
        %v3659 = vpop.f32.mrf.mxu0
        %v3660 = vadd.f32 0.0, %v3659
        %v3661 = vpop.f32.mrf.mxu0
        %v3662 = vpop.f32.mrf.mxu0
        %v3663 = vadd.f32 0.0, %v3662
        %v3664 = vpop.f32.mrf.mxu0
        %3665 = vmatprep.mubr.bf16.mxu0 0
        %3666 = vmatmul.mubr.bf16.gmra.mxu0 %v3507
        %v3667 = vpop.f32.mrf.mxu0
        %v3668 = vadd.f32 0.0, %v3667
        %v3669 = vpop.f32.mrf.mxu0
        %v3670 = vpop.f32.mrf.mxu0
        %v3671 = vadd.f32 0.0, %v3670
        %v3672 = vpop.f32.mrf.mxu0
        %3673 = vdwg.mxu0
        %v3674 = vpack.c.bf16 %v3551, %v3548
        %v3675 = vpack.c.bf16 %v3559, %v3556
        %v3676 = vpack.c.bf16 %v3567, %v3564
        %v3677 = vpack.c.bf16 %v3575, %v3572
        %v3678 = vpack.c.bf16 %v3583, %v3580
        %v3679 = vpack.c.bf16 %v3591, %v3588
        %v3680 = vpack.c.bf16 %v3599, %v3596
        %v3681 = vpack.c.bf16 %v3607, %v3604
        %v3682 = vpack.c.bf16 %v3615, %v3612
        %v3683 = vpack.c.bf16 %v3623, %v3620
        %v3684 = vpack.c.bf16 %v3631, %v3628
        %v3685 = vpack.c.bf16 %v3639, %v3636
        %v3686 = vpack.c.bf16 %v3647, %v3644
        %v3687 = vpack.c.bf16 %v3655, %v3652
        %v3688 = vpack.c.bf16 %v3663, %v3660
        %v3689 = vpack.c.bf16 %v3671, %v3668
        %v3706 = vunpack.c.l.b16 %v3674
        %v3707 = vunpack.c.h.b16 %v3674
        %v3708 = vunpack.c.l.b16 %v3675
        %v3709 = vunpack.c.h.b16 %v3675
        %v3710 = vunpack.c.l.b16 %v3676
        %v3711 = vunpack.c.h.b16 %v3676
        %v3712 = vunpack.c.l.b16 %v3677
        %v3713 = vunpack.c.h.b16 %v3677
        %v3714 = vunpack.c.l.b16 %v3678
        %v3715 = vunpack.c.h.b16 %v3678
        %v3716 = vunpack.c.l.b16 %v3679
        %v3717 = vunpack.c.h.b16 %v3679
        %v3718 = vunpack.c.l.b16 %v3680
        %v3719 = vunpack.c.h.b16 %v3680
        %v3720 = vunpack.c.l.b16 %v3681
        %v3721 = vunpack.c.h.b16 %v3681
        %v3722 = vunpack.c.l.b16 %v3682
        %v3723 = vunpack.c.h.b16 %v3682
        %v3724 = vunpack.c.l.b16 %v3683
        %v3725 = vunpack.c.h.b16 %v3683
        %v3726 = vunpack.c.l.b16 %v3684
        %v3727 = vunpack.c.h.b16 %v3684
        %v3728 = vunpack.c.l.b16 %v3685
        %v3729 = vunpack.c.h.b16 %v3685
        %v3730 = vunpack.c.l.b16 %v3686
        %v3731 = vunpack.c.h.b16 %v3686
        %v3732 = vunpack.c.l.b16 %v3687
        %v3733 = vunpack.c.h.b16 %v3687
        %v3734 = vunpack.c.l.b16 %v3688
        %v3735 = vunpack.c.h.b16 %v3688
        %v3736 = vunpack.c.l.b16 %v3689
        %v3737 = vunpack.c.h.b16 %v3689
        %v3738 = vpack.c.b16 %v3706, %v3706
        %v3739 = vpack.c.b16 %v3707, %v3707
        %v3740 = vpack.c.b16 %v3708, %v3708
        %v3741 = vpack.c.b16 %v3709, %v3709
        %v3742 = vpack.c.b16 %v3710, %v3710
        %v3743 = vpack.c.b16 %v3711, %v3711
        %v3744 = vpack.c.b16 %v3712, %v3712
        %v3745 = vpack.c.b16 %v3713, %v3713
        %v3746 = vpack.c.b16 %v3714, %v3714
        %v3747 = vpack.c.b16 %v3715, %v3715
        %v3748 = vpack.c.b16 %v3716, %v3716
        %v3749 = vpack.c.b16 %v3717, %v3717
        %v3750 = vpack.c.b16 %v3718, %v3718
        %v3751 = vpack.c.b16 %v3719, %v3719
        %v3752 = vpack.c.b16 %v3720, %v3720
        %v3753 = vpack.c.b16 %v3721, %v3721
        %v3754 = vpack.c.b16 %v3722, %v3722
        %v3755 = vpack.c.b16 %v3723, %v3723
        %v3756 = vpack.c.b16 %v3724, %v3724
        %v3757 = vpack.c.b16 %v3725, %v3725
        %v3758 = vpack.c.b16 %v3726, %v3726
        %v3759 = vpack.c.b16 %v3727, %v3727
        %v3760 = vpack.c.b16 %v3728, %v3728
        %v3761 = vpack.c.b16 %v3729, %v3729
        %v3762 = vpack.c.b16 %v3730, %v3730
        %v3763 = vpack.c.b16 %v3731, %v3731
        %v3764 = vpack.c.b16 %v3732, %v3732
        %v3765 = vpack.c.b16 %v3733, %v3733
        %v3766 = vpack.c.b16 %v3734, %v3734
        %v3767 = vpack.c.b16 %v3735, %v3735
        %v3768 = vpack.c.b16 %v3736, %v3736
        %v3769 = vpack.c.b16 %v3737, %v3737
        %vm3802 = vcmask 60416
        %3803 = vst.msk [vmem:[%s252] sm:$0xf] %vm3802, %v3738
        %3804 = vst.msk [vmem:[%s252 + $0x4] sm:$0xf] %vm3802, %v3739
        %3805 = vst.msk [vmem:[%s252 + $0x8] sm:$0xf] %vm3802, %v3740
        %3806 = vst.msk [vmem:[%s252 + $0xc] sm:$0xf] %vm3802, %v3741
        %3807 = vst.msk [vmem:[%s252 + $0x10] sm:$0xf] %vm3802, %v3742
        %3808 = vst.msk [vmem:[%s252 + $0x14] sm:$0xf] %vm3802, %v3743
        %3809 = vst.msk [vmem:[%s252 + $0x18] sm:$0xf] %vm3802, %v3744
        %3810 = vst.msk [vmem:[%s252 + $0x1c] sm:$0xf] %vm3802, %v3745
        %3811 = vst.msk [vmem:[%s252 + $0x20] sm:$0xf] %vm3802, %v3746
        %3812 = vst.msk [vmem:[%s252 + $0x24] sm:$0xf] %vm3802, %v3747
        %3813 = vst.msk [vmem:[%s252 + $0x28] sm:$0xf] %vm3802, %v3748
        %3814 = vst.msk [vmem:[%s252 + $0x2c] sm:$0xf] %vm3802, %v3749
        %3815 = vst.msk [vmem:[%s252 + $0x30] sm:$0xf] %vm3802, %v3750
        %3816 = vst.msk [vmem:[%s252 + $0x34] sm:$0xf] %vm3802, %v3751
        %3817 = vst.msk [vmem:[%s252 + $0x38] sm:$0xf] %vm3802, %v3752
        %3818 = vst.msk [vmem:[%s252 + $0x3c] sm:$0xf] %vm3802, %v3753
        %3819 = vst.msk [vmem:[%s252 + $0x40] sm:$0xf] %vm3802, %v3754
        %3820 = vst.msk [vmem:[%s252 + $0x44] sm:$0xf] %vm3802, %v3755
        %3821 = vst.msk [vmem:[%s252 + $0x48] sm:$0xf] %vm3802, %v3756
        %3822 = vst.msk [vmem:[%s252 + $0x4c] sm:$0xf] %vm3802, %v3757
        %3823 = vst.msk [vmem:[%s252 + $0x50] sm:$0xf] %vm3802, %v3758
        %3824 = vst.msk [vmem:[%s252 + $0x54] sm:$0xf] %vm3802, %v3759
        %3825 = vst.msk [vmem:[%s252 + $0x58] sm:$0xf] %vm3802, %v3760
        %3826 = vst.msk [vmem:[%s252 + $0x5c] sm:$0xf] %vm3802, %v3761
        %3827 = vst.msk [vmem:[%s252 + $0x60] sm:$0xf] %vm3802, %v3762
        %3828 = vst.msk [vmem:[%s252 + $0x64] sm:$0xf] %vm3802, %v3763
        %3829 = vst.msk [vmem:[%s252 + $0x68] sm:$0xf] %vm3802, %v3764
        %3830 = vst.msk [vmem:[%s252 + $0x6c] sm:$0xf] %vm3802, %v3765
        %3831 = vst.msk [vmem:[%s252 + $0x70] sm:$0xf] %vm3802, %v3766
        %3832 = vst.msk [vmem:[%s252 + $0x74] sm:$0xf] %vm3802, %v3767
        %3833 = vst.msk [vmem:[%s252 + $0x78] sm:$0xf] %vm3802, %v3768
        %3834 = vst.msk [vmem:[%s252 + $0x7c] sm:$0xf] %vm3802, %v3769
        %vm3835 = vcmask 64512
        %v3836 = vsel %vm3835, %v3548, 0.0
        %v3837 = vsel %vm3835, %v3551, 0.0
        %v3838 = vadd.f32 %v3836, %v3837
        %v3839 = vsel %vm3835, %v3556, 0.0
        %v3840 = vadd.f32 %v3838, %v3839
        %v3841 = vsel %vm3835, %v3559, 0.0
        %v3842 = vadd.f32 %v3840, %v3841
        %v3843 = vsel %vm3835, %v3564, 0.0
        %v3844 = vadd.f32 %v3842, %v3843
        %v3845 = vsel %vm3835, %v3567, 0.0
        %v3846 = vadd.f32 %v3844, %v3845
        %v3847 = vsel %vm3835, %v3572, 0.0
        %v3848 = vadd.f32 %v3846, %v3847
        %v3849 = vsel %vm3835, %v3575, 0.0
        %v3850 = vadd.f32 %v3848, %v3849
        %v3851 = vsel %vm3835, %v3580, 0.0
        %v3852 = vadd.f32 %v3850, %v3851
        %v3853 = vsel %vm3835, %v3583, 0.0
        %v3854 = vadd.f32 %v3852, %v3853
        %v3855 = vsel %vm3835, %v3588, 0.0
        %v3856 = vadd.f32 %v3854, %v3855
        %v3857 = vsel %vm3835, %v3591, 0.0
        %v3858 = vadd.f32 %v3856, %v3857
        %v3859 = vsel %vm3835, %v3596, 0.0
        %v3860 = vadd.f32 %v3858, %v3859
        %v3861 = vsel %vm3835, %v3599, 0.0
        %v3862 = vadd.f32 %v3860, %v3861
        %v3863 = vsel %vm3835, %v3604, 0.0
        %v3864 = vadd.f32 %v3862, %v3863
        %v3865 = vsel %vm3835, %v3607, 0.0
        %v3866 = vadd.f32 %v3864, %v3865
        %v3867 = vsel %vm3835, %v3612, 0.0
        %v3868 = vadd.f32 %v3866, %v3867
        %v3869 = vsel %vm3835, %v3615, 0.0
        %v3870 = vadd.f32 %v3868, %v3869
        %v3871 = vsel %vm3835, %v3620, 0.0
        %v3872 = vadd.f32 %v3870, %v3871
        %v3873 = vsel %vm3835, %v3623, 0.0
        %v3874 = vadd.f32 %v3872, %v3873
        %v3875 = vsel %vm3835, %v3628, 0.0
        %v3876 = vadd.f32 %v3874, %v3875
        %v3877 = vsel %vm3835, %v3631, 0.0
        %v3878 = vadd.f32 %v3876, %v3877
        %v3879 = vsel %vm3835, %v3636, 0.0
        %v3880 = vadd.f32 %v3878, %v3879
        %v3881 = vsel %vm3835, %v3639, 0.0
        %v3882 = vadd.f32 %v3880, %v3881
        %v3883 = vsel %vm3835, %v3644, 0.0
        %v3884 = vadd.f32 %v3882, %v3883
        %v3885 = vsel %vm3835, %v3647, 0.0
        %v3886 = vadd.f32 %v3884, %v3885
        %v3887 = vsel %vm3835, %v3652, 0.0
        %v3888 = vadd.f32 %v3886, %v3887
        %v3889 = vsel %vm3835, %v3655, 0.0
        %v3890 = vadd.f32 %v3888, %v3889
        %v3891 = vsel %vm3835, %v3660, 0.0
        %v3892 = vadd.f32 %v3890, %v3891
        %v3893 = vsel %vm3835, %v3663, 0.0
        %v3894 = vadd.f32 %v3892, %v3893
        %v3895 = vsel %vm3835, %v3668, 0.0
        %v3896 = vadd.f32 %v3894, %v3895
        %v3897 = vsel %vm3835, %v3671, 0.0
        %v3898 = vadd.f32 %v3896, %v3897
        %v3899 = vrot.slane %v3898, 4
        %v3900 = vadd.f32 %v3898, %v3899
        %v3901 = vrot.slane %v3900, 2
        %v3902 = vadd.f32 %v3900, %v3901
        %v3903 = vrot.slane %v3902, 1
        %v3904 = vadd.f32 %v3902, %v3903
        %vm3905 = vcmask 57344
        %3906 = vst.msk [vmem:[%s228] sm:$0x1] %vm3905, %v3904
        %v3907 = vmul.f32 %v3548, %v3548
        %v3908 = vmul.f32 %v3551, %v3551
        %v3909 = vmul.f32 %v3556, %v3556
        %v3910 = vmul.f32 %v3559, %v3559
        %v3911 = vmul.f32 %v3564, %v3564
        %v3912 = vmul.f32 %v3567, %v3567
        %v3913 = vmul.f32 %v3572, %v3572
        %v3914 = vmul.f32 %v3575, %v3575
        %v3915 = vmul.f32 %v3580, %v3580
        %v3916 = vmul.f32 %v3583, %v3583
        %v3917 = vmul.f32 %v3588, %v3588
        %v3918 = vmul.f32 %v3591, %v3591
        %v3919 = vmul.f32 %v3596, %v3596
        %v3920 = vmul.f32 %v3599, %v3599
        %v3921 = vmul.f32 %v3604, %v3604
        %v3922 = vmul.f32 %v3607, %v3607
        %v3923 = vmul.f32 %v3612, %v3612
        %v3924 = vmul.f32 %v3615, %v3615
        %v3925 = vmul.f32 %v3620, %v3620
        %v3926 = vmul.f32 %v3623, %v3623
        %v3927 = vmul.f32 %v3628, %v3628
        %v3928 = vmul.f32 %v3631, %v3631
        %v3929 = vmul.f32 %v3636, %v3636
        %v3930 = vmul.f32 %v3639, %v3639
        %v3931 = vmul.f32 %v3644, %v3644
        %v3932 = vmul.f32 %v3647, %v3647
        %v3933 = vmul.f32 %v3652, %v3652
        %v3934 = vmul.f32 %v3655, %v3655
        %v3935 = vmul.f32 %v3660, %v3660
        %v3936 = vmul.f32 %v3663, %v3663
        %v3937 = vmul.f32 %v3668, %v3668
        %v3938 = vmul.f32 %v3671, %v3671
        %v3939 = vsel %vm3835, %v3907, 0.0
        %v3940 = vsel %vm3835, %v3908, 0.0
        %v3941 = vadd.f32 %v3939, %v3940
        %v3942 = vsel %vm3835, %v3909, 0.0
        %v3943 = vadd.f32 %v3941, %v3942
        %v3944 = vsel %vm3835, %v3910, 0.0
        %v3945 = vadd.f32 %v3943, %v3944
        %v3946 = vsel %vm3835, %v3911, 0.0
        %v3947 = vadd.f32 %v3945, %v3946
        %v3948 = vsel %vm3835, %v3912, 0.0
        %v3949 = vadd.f32 %v3947, %v3948
        %v3950 = vsel %vm3835, %v3913, 0.0
        %v3951 = vadd.f32 %v3949, %v3950
        %v3952 = vsel %vm3835, %v3914, 0.0
        %v3953 = vadd.f32 %v3951, %v3952
        %v3954 = vsel %vm3835, %v3915, 0.0
        %v3955 = vadd.f32 %v3953, %v3954
        %v3956 = vsel %vm3835, %v3916, 0.0
        %v3957 = vadd.f32 %v3955, %v3956
        %v3958 = vsel %vm3835, %v3917, 0.0
        %v3959 = vadd.f32 %v3957, %v3958
        %v3960 = vsel %vm3835, %v3918, 0.0
        %v3961 = vadd.f32 %v3959, %v3960
        %v3962 = vsel %vm3835, %v3919, 0.0
        %v3963 = vadd.f32 %v3961, %v3962
        %v3964 = vsel %vm3835, %v3920, 0.0
        %v3965 = vadd.f32 %v3963, %v3964
        %v3966 = vsel %vm3835, %v3921, 0.0
        %v3967 = vadd.f32 %v3965, %v3966
        %v3968 = vsel %vm3835, %v3922, 0.0
        %v3969 = vadd.f32 %v3967, %v3968
        %v3970 = vsel %vm3835, %v3923, 0.0
        %v3971 = vadd.f32 %v3969, %v3970
        %v3972 = vsel %vm3835, %v3924, 0.0
        %v3973 = vadd.f32 %v3971, %v3972
        %v3974 = vsel %vm3835, %v3925, 0.0
        %v3975 = vadd.f32 %v3973, %v3974
        %v3976 = vsel %vm3835, %v3926, 0.0
        %v3977 = vadd.f32 %v3975, %v3976
        %v3978 = vsel %vm3835, %v3927, 0.0
        %v3979 = vadd.f32 %v3977, %v3978
        %v3980 = vsel %vm3835, %v3928, 0.0
        %v3981 = vadd.f32 %v3979, %v3980
        %v3982 = vsel %vm3835, %v3929, 0.0
        %v3983 = vadd.f32 %v3981, %v3982
        %v3984 = vsel %vm3835, %v3930, 0.0
        %v3985 = vadd.f32 %v3983, %v3984
        %v3986 = vsel %vm3835, %v3931, 0.0
        %v3987 = vadd.f32 %v3985, %v3986
        %v3988 = vsel %vm3835, %v3932, 0.0
        %v3989 = vadd.f32 %v3987, %v3988
        %v3990 = vsel %vm3835, %v3933, 0.0
        %v3991 = vadd.f32 %v3989, %v3990
        %v3992 = vsel %vm3835, %v3934, 0.0
        %v3993 = vadd.f32 %v3991, %v3992
        %v3994 = vsel %vm3835, %v3935, 0.0
        %v3995 = vadd.f32 %v3993, %v3994
        %v3996 = vsel %vm3835, %v3936, 0.0
        %v3997 = vadd.f32 %v3995, %v3996
        %v3998 = vsel %vm3835, %v3937, 0.0
        %v3999 = vadd.f32 %v3997, %v3998
        %v4000 = vsel %vm3835, %v3938, 0.0
        %v4001 = vadd.f32 %v3999, %v4000
        %v4002 = vrot.slane %v4001, 4
        %v4003 = vadd.f32 %v4001, %v4002
        %v4004 = vrot.slane %v4003, 2
        %v4005 = vadd.f32 %v4003, %v4004
        %v4006 = vrot.slane %v4005, 1
        %v4007 = vadd.f32 %v4005, %v4006
        %4008 = vst.msk [vmem:[%s228 + $0x1] sm:$0x1] %vm3905, %v4007
        %4009 = vrot.lane.b32.xlu0 %v3738, 120
        %v4010 = vpop.permute.xlu0 %4009
        %4011 = vrot.lane.b32.xlu0 %v3739, 120
        %v4012 = vpop.permute.xlu0 %4011
        %4013 = vrot.lane.b32.xlu0 %v3740, 120
        %v4014 = vpop.permute.xlu0 %4013
        %4015 = vrot.lane.b32.xlu0 %v3741, 120
        %v4016 = vpop.permute.xlu0 %4015
        %4017 = vrot.lane.b32.xlu0 %v3742, 120
        %v4018 = vpop.permute.xlu0 %4017
        %4019 = vrot.lane.b32.xlu0 %v3743, 120
        %v4020 = vpop.permute.xlu0 %4019
        %4021 = vrot.lane.b32.xlu0 %v3744, 120
        %v4022 = vpop.permute.xlu0 %4021
        %4023 = vrot.lane.b32.xlu0 %v3745, 120
        %v4024 = vpop.permute.xlu0 %4023
        %4025 = vrot.lane.b32.xlu0 %v3746, 120
        %v4026 = vpop.permute.xlu0 %4025
        %4027 = vrot.lane.b32.xlu0 %v3747, 120
        %v4028 = vpop.permute.xlu0 %4027
        %4029 = vrot.lane.b32.xlu0 %v3748, 120
        %v4030 = vpop.permute.xlu0 %4029
        %4031 = vrot.lane.b32.xlu0 %v3749, 120
        %v4032 = vpop.permute.xlu0 %4031
        %4033 = vrot.lane.b32.xlu0 %v3750, 120
        %v4034 = vpop.permute.xlu0 %4033
        %4035 = vrot.lane.b32.xlu0 %v3751, 120
        %v4036 = vpop.permute.xlu0 %4035
        %4037 = vrot.lane.b32.xlu0 %v3752, 120
        %v4038 = vpop.permute.xlu0 %4037
        %4039 = vrot.lane.b32.xlu0 %v3753, 120
        %v4040 = vpop.permute.xlu0 %4039
        %4041 = vrot.lane.b32.xlu0 %v3754, 120
        %v4042 = vpop.permute.xlu0 %4041
        %4043 = vrot.lane.b32.xlu0 %v3755, 120
        %v4044 = vpop.permute.xlu0 %4043
        %4045 = vrot.lane.b32.xlu0 %v3756, 120
        %v4046 = vpop.permute.xlu0 %4045
        %4047 = vrot.lane.b32.xlu0 %v3757, 120
        %v4048 = vpop.permute.xlu0 %4047
        %4049 = vrot.lane.b32.xlu0 %v3758, 120
        %v4050 = vpop.permute.xlu0 %4049
        %4051 = vrot.lane.b32.xlu0 %v3759, 120
        %v4052 = vpop.permute.xlu0 %4051
        %4053 = vrot.lane.b32.xlu0 %v3760, 120
        %v4054 = vpop.permute.xlu0 %4053
        %4055 = vrot.lane.b32.xlu0 %v3761, 120
        %v4056 = vpop.permute.xlu0 %4055
        %4057 = vrot.lane.b32.xlu0 %v3762, 120
        %v4058 = vpop.permute.xlu0 %4057
        %4059 = vrot.lane.b32.xlu0 %v3763, 120
        %v4060 = vpop.permute.xlu0 %4059
        %4061 = vrot.lane.b32.xlu0 %v3764, 120
        %v4062 = vpop.permute.xlu0 %4061
        %4063 = vrot.lane.b32.xlu0 %v3765, 120
        %v4064 = vpop.permute.xlu0 %4063
        %4065 = vrot.lane.b32.xlu0 %v3766, 120
        %v4066 = vpop.permute.xlu0 %4065
        %4067 = vrot.lane.b32.xlu0 %v3767, 120
        %v4068 = vpop.permute.xlu0 %4067
        %4069 = vrot.lane.b32.xlu0 %v3768, 120
        %v4070 = vpop.permute.xlu0 %4069
        %4071 = vrot.lane.b32.xlu0 %v3769, 120
        %v4072 = vpop.permute.xlu0 %4071
        %4105 = vst.msk [vmem:[%s257] sm:$0xf] %vm3802, %v4010
        %4106 = vst.msk [vmem:[%s257 + $0x4] sm:$0xf] %vm3802, %v4012
        %4107 = vst.msk [vmem:[%s257 + $0x8] sm:$0xf] %vm3802, %v4014
        %4108 = vst.msk [vmem:[%s257 + $0xc] sm:$0xf] %vm3802, %v4016
        %4109 = vst.msk [vmem:[%s257 + $0x10] sm:$0xf] %vm3802, %v4018
        %4110 = vst.msk [vmem:[%s257 + $0x14] sm:$0xf] %vm3802, %v4020
        %4111 = vst.msk [vmem:[%s257 + $0x18] sm:$0xf] %vm3802, %v4022
        %4112 = vst.msk [vmem:[%s257 + $0x1c] sm:$0xf] %vm3802, %v4024
        %4113 = vst.msk [vmem:[%s257 + $0x20] sm:$0xf] %vm3802, %v4026
        %4114 = vst.msk [vmem:[%s257 + $0x24] sm:$0xf] %vm3802, %v4028
        %4115 = vst.msk [vmem:[%s257 + $0x28] sm:$0xf] %vm3802, %v4030
        %4116 = vst.msk [vmem:[%s257 + $0x2c] sm:$0xf] %vm3802, %v4032
        %4117 = vst.msk [vmem:[%s257 + $0x30] sm:$0xf] %vm3802, %v4034
        %4118 = vst.msk [vmem:[%s257 + $0x34] sm:$0xf] %vm3802, %v4036
        %4119 = vst.msk [vmem:[%s257 + $0x38] sm:$0xf] %vm3802, %v4038
        %4120 = vst.msk [vmem:[%s257 + $0x3c] sm:$0xf] %vm3802, %v4040
        %4121 = vst.msk [vmem:[%s257 + $0x40] sm:$0xf] %vm3802, %v4042
        %4122 = vst.msk [vmem:[%s257 + $0x44] sm:$0xf] %vm3802, %v4044
        %4123 = vst.msk [vmem:[%s257 + $0x48] sm:$0xf] %vm3802, %v4046
        %4124 = vst.msk [vmem:[%s257 + $0x4c] sm:$0xf] %vm3802, %v4048
        %4125 = vst.msk [vmem:[%s257 + $0x50] sm:$0xf] %vm3802, %v4050
        %4126 = vst.msk [vmem:[%s257 + $0x54] sm:$0xf] %vm3802, %v4052
        %4127 = vst.msk [vmem:[%s257 + $0x58] sm:$0xf] %vm3802, %v4054
        %4128 = vst.msk [vmem:[%s257 + $0x5c] sm:$0xf] %vm3802, %v4056
        %4129 = vst.msk [vmem:[%s257 + $0x60] sm:$0xf] %vm3802, %v4058
        %4130 = vst.msk [vmem:[%s257 + $0x64] sm:$0xf] %vm3802, %v4060
        %4131 = vst.msk [vmem:[%s257 + $0x68] sm:$0xf] %vm3802, %v4062
        %4132 = vst.msk [vmem:[%s257 + $0x6c] sm:$0xf] %vm3802, %v4064
        %4133 = vst.msk [vmem:[%s257 + $0x70] sm:$0xf] %vm3802, %v4066
        %4134 = vst.msk [vmem:[%s257 + $0x74] sm:$0xf] %vm3802, %v4068
        %4135 = vst.msk [vmem:[%s257 + $0x78] sm:$0xf] %vm3802, %v4070
        %4136 = vst.msk [vmem:[%s257 + $0x7c] sm:$0xf] %vm3802, %v4072
        %vm4137 = vcmask 130112
        %v4138 = vsel %vm4137, %v3548, 0.0
        %v4139 = vsel %vm4137, %v3551, 0.0
        %v4140 = vadd.f32 %v4138, %v4139
        %v4141 = vsel %vm4137, %v3556, 0.0
        %v4142 = vadd.f32 %v4140, %v4141
        %v4143 = vsel %vm4137, %v3559, 0.0
        %v4144 = vadd.f32 %v4142, %v4143
        %v4145 = vsel %vm4137, %v3564, 0.0
        %v4146 = vadd.f32 %v4144, %v4145
        %v4147 = vsel %vm4137, %v3567, 0.0
        %v4148 = vadd.f32 %v4146, %v4147
        %v4149 = vsel %vm4137, %v3572, 0.0
        %v4150 = vadd.f32 %v4148, %v4149
        %v4151 = vsel %vm4137, %v3575, 0.0
        %v4152 = vadd.f32 %v4150, %v4151
        %v4153 = vsel %vm4137, %v3580, 0.0
        %v4154 = vadd.f32 %v4152, %v4153
        %v4155 = vsel %vm4137, %v3583, 0.0
        %v4156 = vadd.f32 %v4154, %v4155
        %v4157 = vsel %vm4137, %v3588, 0.0
        %v4158 = vadd.f32 %v4156, %v4157
        %v4159 = vsel %vm4137, %v3591, 0.0
        %v4160 = vadd.f32 %v4158, %v4159
        %v4161 = vsel %vm4137, %v3596, 0.0
        %v4162 = vadd.f32 %v4160, %v4161
        %v4163 = vsel %vm4137, %v3599, 0.0
        %v4164 = vadd.f32 %v4162, %v4163
        %v4165 = vsel %vm4137, %v3604, 0.0
        %v4166 = vadd.f32 %v4164, %v4165
        %v4167 = vsel %vm4137, %v3607, 0.0
        %v4168 = vadd.f32 %v4166, %v4167
        %v4169 = vsel %vm4137, %v3612, 0.0
        %v4170 = vadd.f32 %v4168, %v4169
        %v4171 = vsel %vm4137, %v3615, 0.0
        %v4172 = vadd.f32 %v4170, %v4171
        %v4173 = vsel %vm4137, %v3620, 0.0
        %v4174 = vadd.f32 %v4172, %v4173
        %v4175 = vsel %vm4137, %v3623, 0.0
        %v4176 = vadd.f32 %v4174, %v4175
        %v4177 = vsel %vm4137, %v3628, 0.0
        %v4178 = vadd.f32 %v4176, %v4177
        %v4179 = vsel %vm4137, %v3631, 0.0
        %v4180 = vadd.f32 %v4178, %v4179
        %v4181 = vsel %vm4137, %v3636, 0.0
        %v4182 = vadd.f32 %v4180, %v4181
        %v4183 = vsel %vm4137, %v3639, 0.0
        %v4184 = vadd.f32 %v4182, %v4183
        %v4185 = vsel %vm4137, %v3644, 0.0
        %v4186 = vadd.f32 %v4184, %v4185
        %v4187 = vsel %vm4137, %v3647, 0.0
        %v4188 = vadd.f32 %v4186, %v4187
        %v4189 = vsel %vm4137, %v3652, 0.0
        %v4190 = vadd.f32 %v4188, %v4189
        %v4191 = vsel %vm4137, %v3655, 0.0
        %v4192 = vadd.f32 %v4190, %v4191
        %v4193 = vsel %vm4137, %v3660, 0.0
        %v4194 = vadd.f32 %v4192, %v4193
        %v4195 = vsel %vm4137, %v3663, 0.0
        %v4196 = vadd.f32 %v4194, %v4195
        %v4197 = vsel %vm4137, %v3668, 0.0
        %v4198 = vadd.f32 %v4196, %v4197
        %v4199 = vsel %vm4137, %v3671, 0.0
        %v4200 = vadd.f32 %v4198, %v4199
        %v4201 = vrot.slane %v4200, 4
        %v4202 = vadd.f32 %v4200, %v4201
        %v4203 = vrot.slane %v4202, 2
        %v4204 = vadd.f32 %v4202, %v4203
        %v4205 = vrot.slane %v4204, 1
        %v4206 = vadd.f32 %v4204, %v4205
        %4208 = vrot.lane.b32.xlu0 %v4206, 120
        %v4209 = vpop.permute.xlu0 %4208
        %4211 = vst.msk [vmem:[%s242] sm:$0x1] %vm3905, %v4209
        %v4212 = vsel %vm4137, %v3907, 0.0
        %v4213 = vsel %vm4137, %v3908, 0.0
        %v4214 = vadd.f32 %v4212, %v4213
        %v4215 = vsel %vm4137, %v3909, 0.0
        %v4216 = vadd.f32 %v4214, %v4215
        %v4217 = vsel %vm4137, %v3910, 0.0
        %v4218 = vadd.f32 %v4216, %v4217
        %v4219 = vsel %vm4137, %v3911, 0.0
        %v4220 = vadd.f32 %v4218, %v4219
        %v4221 = vsel %vm4137, %v3912, 0.0
        %v4222 = vadd.f32 %v4220, %v4221
        %v4223 = vsel %vm4137, %v3913, 0.0
        %v4224 = vadd.f32 %v4222, %v4223
        %v4225 = vsel %vm4137, %v3914, 0.0
        %v4226 = vadd.f32 %v4224, %v4225
        %v4227 = vsel %vm4137, %v3915, 0.0
        %v4228 = vadd.f32 %v4226, %v4227
        %v4229 = vsel %vm4137, %v3916, 0.0
        %v4230 = vadd.f32 %v4228, %v4229
        %v4231 = vsel %vm4137, %v3917, 0.0
        %v4232 = vadd.f32 %v4230, %v4231
        %v4233 = vsel %vm4137, %v3918, 0.0
        %v4234 = vadd.f32 %v4232, %v4233
        %v4235 = vsel %vm4137, %v3919, 0.0
        %v4236 = vadd.f32 %v4234, %v4235
        %v4237 = vsel %vm4137, %v3920, 0.0
        %v4238 = vadd.f32 %v4236, %v4237
        %v4239 = vsel %vm4137, %v3921, 0.0
        %v4240 = vadd.f32 %v4238, %v4239
        %v4241 = vsel %vm4137, %v3922, 0.0
        %v4242 = vadd.f32 %v4240, %v4241
        %v4243 = vsel %vm4137, %v3923, 0.0
        %v4244 = vadd.f32 %v4242, %v4243
        %v4245 = vsel %vm4137, %v3924, 0.0
        %v4246 = vadd.f32 %v4244, %v4245
        %v4247 = vsel %vm4137, %v3925, 0.0
        %v4248 = vadd.f32 %v4246, %v4247
        %v4249 = vsel %vm4137, %v3926, 0.0
        %v4250 = vadd.f32 %v4248, %v4249
        %v4251 = vsel %vm4137, %v3927, 0.0
        %v4252 = vadd.f32 %v4250, %v4251
        %v4253 = vsel %vm4137, %v3928, 0.0
        %v4254 = vadd.f32 %v4252, %v4253
        %v4255 = vsel %vm4137, %v3929, 0.0
        %v4256 = vadd.f32 %v4254, %v4255
        %v4257 = vsel %vm4137, %v3930, 0.0
        %v4258 = vadd.f32 %v4256, %v4257
        %v4259 = vsel %vm4137, %v3931, 0.0
        %v4260 = vadd.f32 %v4258, %v4259
        %v4261 = vsel %vm4137, %v3932, 0.0
        %v4262 = vadd.f32 %v4260, %v4261
        %v4263 = vsel %vm4137, %v3933, 0.0
        %v4264 = vadd.f32 %v4262, %v4263
        %v4265 = vsel %vm4137, %v3934, 0.0
        %v4266 = vadd.f32 %v4264, %v4265
        %v4267 = vsel %vm4137, %v3935, 0.0
        %v4268 = vadd.f32 %v4266, %v4267
        %v4269 = vsel %vm4137, %v3936, 0.0
        %v4270 = vadd.f32 %v4268, %v4269
        %v4271 = vsel %vm4137, %v3937, 0.0
        %v4272 = vadd.f32 %v4270, %v4271
        %v4273 = vsel %vm4137, %v3938, 0.0
        %v4274 = vadd.f32 %v4272, %v4273
        %v4275 = vrot.slane %v4274, 4
        %v4276 = vadd.f32 %v4274, %v4275
        %v4277 = vrot.slane %v4276, 2
        %v4278 = vadd.f32 %v4276, %v4277
        %v4279 = vrot.slane %v4278, 1
        %v4280 = vadd.f32 %v4278, %v4279
        %4282 = vrot.lane.b32.xlu0 %v4280, 120
        %v4283 = vpop.permute.xlu0 %4282
        %4285 = vst.msk [vmem:[%s242 + $0x1] sm:$0x1] %vm3905, %v4283
        %p4286 = scmp.lt.s32.totalorder %s23, 1
        %s4287 = scalar_select %p4286, %s23, 1
        %s4288 = smul.addr %s4287, 32
        %s4289 = smul.addr %s4288, 4
        %s4290 = scalar_lea.vmem %s2, %s4289
        %s4291 = sand.u32 %s104, 1
        %s4292 = scalar_lea.sflag [#allocation4], %s4291
        %s4293 = sand.u32 %s104, 1
        %s4294 = smul.addr %s4293, 2
        %s4295 = scalar_lea.vmem [#allocation3], %s4294
        %p4296 = scmp.lt.s32.totalorder %s23, 1
        %s4297 = scalar_select %p4296, %s23, 1
        %s4298 = smul.addr %s4297, 32
        %s4299 = smul.addr %s4298, 4
        %s4300 = scalar_lea.vmem %s4, %s4299
        %s4301 = sand.u32 %s156, 1
        %s4302 = scalar_lea.sflag [#allocation6], %s4301
        %s4303 = sand.u32 %s156, 1
        %s4304 = smul.addr %s4303, 2
        %s4305 = scalar_lea.vmem [#allocation5], %s4304
        // Predicated region
        $region29: #{tpu_custom_call.1} parent=27 // pred_check
          %p4306 = pneg %p88
        $region30: #{tpu_custom_call.1} parent=27 // pred_check_branch
          %4308 = sbr.rel (%p4306) target = $region32
        $region31: #{tpu_custom_call.1} parent=27 // pred_region
          _
        $region32: #{tpu_custom_call.1} parent=27 // pred_fallthru
          _
        // Predicated region
        $region33: #{tpu_custom_call.1} parent=27 // pred_check
          %p4309 = pneg %p114
        $region34: #{tpu_custom_call.1} parent=27 // pred_check_branch
          %4311 = sbr.rel (%p4309) target = $region36
        $region35: #{tpu_custom_call.1} parent=27 // pred_region
          %s4313 = ssub.s32 32, 32
          %4314 = vsyncadd %s4292, %s4313
          %s4315 = smul.addr %s23, 32
          %s4316 = scalar_lea.hbm %s3, %s4315
          %s4318 = sshll.u32 %s4295, 4
          %s4319 = int_to_ptr.vmem [resolvable:$true] %s4318
          %4321 = dma.vmem_to_hbm [thread:$0]  %s4319, 32, %s4316, %s4292
        $region36: #{tpu_custom_call.1} parent=27 // pred_fallthru
          _
        // Predicated region
        $region37: #{tpu_custom_call.1} parent=27 // pred_check
          %p4322 = pneg %p140
        $region38: #{tpu_custom_call.1} parent=27 // pred_check_branch
          %4324 = sbr.rel (%p4322) target = $region40
        $region39: #{tpu_custom_call.1} parent=27 // pred_region
          _
        $region40: #{tpu_custom_call.1} parent=27 // pred_fallthru
          _
        // Predicated region
        $region41: #{tpu_custom_call.1} parent=27 // pred_check
          %p4325 = pneg %p166
        $region42: #{tpu_custom_call.1} parent=27 // pred_check_branch
          %4327 = sbr.rel (%p4325) target = $region44
        $region43: #{tpu_custom_call.1} parent=27 // pred_region
          %s4329 = ssub.s32 32, 32
          %4330 = vsyncadd %s4302, %s4329
          %s4331 = smul.addr %s23, 32
          %s4332 = scalar_lea.hbm %s5, %s4331
          %s4334 = sshll.u32 %s4305, 4
          %s4335 = int_to_ptr.vmem [resolvable:$true] %s4334
          %4337 = dma.vmem_to_hbm [thread:$0]  %s4335, 32, %s4332, %s4302
        $region44: #{tpu_custom_call.1} parent=27 // pred_fallthru
          _
      $region28: #{tpu_custom_call.1} parent=5 // pred_fallthru
        _
      %p4338 = scmp.le.s32.totalorder 2, %s18
      // Predicated region
      $region45: #{tpu_custom_call.1} parent=5 // pred_check
        %p4339 = pneg %p4338
      $region46: #{tpu_custom_call.1} parent=5 // pred_check_branch
        %4341 = sbr.rel (%p4339) target = $region48
      $region47: #{tpu_custom_call.1} parent=5 // pred_region
        %s4342 = ssub.s32 %s18, 2
        // Predicated region
        $region49: #{tpu_custom_call.1} parent=47 // pred_check
          %p4343 = pneg %p94
        $region50: #{tpu_custom_call.1} parent=47 // pred_check_branch
          %4345 = sbr.rel (%p4343) target = $region52
        $region51: #{tpu_custom_call.1} parent=47 // pred_region
          %p4346 = scmp.lt.s32.totalorder %s24, 1
          %s4347 = scalar_select %p4346, %s24, 1
          %s4348 = smul.addr %s4347, 32
          %s4349 = smul.addr %s4348, 4
          %s4350 = scalar_lea.vmem %s2, %s4349
        $region52: #{tpu_custom_call.1} parent=47 // pred_fallthru
          _
        // Predicated region
        $region53: #{tpu_custom_call.1} parent=47 // pred_check
          %p4351 = pneg %p120
        $region54: #{tpu_custom_call.1} parent=47 // pred_check_branch
          %4353 = sbr.rel (%p4351) target = $region56
        $region55: #{tpu_custom_call.1} parent=47 // pred_region
          %s4354 = sand.u32 %s105, 1
          %s4355 = scalar_lea.sflag [#allocation4], %s4354
          %s4356 = sand.u32 %s105, 1
          %s4357 = smul.addr %s4356, 2
          %s4358 = scalar_lea.vmem [#allocation3], %s4357
          %4359 = dma.done %s4355, 32
        $region56: #{tpu_custom_call.1} parent=47 // pred_fallthru
          _
        // Predicated region
        $region57: #{tpu_custom_call.1} parent=47 // pred_check
          %p4360 = pneg %p146
        $region58: #{tpu_custom_call.1} parent=47 // pred_check_branch
          %4362 = sbr.rel (%p4360) target = $region60
        $region59: #{tpu_custom_call.1} parent=47 // pred_region
          %p4363 = scmp.lt.s32.totalorder %s24, 1
          %s4364 = scalar_select %p4363, %s24, 1
          %s4365 = smul.addr %s4364, 32
          %s4366 = smul.addr %s4365, 4
          %s4367 = scalar_lea.vmem %s4, %s4366
        $region60: #{tpu_custom_call.1} parent=47 // pred_fallthru
          _
        // Predicated region
        $region61: #{tpu_custom_call.1} parent=47 // pred_check
          %p4368 = pneg %p172
        $region62: #{tpu_custom_call.1} parent=47 // pred_check_branch
          %4370 = sbr.rel (%p4368) target = $region64
        $region63: #{tpu_custom_call.1} parent=47 // pred_region
          %s4371 = sand.u32 %s157, 1
          %s4372 = scalar_lea.sflag [#allocation6], %s4371
          %s4373 = sand.u32 %s157, 1
          %s4374 = smul.addr %s4373, 2
          %s4375 = scalar_lea.vmem [#allocation5], %s4374
          %4376 = dma.done %s4372, 32
        $region64: #{tpu_custom_call.1} parent=47 // pred_fallthru
          _
      $region48: #{tpu_custom_call.1} parent=5 // pred_fallthru
        _
    $region6: #{tpu_custom_call.1} parent=1 // loop_footer
      %s22 = sadd.s32 1, %s18
    $region7: #{tpu_custom_call.1} parent=1 // loop_footer_branch
      %17 = sbr.rel target = $region3
    $region8: #{tpu_custom_call.1} parent=1 // loop_exit
      _
    %4377 = vsyncpa [#allocation4], 1
    %s4378 = scalar_lea.sflag [#allocation4], 1
    %4379 = vsyncpa %s4378, 1
    %4380 = vsyncpa [#allocation6], 1
    %s4381 = scalar_lea.sflag [#allocation6], 1
    %4382 = vsyncpa %s4381, 1

</llo_original>
